<compile_context>
chip_gen: v5e
topology: v5e:2x2
jax: 0.10.0
libtpu: 0.0.40
codegen_flags: <defaults>
</compile_context>

<pallas_src>
import math
from functools import partial

import jax
import jax.numpy as jnp
from jax import lax
from jax.experimental import pallas as pl
from jax.experimental.pallas import tpu as pltpu


# ----------------------------------------------------------------------------
# In-kernel helpers
# ----------------------------------------------------------------------------
def _layernorm(x, g, b, eps=1e-5):
    mu = jnp.mean(x, axis=-1, keepdims=True)
    xc = x - mu
    var = jnp.mean(xc * xc, axis=-1, keepdims=True)
    return xc * lax.rsqrt(var + eps) * g + b


def _softmax_last(x):
    m = jnp.max(x, axis=-1, keepdims=True)
    e = jnp.exp(x - m)
    return e * pl.reciprocal(jnp.sum(e, axis=-1, keepdims=True), approx=True)


# ----------------------------------------------------------------------------
# Single fused kernel: PE add + n_layers x (MHA + FFN + 2x LN) + MultiHeads
# One grid step for the whole batch; attention is batched via an additive
# cross-batch mask on the [B*L, B*L] score matrix.
# ----------------------------------------------------------------------------
def fused_encoder_kernel(x_ref, pe_ref, mask_ref,
                         wqkv_ref, bqkv_ref, woh_ref, bo_ref,
                         ln1g_ref, ln1b_ref, w1_ref, b1_ref, w2_ref, b2_ref,
                         ln2g_ref, ln2b_ref,
                         wi_ref, bi_ref, wg_ref, bg_ref, expand_ref,
                         o_ref, *, num_heads, n_layers, need_enhanced):
    x = x_ref[...]                               # [BL, F]
    pe = pe_ref[...]                             # [BL, F]
    mask = mask_ref[...]                         # [BL, BL] additive (0 / -1e9)
    BL, F = x.shape
    H = num_heads
    dh = F // H

    for layer in range(n_layers):
        # PositionalEncoding is re-applied at every layer (matches the
        # reference forward, which calls pos_enc inside time_spa_encoding).
        h = x + pe                                                   # [BL, F]

        # Fused QKV: one wide matmul, 96 output lanes.  Wq / bq carry the
        # 1/sqrt(dh) scale already (folded at pack time).
        qkv = jnp.dot(h, wqkv_ref[layer],
                      preferred_element_type=jnp.float32) + bqkv_ref[layer]   # [BL, 3F]

        wo_l = woh_ref[layer]                                        # [H, dh, F]
        attn = None
        for hh in range(H):                                          # static unroll, H=4
            qh = qkv[:, hh * dh:(hh + 1) * dh]                       # [BL, dh]
            kh = qkv[:, F + hh * dh:F + (hh + 1) * dh]               # [BL, dh]
            vh = qkv[:, 2 * F + hh * dh:2 * F + (hh + 1) * dh]       # [BL, dh]

            # q @ k^T over all B*L tokens; cross-batch blocks are masked off.
            s = lax.dot_general(qh, kh, (((1,), (1,)), ((), ())),
                                preferred_element_type=jnp.float32) + mask    # [BL, BL]
            p = _softmax_last(s)
            ctx = jnp.dot(p, vh, preferred_element_type=jnp.float32)          # [BL, dh]
            # Per-head slice of Wo; summing head projections == concat + Wo.
            proj = jnp.dot(ctx, wo_l[hh], preferred_element_type=jnp.float32)  # [BL, F]
            attn = proj if attn is None else attn + proj
        attn = attn + bo_ref[layer]

        x = _layernorm(h + attn, ln1g_ref[layer], ln1b_ref[layer])

        # Feed-forward (F -> hidden -> F, ReLU), post-norm residual
        mid = jnp.maximum(
            jnp.dot(x, w1_ref[layer], preferred_element_type=jnp.float32)
            + b1_ref[layer], 0.0)
        ffn = jnp.dot(mid, w2_ref[layer],
                      preferred_element_type=jnp.float32) + b2_ref[layer]
        x = _layernorm(x + ffn, ln2g_ref[layer], ln2b_ref[layer])

    if need_enhanced:
        # MultiHeads feature enhancement (row-wise grouped soft gating)
        inst = jnp.dot(x, wi_ref[...], preferred_element_type=jnp.float32) + bi_ref[...]
        logits = jnp.dot(inst, wg_ref[...], preferred_element_type=jnp.float32) + bg_ref[...]
        prob = _softmax_last(logits)                                  # [BL, G]
        # gate[l, f] = prob[l, f // (F//G)]  via precomputed expansion matrix
        gate = jnp.dot(prob, expand_ref[...], preferred_element_type=jnp.float32)  # [BL, F]
        x = inst * gate

    o_ref[...] = x.astype(o_ref.dtype)


# ----------------------------------------------------------------------------
# Parameter packing (wrapper side: all reshapes/stacks/scaling outside kernel)
# ----------------------------------------------------------------------------
def _pack_layer_params(layers, num_heads):
    F = layers[0]["wq"].shape[0]
    dh = F // num_heads
    scale = 1.0 / math.sqrt(dh)              # folded into Wq / bq (weight pre-scaling)

    packed = {}
    packed["wqkv"] = jnp.stack(
        [jnp.concatenate([p["wq"] * scale, p["wk"], p["wv"]], axis=1) for p in layers],
        axis=0)                                                      # [nl, F, 3F]
    packed["bqkv"] = jnp.stack(
        [jnp.concatenate([p["bq"] * scale, p["bk"], p["bv"]], axis=1) for p in layers],
        axis=0)                                                      # [nl, 1, 3F]
    packed["woh"] = jnp.stack([p["wo"].reshape(num_heads, dh, F) for p in layers],
                              axis=0)                                # [nl, H, dh, F]
    packed["bo"] = jnp.stack([p["bo"] for p in layers], axis=0)      # [nl, 1, F]
    for name in ("ln1g", "ln1b", "w1", "b1", "w2", "b2", "ln2g", "ln2b"):
        packed[name] = jnp.stack([p[name] for p in layers], axis=0)
    return packed


def sinusoidal_pe(length, dim):
    pos = jnp.arange(length, dtype=jnp.float32)[:, None]
    div = jnp.exp(jnp.arange(0, dim, 2, dtype=jnp.float32) * (-math.log(10000.0) / dim))
    pe = jnp.zeros((length, dim), jnp.float32)
    pe = pe.at[:, 0::2].set(jnp.sin(pos * div))
    pe = pe.at[:, 1::2].set(jnp.cos(pos * div))
    return pe


def _init_linear(key, fan_in, fan_out):
    kw, kb = jax.random.split(key)
    bound = 1.0 / math.sqrt(fan_in)
    w = jax.random.uniform(kw, (fan_in, fan_out), jnp.float32, -bound, bound)
    b = jax.random.uniform(kb, (1, fan_out), jnp.float32, -bound, bound)
    return w, b


def init_params(key, feature_dim, hidden_dim, groups, n_layers):
    F, Hd = feature_dim, hidden_dim
    layers = []
    for _ in range(n_layers):
        key, *ks = jax.random.split(key, 7)
        wq, bq = _init_linear(ks[0], F, F)
        wk, bk = _init_linear(ks[1], F, F)
        wv, bv = _init_linear(ks[2], F, F)
        wo, bo = _init_linear(ks[3], F, F)
        w1, b1 = _init_linear(ks[4], F, Hd)
        w2, b2 = _init_linear(ks[5], Hd, F)
        layers.append(dict(
            wq=wq, bq=bq, wk=wk, bk=bk, wv=wv, bv=bv, wo=wo, bo=bo,
            w1=w1, b1=b1, w2=w2, b2=b2,
            ln1g=jnp.ones((1, F), jnp.float32), ln1b=jnp.zeros((1, F), jnp.float32),
            ln2g=jnp.ones((1, F), jnp.float32), ln2b=jnp.zeros((1, F), jnp.float32)))
    key, k1, k2 = jax.random.split(key, 3)
    wi, bi = _init_linear(k1, F, F)
    wg, bg = _init_linear(k2, F, groups)
    return dict(encoder_layers=layers, mh=dict(wi=wi, bi=bi, wg=wg, bg=bg))


# ----------------------------------------------------------------------------
# Top-level forward: ONE pallas_call, ONE grid step for the whole module
# ----------------------------------------------------------------------------
def time_spa_joint_context_encoder(tf_in_pos, num_agent, params, *,
                                   num_heads, groups, need_enhanced=True):
    B, L, F = tf_in_pos.shape
    T = L // num_agent
    BL = B * L

    # token l = t*num_agent + n gets PE[t]; flattened row r = b*L + l.
    pe_tok = jnp.repeat(sinusoidal_pe(T, F), num_agent, axis=0)       # [L, F]
    pe_flat = jnp.tile(pe_tok, (B, 1))                                # [BL, F]

    # Additive mask: tokens only attend within their own batch element.
    row_b = jnp.repeat(jnp.arange(B, dtype=jnp.int32), L)             # [BL]
    mask = jnp.where(row_b[:, None] == row_b[None, :], 0.0, -1e9).astype(jnp.float32)

    # MultiHeads group-expansion matrix, built once wrapper-side.
    gs = F // groups
    expand = jnp.repeat(jnp.eye(groups, dtype=jnp.float32), gs, axis=1)  # [G, F]

    n_layers = len(params["encoder_layers"])
    pk = _pack_layer_params(params["encoder_layers"], num_heads)
    mh = params["mh"]

    x2 = tf_in_pos.reshape(BL, F)

    arrays = [x2, pe_flat, mask,
              pk["wqkv"], pk["bqkv"], pk["woh"], pk["bo"],
              pk["ln1g"], pk["ln1b"], pk["w1"], pk["b1"], pk["w2"], pk["b2"],
              pk["ln2g"], pk["ln2b"],
              mh["wi"], mh["bi"], mh["wg"], mh["bg"], expand]

    # Single grid step: every array is one full VMEM-resident block.
    in_specs = [pl.BlockSpec(a.shape, lambda i, nd=a.ndim: (0,) * nd) for a in arrays]

    out2 = pl.pallas_call(
        partial(fused_encoder_kernel, num_heads=num_heads, n_layers=n_layers,
                need_enhanced=need_enhanced),
        out_shape=jax.ShapeDtypeStruct((BL, F), tf_in_pos.dtype),
        grid=(1,),
        in_specs=in_specs,
        out_specs=pl.BlockSpec((BL, F), lambda i: (0, 0)),
        compiler_params=pltpu.CompilerParams(dimension_semantics=("arbitrary",)),
    )(*arrays)
    return out2.reshape(B, L, F)


# ----------------------------------------------------------------------------
if __name__ == "__main__":
    # cfg: feature_dim=32, hidden_dim=64, context_head=4, context_layer=2,
    #      groups=4, dropouts=0, need_enhanced=True
    B, NUM_AGENT, T = 2, 4, 8
    FEATURE_DIM, HIDDEN_DIM, CONTEXT_HEAD, CONTEXT_LAYER, GROUPS = 32, 64, 4, 2, 4
    L = T * NUM_AGENT

    key = jax.random.PRNGKey(0)
    k_in, k_par = jax.random.split(key)
    tf_in_pos = jax.random.normal(k_in, (B, L, FEATURE_DIM), jnp.float32)
    params = init_params(k_par, FEATURE_DIM, HIDDEN_DIM, GROUPS, CONTEXT_LAYER)

    out = time_spa_joint_context_encoder(
        tf_in_pos, NUM_AGENT, params,
        num_heads=CONTEXT_HEAD, groups=GROUPS, need_enhanced=True)
    out = jax.block_until_ready(out)

    assert out.shape == (B, L, FEATURE_DIM), out.shape
    assert bool(jnp.all(jnp.isfinite(out)))
    print("KERNEL_OK")
</pallas_src>

<mosaic_0001>
module attributes {stable_mosaic.version = 11 : i64} {
  func.func @fused_encoder_kernel(%arg0: i32, %arg1: memref<64x32xf32, #tpu.memory_space<vmem>>, %arg2: memref<64x32xf32, #tpu.memory_space<vmem>>, %arg3: memref<64x64xf32, #tpu.memory_space<vmem>>, %arg4: memref<2x32x96xf32, #tpu.memory_space<vmem>>, %arg5: memref<2x1x96xf32, #tpu.memory_space<vmem>>, %arg6: memref<2x4x8x32xf32, #tpu.memory_space<vmem>>, %arg7: memref<2x1x32xf32, #tpu.memory_space<vmem>>, %arg8: memref<2x1x32xf32, #tpu.memory_space<vmem>>, %arg9: memref<2x1x32xf32, #tpu.memory_space<vmem>>, %arg10: memref<2x32x64xf32, #tpu.memory_space<vmem>>, %arg11: memref<2x1x64xf32, #tpu.memory_space<vmem>>, %arg12: memref<2x64x32xf32, #tpu.memory_space<vmem>>, %arg13: memref<2x1x32xf32, #tpu.memory_space<vmem>>, %arg14: memref<2x1x32xf32, #tpu.memory_space<vmem>>, %arg15: memref<2x1x32xf32, #tpu.memory_space<vmem>>, %arg16: memref<32x32xf32, #tpu.memory_space<vmem>>, %arg17: memref<1x32xf32, #tpu.memory_space<vmem>>, %arg18: memref<32x4xf32, #tpu.memory_space<vmem>>, %arg19: memref<1x4xf32, #tpu.memory_space<vmem>>, %arg20: memref<4x32xf32, #tpu.memory_space<vmem>>, %arg21: memref<64x32xf32, #tpu.memory_space<vmem>>) attributes {dimension_semantics = [#tpu.dimension_semantics<arbitrary>], iteration_bounds = array<i64: 1>, scalar_prefetch = 0 : i64, scratch_operands = 0 : i64, tpu.core_type = #tpu.core_type<tc>, window_params = [{pipeline_mode = #tpu.pipeline_mode<synchronous>, transform_indices = @transform_0, window_bounds = array<i64: 64, 32>}, {pipeline_mode = #tpu.pipeline_mode<synchronous>, transform_indices = @transform_1, window_bounds = array<i64: 64, 32>}, {pipeline_mode = #tpu.pipeline_mode<synchronous>, transform_indices = @transform_2, window_bounds = array<i64: 64, 64>}, {pipeline_mode = #tpu.pipeline_mode<synchronous>, transform_indices = @transform_3, window_bounds = array<i64: 2, 32, 96>}, {pipeline_mode = #tpu.pipeline_mode<synchronous>, transform_indices = @transform_4, window_bounds = array<i64: 2, 1, 96>}, {pipeline_mode = #tpu.pipeline_mode<synchronous>, transform_indices = @transform_5, window_bounds = array<i64: 2, 4, 8, 32>}, {pipeline_mode = #tpu.pipeline_mode<synchronous>, transform_indices = @transform_6, window_bounds = array<i64: 2, 1, 32>}, {pipeline_mode = #tpu.pipeline_mode<synchronous>, transform_indices = @transform_7, window_bounds = array<i64: 2, 1, 32>}, {pipeline_mode = #tpu.pipeline_mode<synchronous>, transform_indices = @transform_8, window_bounds = array<i64: 2, 1, 32>}, {pipeline_mode = #tpu.pipeline_mode<synchronous>, transform_indices = @transform_9, window_bounds = array<i64: 2, 32, 64>}, {pipeline_mode = #tpu.pipeline_mode<synchronous>, transform_indices = @transform_10, window_bounds = array<i64: 2, 1, 64>}, {pipeline_mode = #tpu.pipeline_mode<synchronous>, transform_indices = @transform_11, window_bounds = array<i64: 2, 64, 32>}, {pipeline_mode = #tpu.pipeline_mode<synchronous>, transform_indices = @transform_12, window_bounds = array<i64: 2, 1, 32>}, {pipeline_mode = #tpu.pipeline_mode<synchronous>, transform_indices = @transform_13, window_bounds = array<i64: 2, 1, 32>}, {pipeline_mode = #tpu.pipeline_mode<synchronous>, transform_indices = @transform_14, window_bounds = array<i64: 2, 1, 32>}, {pipeline_mode = #tpu.pipeline_mode<synchronous>, transform_indices = @transform_15, window_bounds = array<i64: 32, 32>}, {pipeline_mode = #tpu.pipeline_mode<synchronous>, transform_indices = @transform_16, window_bounds = array<i64: 1, 32>}, {pipeline_mode = #tpu.pipeline_mode<synchronous>, transform_indices = @transform_17, window_bounds = array<i64: 32, 4>}, {pipeline_mode = #tpu.pipeline_mode<synchronous>, transform_indices = @transform_18, window_bounds = array<i64: 1, 4>}, {pipeline_mode = #tpu.pipeline_mode<synchronous>, transform_indices = @transform_19, window_bounds = array<i64: 4, 32>}, {pipeline_mode = #tpu.pipeline_mode<synchronous>, transform_indices = @transform_20, window_bounds = array<i64: 64, 32>}]} {
    %c0 = arith.constant 0 : index
    %c0_0 = arith.constant 0 : index
    %0 = vector.load %arg1[%c0, %c0_0] : memref<64x32xf32, #tpu.memory_space<vmem>>, vector<64x32xf32>
    %c0_1 = arith.constant 0 : index
    %c0_2 = arith.constant 0 : index
    %1 = vector.load %arg2[%c0_1, %c0_2] : memref<64x32xf32, #tpu.memory_space<vmem>>, vector<64x32xf32>
    %c0_3 = arith.constant 0 : index
    %c0_4 = arith.constant 0 : index
    %2 = vector.load %arg3[%c0_3, %c0_4] : memref<64x64xf32, #tpu.memory_space<vmem>>, vector<64x64xf32>
    %3 = arith.addf %0, %1 : vector<64x32xf32>
    %c0_5 = arith.constant 0 : index
    %c0_6 = arith.constant 0 : index
    %c0_7 = arith.constant 0 : index
    %4 = vector.load %arg4[%c0_5, %c0_6, %c0_7] : memref<2x32x96xf32, #tpu.memory_space<vmem>>, vector<1x32x96xf32>
    %5 = vector.shape_cast %4 : vector<1x32x96xf32> to vector<32x96xf32>
    %cst = arith.constant dense<0.000000e+00> : vector<64x96xf32>
    %6 = tpu.matmul %3, %5, %cst {dimension_numbers = #tpu.dot_dimension_numbers<[1], [0], [0], [1], [0, 0, 1, 1], [], []>} : vector<64x32xf32>, vector<32x96xf32>, vector<64x96xf32> -> vector<64x96xf32>
    %c0_8 = arith.constant 0 : index
    %c0_9 = arith.constant 0 : index
    %c0_10 = arith.constant 0 : index
    %7 = vector.load %arg5[%c0_8, %c0_9, %c0_10] : memref<2x1x96xf32, #tpu.memory_space<vmem>>, vector<1x1x96xf32>
    %8 = vector.shape_cast %7 : vector<1x1x96xf32> to vector<1x96xf32>
    %9 = vector.broadcast %8 : vector<1x96xf32> to vector<64x96xf32>
    %10 = arith.addf %6, %9 : vector<64x96xf32>
    %c0_11 = arith.constant 0 : index
    %c0_12 = arith.constant 0 : index
    %c0_13 = arith.constant 0 : index
    %c0_14 = arith.constant 0 : index
    %11 = vector.load %arg6[%c0_11, %c0_12, %c0_13, %c0_14] : memref<2x4x8x32xf32, #tpu.memory_space<vmem>>, vector<1x4x8x32xf32>
    %12 = vector.shape_cast %11 : vector<1x4x8x32xf32> to vector<4x8x32xf32>
    %13 = vector.extract_strided_slice %10 {offsets = [0, 0], sizes = [64, 8], strides = [1, 1]} : vector<64x96xf32> to vector<64x8xf32>
    %14 = vector.extract_strided_slice %10 {offsets = [0, 32], sizes = [64, 8], strides = [1, 1]} : vector<64x96xf32> to vector<64x8xf32>
    %15 = vector.extract_strided_slice %10 {offsets = [0, 64], sizes = [64, 8], strides = [1, 1]} : vector<64x96xf32> to vector<64x8xf32>
    %cst_15 = arith.constant dense<0.000000e+00> : vector<64x64xf32>
    %16 = tpu.matmul %13, %14, %cst_15 {dimension_numbers = #tpu.dot_dimension_numbers<[1], [1], [0], [0], [0, 0, 1, 0], [], []>} : vector<64x8xf32>, vector<64x8xf32>, vector<64x64xf32> -> vector<64x64xf32>
    %17 = arith.addf %16, %2 : vector<64x64xf32>
    %cst_16 = arith.constant dense<0xFF800000> : vector<64xf32>
    %18 = vector.multi_reduction <maximumf>, %17, %cst_16 [1] : vector<64x64xf32> to vector<64xf32>
    %19 = vector.shape_cast %18 : vector<64xf32> to vector<64x1xf32>
    %20 = vector.broadcast %19 : vector<64x1xf32> to vector<64x64xf32>
    %21 = arith.subf %17, %20 : vector<64x64xf32>
    %22 = math.exp %21 : vector<64x64xf32>
    %cst_17 = arith.constant dense<0.000000e+00> : vector<64xf32>
    %23 = vector.multi_reduction <add>, %22, %cst_17 [1] : vector<64x64xf32> to vector<64xf32>
    %24 = vector.shape_cast %23 : vector<64xf32> to vector<64x1xf32>
    %25 = tpu.reciprocal %24 {approx = true} : vector<64x1xf32> -> vector<64x1xf32>
    %26 = vector.broadcast %25 : vector<64x1xf32> to vector<64x64xf32>
    %27 = arith.mulf %22, %26 : vector<64x64xf32>
    %cst_18 = arith.constant dense<0.000000e+00> : vector<64x8xf32>
    %28 = tpu.matmul %27, %15, %cst_18 {dimension_numbers = #tpu.dot_dimension_numbers<[1], [0], [0], [1], [0, 0, 1, 1], [], []>} : vector<64x64xf32>, vector<64x8xf32>, vector<64x8xf32> -> vector<64x8xf32>
    %29 = vector.extract_strided_slice %12 {offsets = [0, 0, 0], sizes = [1, 8, 32], strides = [1, 1, 1]} : vector<4x8x32xf32> to vector<1x8x32xf32>
    %30 = vector.shape_cast %29 : vector<1x8x32xf32> to vector<8x32xf32>
    %cst_19 = arith.constant dense<0.000000e+00> : vector<64x32xf32>
    %31 = tpu.matmul %28, %30, %cst_19 {dimension_numbers = #tpu.dot_dimension_numbers<[1], [0], [0], [1], [0, 0, 1, 1], [], []>} : vector<64x8xf32>, vector<8x32xf32>, vector<64x32xf32> -> vector<64x32xf32>
    %32 = vector.extract_strided_slice %10 {offsets = [0, 8], sizes = [64, 8], strides = [1, 1]} : vector<64x96xf32> to vector<64x8xf32>
    %33 = vector.extract_strided_slice %10 {offsets = [0, 40], sizes = [64, 8], strides = [1, 1]} : vector<64x96xf32> to vector<64x8xf32>
    %34 = vector.extract_strided_slice %10 {offsets = [0, 72], sizes = [64, 8], strides = [1, 1]} : vector<64x96xf32> to vector<64x8xf32>
    %cst_20 = arith.constant dense<0.000000e+00> : vector<64x64xf32>
    %35 = tpu.matmul %32, %33, %cst_20 {dimension_numbers = #tpu.dot_dimension_numbers<[1], [1], [0], [0], [0, 0, 1, 0], [], []>} : vector<64x8xf32>, vector<64x8xf32>, vector<64x64xf32> -> vector<64x64xf32>
    %36 = arith.addf %35, %2 : vector<64x64xf32>
    %cst_21 = arith.constant dense<0xFF800000> : vector<64xf32>
    %37 = vector.multi_reduction <maximumf>, %36, %cst_21 [1] : vector<64x64xf32> to vector<64xf32>
    %38 = vector.shape_cast %37 : vector<64xf32> to vector<64x1xf32>
    %39 = vector.broadcast %38 : vector<64x1xf32> to vector<64x64xf32>
    %40 = arith.subf %36, %39 : vector<64x64xf32>
    %41 = math.exp %40 : vector<64x64xf32>
    %cst_22 = arith.constant dense<0.000000e+00> : vector<64xf32>
    %42 = vector.multi_reduction <add>, %41, %cst_22 [1] : vector<64x64xf32> to vector<64xf32>
    %43 = vector.shape_cast %42 : vector<64xf32> to vector<64x1xf32>
    %44 = tpu.reciprocal %43 {approx = true} : vector<64x1xf32> -> vector<64x1xf32>
    %45 = vector.broadcast %44 : vector<64x1xf32> to vector<64x64xf32>
    %46 = arith.mulf %41, %45 : vector<64x64xf32>
    %cst_23 = arith.constant dense<0.000000e+00> : vector<64x8xf32>
    %47 = tpu.matmul %46, %34, %cst_23 {dimension_numbers = #tpu.dot_dimension_numbers<[1], [0], [0], [1], [0, 0, 1, 1], [], []>} : vector<64x64xf32>, vector<64x8xf32>, vector<64x8xf32> -> vector<64x8xf32>
    %48 = vector.extract_strided_slice %12 {offsets = [1, 0, 0], sizes = [1, 8, 32], strides = [1, 1, 1]} : vector<4x8x32xf32> to vector<1x8x32xf32>
    %49 = vector.shape_cast %48 : vector<1x8x32xf32> to vector<8x32xf32>
    %cst_24 = arith.constant dense<0.000000e+00> : vector<64x32xf32>
    %50 = tpu.matmul %47, %49, %cst_24 {dimension_numbers = #tpu.dot_dimension_numbers<[1], [0], [0], [1], [0, 0, 1, 1], [], []>} : vector<64x8xf32>, vector<8x32xf32>, vector<64x32xf32> -> vector<64x32xf32>
    %51 = arith.addf %31, %50 : vector<64x32xf32>
    %52 = vector.extract_strided_slice %10 {offsets = [0, 16], sizes = [64, 8], strides = [1, 1]} : vector<64x96xf32> to vector<64x8xf32>
    %53 = vector.extract_strided_slice %10 {offsets = [0, 48], sizes = [64, 8], strides = [1, 1]} : vector<64x96xf32> to vector<64x8xf32>
    %54 = vector.extract_strided_slice %10 {offsets = [0, 80], sizes = [64, 8], strides = [1, 1]} : vector<64x96xf32> to vector<64x8xf32>
    %cst_25 = arith.constant dense<0.000000e+00> : vector<64x64xf32>
    %55 = tpu.matmul %52, %53, %cst_25 {dimension_numbers = #tpu.dot_dimension_numbers<[1], [1], [0], [0], [0, 0, 1, 0], [], []>} : vector<64x8xf32>, vector<64x8xf32>, vector<64x64xf32> -> vector<64x64xf32>
    %56 = arith.addf %55, %2 : vector<64x64xf32>
    %cst_26 = arith.constant dense<0xFF800000> : vector<64xf32>
    %57 = vector.multi_reduction <maximumf>, %56, %cst_26 [1] : vector<64x64xf32> to vector<64xf32>
    %58 = vector.shape_cast %57 : vector<64xf32> to vector<64x1xf32>
    %59 = vector.broadcast %58 : vector<64x1xf32> to vector<64x64xf32>
    %60 = arith.subf %56, %59 : vector<64x64xf32>
    %61 = math.exp %60 : vector<64x64xf32>
    %cst_27 = arith.constant dense<0.000000e+00> : vector<64xf32>
    %62 = vector.multi_reduction <add>, %61, %cst_27 [1] : vector<64x64xf32> to vector<64xf32>
    %63 = vector.shape_cast %62 : vector<64xf32> to vector<64x1xf32>
    %64 = tpu.reciprocal %63 {approx = true} : vector<64x1xf32> -> vector<64x1xf32>
    %65 = vector.broadcast %64 : vector<64x1xf32> to vector<64x64xf32>
    %66 = arith.mulf %61, %65 : vector<64x64xf32>
    %cst_28 = arith.constant dense<0.000000e+00> : vector<64x8xf32>
    %67 = tpu.matmul %66, %54, %cst_28 {dimension_numbers = #tpu.dot_dimension_numbers<[1], [0], [0], [1], [0, 0, 1, 1], [], []>} : vector<64x64xf32>, vector<64x8xf32>, vector<64x8xf32> -> vector<64x8xf32>
    %68 = vector.extract_strided_slice %12 {offsets = [2, 0, 0], sizes = [1, 8, 32], strides = [1, 1, 1]} : vector<4x8x32xf32> to vector<1x8x32xf32>
    %69 = vector.shape_cast %68 : vector<1x8x32xf32> to vector<8x32xf32>
    %cst_29 = arith.constant dense<0.000000e+00> : vector<64x32xf32>
    %70 = tpu.matmul %67, %69, %cst_29 {dimension_numbers = #tpu.dot_dimension_numbers<[1], [0], [0], [1], [0, 0, 1, 1], [], []>} : vector<64x8xf32>, vector<8x32xf32>, vector<64x32xf32> -> vector<64x32xf32>
    %71 = arith.addf %51, %70 : vector<64x32xf32>
    %72 = vector.extract_strided_slice %10 {offsets = [0, 24], sizes = [64, 8], strides = [1, 1]} : vector<64x96xf32> to vector<64x8xf32>
    %73 = vector.extract_strided_slice %10 {offsets = [0, 56], sizes = [64, 8], strides = [1, 1]} : vector<64x96xf32> to vector<64x8xf32>
    %74 = vector.extract_strided_slice %10 {offsets = [0, 88], sizes = [64, 8], strides = [1, 1]} : vector<64x96xf32> to vector<64x8xf32>
    %cst_30 = arith.constant dense<0.000000e+00> : vector<64x64xf32>
    %75 = tpu.matmul %72, %73, %cst_30 {dimension_numbers = #tpu.dot_dimension_numbers<[1], [1], [0], [0], [0, 0, 1, 0], [], []>} : vector<64x8xf32>, vector<64x8xf32>, vector<64x64xf32> -> vector<64x64xf32>
    %76 = arith.addf %75, %2 : vector<64x64xf32>
    %cst_31 = arith.constant dense<0xFF800000> : vector<64xf32>
    %77 = vector.multi_reduction <maximumf>, %76, %cst_31 [1] : vector<64x64xf32> to vector<64xf32>
    %78 = vector.shape_cast %77 : vector<64xf32> to vector<64x1xf32>
    %79 = vector.broadcast %78 : vector<64x1xf32> to vector<64x64xf32>
    %80 = arith.subf %76, %79 : vector<64x64xf32>
    %81 = math.exp %80 : vector<64x64xf32>
    %cst_32 = arith.constant dense<0.000000e+00> : vector<64xf32>
    %82 = vector.multi_reduction <add>, %81, %cst_32 [1] : vector<64x64xf32> to vector<64xf32>
    %83 = vector.shape_cast %82 : vector<64xf32> to vector<64x1xf32>
    %84 = tpu.reciprocal %83 {approx = true} : vector<64x1xf32> -> vector<64x1xf32>
    %85 = vector.broadcast %84 : vector<64x1xf32> to vector<64x64xf32>
    %86 = arith.mulf %81, %85 : vector<64x64xf32>
    %cst_33 = arith.constant dense<0.000000e+00> : vector<64x8xf32>
    %87 = tpu.matmul %86, %74, %cst_33 {dimension_numbers = #tpu.dot_dimension_numbers<[1], [0], [0], [1], [0, 0, 1, 1], [], []>} : vector<64x64xf32>, vector<64x8xf32>, vector<64x8xf32> -> vector<64x8xf32>
    %88 = vector.extract_strided_slice %12 {offsets = [3, 0, 0], sizes = [1, 8, 32], strides = [1, 1, 1]} : vector<4x8x32xf32> to vector<1x8x32xf32>
    %89 = vector.shape_cast %88 : vector<1x8x32xf32> to vector<8x32xf32>
    %cst_34 = arith.constant dense<0.000000e+00> : vector<64x32xf32>
    %90 = tpu.matmul %87, %89, %cst_34 {dimension_numbers = #tpu.dot_dimension_numbers<[1], [0], [0], [1], [0, 0, 1, 1], [], []>} : vector<64x8xf32>, vector<8x32xf32>, vector<64x32xf32> -> vector<64x32xf32>
    %91 = arith.addf %71, %90 : vector<64x32xf32>
    %c0_35 = arith.constant 0 : index
    %c0_36 = arith.constant 0 : index
    %c0_37 = arith.constant 0 : index
    %92 = vector.load %arg7[%c0_35, %c0_36, %c0_37] : memref<2x1x32xf32, #tpu.memory_space<vmem>>, vector<1x1x32xf32>
    %93 = vector.shape_cast %92 : vector<1x1x32xf32> to vector<1x32xf32>
    %94 = vector.broadcast %93 : vector<1x32xf32> to vector<64x32xf32>
    %95 = arith.addf %91, %94 : vector<64x32xf32>
    %96 = arith.addf %3, %95 : vector<64x32xf32>
    %c0_38 = arith.constant 0 : index
    %c0_39 = arith.constant 0 : index
    %c0_40 = arith.constant 0 : index
    %97 = vector.load %arg8[%c0_38, %c0_39, %c0_40] : memref<2x1x32xf32, #tpu.memory_space<vmem>>, vector<1x1x32xf32>
    %98 = vector.shape_cast %97 : vector<1x1x32xf32> to vector<1x32xf32>
    %c0_41 = arith.constant 0 : index
    %c0_42 = arith.constant 0 : index
    %c0_43 = arith.constant 0 : index
    %99 = vector.load %arg9[%c0_41, %c0_42, %c0_43] : memref<2x1x32xf32, #tpu.memory_space<vmem>>, vector<1x1x32xf32>
    %100 = vector.shape_cast %99 : vector<1x1x32xf32> to vector<1x32xf32>
    %cst_44 = arith.constant dense<0.000000e+00> : vector<64xf32>
    %101 = vector.multi_reduction <add>, %96, %cst_44 [1] : vector<64x32xf32> to vector<64xf32>
    %102 = vector.shape_cast %101 : vector<64xf32> to vector<64x1xf32>
    %cst_45 = arith.constant 3.200000e+01 : f32
    %103 = vector.broadcast %cst_45 : f32 to vector<64x1xf32>
    %104 = arith.divf %102, %103 : vector<64x1xf32>
    %105 = vector.broadcast %104 : vector<64x1xf32> to vector<64x32xf32>
    %106 = arith.subf %96, %105 : vector<64x32xf32>
    %107 = arith.mulf %106, %106 : vector<64x32xf32>
    %cst_46 = arith.constant dense<0.000000e+00> : vector<64xf32>
    %108 = vector.multi_reduction <add>, %107, %cst_46 [1] : vector<64x32xf32> to vector<64xf32>
    %109 = vector.shape_cast %108 : vector<64xf32> to vector<64x1xf32>
    %cst_47 = arith.constant 3.200000e+01 : f32
    %110 = vector.broadcast %cst_47 : f32 to vector<64x1xf32>
    %111 = arith.divf %109, %110 : vector<64x1xf32>
    %cst_48 = arith.constant 9.99999974E-6 : f32
    %112 = vector.broadcast %cst_48 : f32 to vector<64x1xf32>
    %113 = arith.addf %111, %112 : vector<64x1xf32>
    %114 = math.rsqrt %113 : vector<64x1xf32>
    %115 = vector.broadcast %114 : vector<64x1xf32> to vector<64x32xf32>
    %116 = arith.mulf %106, %115 : vector<64x32xf32>
    %117 = vector.broadcast %98 : vector<1x32xf32> to vector<64x32xf32>
    %118 = arith.mulf %116, %117 : vector<64x32xf32>
    %119 = vector.broadcast %100 : vector<1x32xf32> to vector<64x32xf32>
    %120 = arith.addf %118, %119 : vector<64x32xf32>
    %c0_49 = arith.constant 0 : index
    %c0_50 = arith.constant 0 : index
    %c0_51 = arith.constant 0 : index
    %121 = vector.load %arg10[%c0_49, %c0_50, %c0_51] : memref<2x32x64xf32, #tpu.memory_space<vmem>>, vector<1x32x64xf32>
    %122 = vector.shape_cast %121 : vector<1x32x64xf32> to vector<32x64xf32>
    %cst_52 = arith.constant dense<0.000000e+00> : vector<64x64xf32>
    %123 = tpu.matmul %120, %122, %cst_52 {dimension_numbers = #tpu.dot_dimension_numbers<[1], [0], [0], [1], [0, 0, 1, 1], [], []>} : vector<64x32xf32>, vector<32x64xf32>, vector<64x64xf32> -> vector<64x64xf32>
    %c0_53 = arith.constant 0 : index
    %c0_54 = arith.constant 0 : index
    %c0_55 = arith.constant 0 : index
    %124 = vector.load %arg11[%c0_53, %c0_54, %c0_55] : memref<2x1x64xf32, #tpu.memory_space<vmem>>, vector<1x1x64xf32>
    %125 = vector.shape_cast %124 : vector<1x1x64xf32> to vector<1x64xf32>
    %126 = vector.broadcast %125 : vector<1x64xf32> to vector<64x64xf32>
    %127 = arith.addf %123, %126 : vector<64x64xf32>
    %cst_56 = arith.constant 0.000000e+00 : f32
    %128 = vector.broadcast %cst_56 : f32 to vector<64x64xf32>
    %129 = arith.maximumf %127, %128 : vector<64x64xf32>
    %c0_57 = arith.constant 0 : index
    %c0_58 = arith.constant 0 : index
    %c0_59 = arith.constant 0 : index
    %130 = vector.load %arg12[%c0_57, %c0_58, %c0_59] : memref<2x64x32xf32, #tpu.memory_space<vmem>>, vector<1x64x32xf32>
    %131 = vector.shape_cast %130 : vector<1x64x32xf32> to vector<64x32xf32>
    %cst_60 = arith.constant dense<0.000000e+00> : vector<64x32xf32>
    %132 = tpu.matmul %129, %131, %cst_60 {dimension_numbers = #tpu.dot_dimension_numbers<[1], [0], [0], [1], [0, 0, 1, 1], [], []>} : vector<64x64xf32>, vector<64x32xf32>, vector<64x32xf32> -> vector<64x32xf32>
    %c0_61 = arith.constant 0 : index
    %c0_62 = arith.constant 0 : index
    %c0_63 = arith.constant 0 : index
    %133 = vector.load %arg13[%c0_61, %c0_62, %c0_63] : memref<2x1x32xf32, #tpu.memory_space<vmem>>, vector<1x1x32xf32>
    %134 = vector.shape_cast %133 : vector<1x1x32xf32> to vector<1x32xf32>
    %135 = vector.broadcast %134 : vector<1x32xf32> to vector<64x32xf32>
    %136 = arith.addf %132, %135 : vector<64x32xf32>
    %137 = arith.addf %120, %136 : vector<64x32xf32>
    %c0_64 = arith.constant 0 : index
    %c0_65 = arith.constant 0 : index
    %c0_66 = arith.constant 0 : index
    %138 = vector.load %arg14[%c0_64, %c0_65, %c0_66] : memref<2x1x32xf32, #tpu.memory_space<vmem>>, vector<1x1x32xf32>
    %139 = vector.shape_cast %138 : vector<1x1x32xf32> to vector<1x32xf32>
    %c0_67 = arith.constant 0 : index
    %c0_68 = arith.constant 0 : index
    %c0_69 = arith.constant 0 : index
    %140 = vector.load %arg15[%c0_67, %c0_68, %c0_69] : memref<2x1x32xf32, #tpu.memory_space<vmem>>, vector<1x1x32xf32>
    %141 = vector.shape_cast %140 : vector<1x1x32xf32> to vector<1x32xf32>
    %cst_70 = arith.constant dense<0.000000e+00> : vector<64xf32>
    %142 = vector.multi_reduction <add>, %137, %cst_70 [1] : vector<64x32xf32> to vector<64xf32>
    %143 = vector.shape_cast %142 : vector<64xf32> to vector<64x1xf32>
    %cst_71 = arith.constant 3.200000e+01 : f32
    %144 = vector.broadcast %cst_71 : f32 to vector<64x1xf32>
    %145 = arith.divf %143, %144 : vector<64x1xf32>
    %146 = vector.broadcast %145 : vector<64x1xf32> to vector<64x32xf32>
    %147 = arith.subf %137, %146 : vector<64x32xf32>
    %148 = arith.mulf %147, %147 : vector<64x32xf32>
    %cst_72 = arith.constant dense<0.000000e+00> : vector<64xf32>
    %149 = vector.multi_reduction <add>, %148, %cst_72 [1] : vector<64x32xf32> to vector<64xf32>
    %150 = vector.shape_cast %149 : vector<64xf32> to vector<64x1xf32>
    %cst_73 = arith.constant 3.200000e+01 : f32
    %151 = vector.broadcast %cst_73 : f32 to vector<64x1xf32>
    %152 = arith.divf %150, %151 : vector<64x1xf32>
    %cst_74 = arith.constant 9.99999974E-6 : f32
    %153 = vector.broadcast %cst_74 : f32 to vector<64x1xf32>
    %154 = arith.addf %152, %153 : vector<64x1xf32>
    %155 = math.rsqrt %154 : vector<64x1xf32>
    %156 = vector.broadcast %155 : vector<64x1xf32> to vector<64x32xf32>
    %157 = arith.mulf %147, %156 : vector<64x32xf32>
    %158 = vector.broadcast %139 : vector<1x32xf32> to vector<64x32xf32>
    %159 = arith.mulf %157, %158 : vector<64x32xf32>
    %160 = vector.broadcast %141 : vector<1x32xf32> to vector<64x32xf32>
    %161 = arith.addf %159, %160 : vector<64x32xf32>
    %162 = arith.addf %161, %1 : vector<64x32xf32>
    %c1 = arith.constant 1 : index
    %c0_75 = arith.constant 0 : index
    %c0_76 = arith.constant 0 : index
    %163 = vector.load %arg4[%c1, %c0_75, %c0_76] : memref<2x32x96xf32, #tpu.memory_space<vmem>>, vector<1x32x96xf32>
    %164 = vector.shape_cast %163 : vector<1x32x96xf32> to vector<32x96xf32>
    %cst_77 = arith.constant dense<0.000000e+00> : vector<64x96xf32>
    %165 = tpu.matmul %162, %164, %cst_77 {dimension_numbers = #tpu.dot_dimension_numbers<[1], [0], [0], [1], [0, 0, 1, 1], [], []>} : vector<64x32xf32>, vector<32x96xf32>, vector<64x96xf32> -> vector<64x96xf32>
    %c1_78 = arith.constant 1 : index
    %c0_79 = arith.constant 0 : index
    %c0_80 = arith.constant 0 : index
    %166 = vector.load %arg5[%c1_78, %c0_79, %c0_80] : memref<2x1x96xf32, #tpu.memory_space<vmem>>, vector<1x1x96xf32>
    %167 = vector.shape_cast %166 : vector<1x1x96xf32> to vector<1x96xf32>
    %168 = vector.broadcast %167 : vector<1x96xf32> to vector<64x96xf32>
    %169 = arith.addf %165, %168 : vector<64x96xf32>
    %c1_81 = arith.constant 1 : index
    %c0_82 = arith.constant 0 : index
    %c0_83 = arith.constant 0 : index
    %c0_84 = arith.constant 0 : index
    %170 = vector.load %arg6[%c1_81, %c0_82, %c0_83, %c0_84] : memref<2x4x8x32xf32, #tpu.memory_space<vmem>>, vector<1x4x8x32xf32>
    %171 = vector.shape_cast %170 : vector<1x4x8x32xf32> to vector<4x8x32xf32>
    %172 = vector.extract_strided_slice %169 {offsets = [0, 0], sizes = [64, 8], strides = [1, 1]} : vector<64x96xf32> to vector<64x8xf32>
    %173 = vector.extract_strided_slice %169 {offsets = [0, 32], sizes = [64, 8], strides = [1, 1]} : vector<64x96xf32> to vector<64x8xf32>
    %174 = vector.extract_strided_slice %169 {offsets = [0, 64], sizes = [64, 8], strides = [1, 1]} : vector<64x96xf32> to vector<64x8xf32>
    %cst_85 = arith.constant dense<0.000000e+00> : vector<64x64xf32>
    %175 = tpu.matmul %172, %173, %cst_85 {dimension_numbers = #tpu.dot_dimension_numbers<[1], [1], [0], [0], [0, 0, 1, 0], [], []>} : vector<64x8xf32>, vector<64x8xf32>, vector<64x64xf32> -> vector<64x64xf32>
    %176 = arith.addf %175, %2 : vector<64x64xf32>
    %cst_86 = arith.constant dense<0xFF800000> : vector<64xf32>
    %177 = vector.multi_reduction <maximumf>, %176, %cst_86 [1] : vector<64x64xf32> to vector<64xf32>
    %178 = vector.shape_cast %177 : vector<64xf32> to vector<64x1xf32>
    %179 = vector.broadcast %178 : vector<64x1xf32> to vector<64x64xf32>
    %180 = arith.subf %176, %179 : vector<64x64xf32>
    %181 = math.exp %180 : vector<64x64xf32>
    %cst_87 = arith.constant dense<0.000000e+00> : vector<64xf32>
    %182 = vector.multi_reduction <add>, %181, %cst_87 [1] : vector<64x64xf32> to vector<64xf32>
    %183 = vector.shape_cast %182 : vector<64xf32> to vector<64x1xf32>
    %184 = tpu.reciprocal %183 {approx = true} : vector<64x1xf32> -> vector<64x1xf32>
    %185 = vector.broadcast %184 : vector<64x1xf32> to vector<64x64xf32>
    %186 = arith.mulf %181, %185 : vector<64x64xf32>
    %cst_88 = arith.constant dense<0.000000e+00> : vector<64x8xf32>
    %187 = tpu.matmul %186, %174, %cst_88 {dimension_numbers = #tpu.dot_dimension_numbers<[1], [0], [0], [1], [0, 0, 1, 1], [], []>} : vector<64x64xf32>, vector<64x8xf32>, vector<64x8xf32> -> vector<64x8xf32>
    %188 = vector.extract_strided_slice %171 {offsets = [0, 0, 0], sizes = [1, 8, 32], strides = [1, 1, 1]} : vector<4x8x32xf32> to vector<1x8x32xf32>
    %189 = vector.shape_cast %188 : vector<1x8x32xf32> to vector<8x32xf32>
    %cst_89 = arith.constant dense<0.000000e+00> : vector<64x32xf32>
    %190 = tpu.matmul %187, %189, %cst_89 {dimension_numbers = #tpu.dot_dimension_numbers<[1], [0], [0], [1], [0, 0, 1, 1], [], []>} : vector<64x8xf32>, vector<8x32xf32>, vector<64x32xf32> -> vector<64x32xf32>
    %191 = vector.extract_strided_slice %169 {offsets = [0, 8], sizes = [64, 8], strides = [1, 1]} : vector<64x96xf32> to vector<64x8xf32>
    %192 = vector.extract_strided_slice %169 {offsets = [0, 40], sizes = [64, 8], strides = [1, 1]} : vector<64x96xf32> to vector<64x8xf32>
    %193 = vector.extract_strided_slice %169 {offsets = [0, 72], sizes = [64, 8], strides = [1, 1]} : vector<64x96xf32> to vector<64x8xf32>
    %cst_90 = arith.constant dense<0.000000e+00> : vector<64x64xf32>
    %194 = tpu.matmul %191, %192, %cst_90 {dimension_numbers = #tpu.dot_dimension_numbers<[1], [1], [0], [0], [0, 0, 1, 0], [], []>} : vector<64x8xf32>, vector<64x8xf32>, vector<64x64xf32> -> vector<64x64xf32>
    %195 = arith.addf %194, %2 : vector<64x64xf32>
    %cst_91 = arith.constant dense<0xFF800000> : vector<64xf32>
    %196 = vector.multi_reduction <maximumf>, %195, %cst_91 [1] : vector<64x64xf32> to vector<64xf32>
    %197 = vector.shape_cast %196 : vector<64xf32> to vector<64x1xf32>
    %198 = vector.broadcast %197 : vector<64x1xf32> to vector<64x64xf32>
    %199 = arith.subf %195, %198 : vector<64x64xf32>
    %200 = math.exp %199 : vector<64x64xf32>
    %cst_92 = arith.constant dense<0.000000e+00> : vector<64xf32>
    %201 = vector.multi_reduction <add>, %200, %cst_92 [1] : vector<64x64xf32> to vector<64xf32>
    %202 = vector.shape_cast %201 : vector<64xf32> to vector<64x1xf32>
    %203 = tpu.reciprocal %202 {approx = true} : vector<64x1xf32> -> vector<64x1xf32>
    %204 = vector.broadcast %203 : vector<64x1xf32> to vector<64x64xf32>
    %205 = arith.mulf %200, %204 : vector<64x64xf32>
    %cst_93 = arith.constant dense<0.000000e+00> : vector<64x8xf32>
    %206 = tpu.matmul %205, %193, %cst_93 {dimension_numbers = #tpu.dot_dimension_numbers<[1], [0], [0], [1], [0, 0, 1, 1], [], []>} : vector<64x64xf32>, vector<64x8xf32>, vector<64x8xf32> -> vector<64x8xf32>
    %207 = vector.extract_strided_slice %171 {offsets = [1, 0, 0], sizes = [1, 8, 32], strides = [1, 1, 1]} : vector<4x8x32xf32> to vector<1x8x32xf32>
    %208 = vector.shape_cast %207 : vector<1x8x32xf32> to vector<8x32xf32>
    %cst_94 = arith.constant dense<0.000000e+00> : vector<64x32xf32>
    %209 = tpu.matmul %206, %208, %cst_94 {dimension_numbers = #tpu.dot_dimension_numbers<[1], [0], [0], [1], [0, 0, 1, 1], [], []>} : vector<64x8xf32>, vector<8x32xf32>, vector<64x32xf32> -> vector<64x32xf32>
    %210 = arith.addf %190, %209 : vector<64x32xf32>
    %211 = vector.extract_strided_slice %169 {offsets = [0, 16], sizes = [64, 8], strides = [1, 1]} : vector<64x96xf32> to vector<64x8xf32>
    %212 = vector.extract_strided_slice %169 {offsets = [0, 48], sizes = [64, 8], strides = [1, 1]} : vector<64x96xf32> to vector<64x8xf32>
    %213 = vector.extract_strided_slice %169 {offsets = [0, 80], sizes = [64, 8], strides = [1, 1]} : vector<64x96xf32> to vector<64x8xf32>
    %cst_95 = arith.constant dense<0.000000e+00> : vector<64x64xf32>
    %214 = tpu.matmul %211, %212, %cst_95 {dimension_numbers = #tpu.dot_dimension_numbers<[1], [1], [0], [0], [0, 0, 1, 0], [], []>} : vector<64x8xf32>, vector<64x8xf32>, vector<64x64xf32> -> vector<64x64xf32>
    %215 = arith.addf %214, %2 : vector<64x64xf32>
    %cst_96 = arith.constant dense<0xFF800000> : vector<64xf32>
    %216 = vector.multi_reduction <maximumf>, %215, %cst_96 [1] : vector<64x64xf32> to vector<64xf32>
    %217 = vector.shape_cast %216 : vector<64xf32> to vector<64x1xf32>
    %218 = vector.broadcast %217 : vector<64x1xf32> to vector<64x64xf32>
    %219 = arith.subf %215, %218 : vector<64x64xf32>
    %220 = math.exp %219 : vector<64x64xf32>
    %cst_97 = arith.constant dense<0.000000e+00> : vector<64xf32>
    %221 = vector.multi_reduction <add>, %220, %cst_97 [1] : vector<64x64xf32> to vector<64xf32>
    %222 = vector.shape_cast %221 : vector<64xf32> to vector<64x1xf32>
    %223 = tpu.reciprocal %222 {approx = true} : vector<64x1xf32> -> vector<64x1xf32>
    %224 = vector.broadcast %223 : vector<64x1xf32> to vector<64x64xf32>
    %225 = arith.mulf %220, %224 : vector<64x64xf32>
    %cst_98 = arith.constant dense<0.000000e+00> : vector<64x8xf32>
    %226 = tpu.matmul %225, %213, %cst_98 {dimension_numbers = #tpu.dot_dimension_numbers<[1], [0], [0], [1], [0, 0, 1, 1], [], []>} : vector<64x64xf32>, vector<64x8xf32>, vector<64x8xf32> -> vector<64x8xf32>
    %227 = vector.extract_strided_slice %171 {offsets = [2, 0, 0], sizes = [1, 8, 32], strides = [1, 1, 1]} : vector<4x8x32xf32> to vector<1x8x32xf32>
    %228 = vector.shape_cast %227 : vector<1x8x32xf32> to vector<8x32xf32>
    %cst_99 = arith.constant dense<0.000000e+00> : vector<64x32xf32>
    %229 = tpu.matmul %226, %228, %cst_99 {dimension_numbers = #tpu.dot_dimension_numbers<[1], [0], [0], [1], [0, 0, 1, 1], [], []>} : vector<64x8xf32>, vector<8x32xf32>, vector<64x32xf32> -> vector<64x32xf32>
    %230 = arith.addf %210, %229 : vector<64x32xf32>
    %231 = vector.extract_strided_slice %169 {offsets = [0, 24], sizes = [64, 8], strides = [1, 1]} : vector<64x96xf32> to vector<64x8xf32>
    %232 = vector.extract_strided_slice %169 {offsets = [0, 56], sizes = [64, 8], strides = [1, 1]} : vector<64x96xf32> to vector<64x8xf32>
    %233 = vector.extract_strided_slice %169 {offsets = [0, 88], sizes = [64, 8], strides = [1, 1]} : vector<64x96xf32> to vector<64x8xf32>
    %cst_100 = arith.constant dense<0.000000e+00> : vector<64x64xf32>
    %234 = tpu.matmul %231, %232, %cst_100 {dimension_numbers = #tpu.dot_dimension_numbers<[1], [1], [0], [0], [0, 0, 1, 0], [], []>} : vector<64x8xf32>, vector<64x8xf32>, vector<64x64xf32> -> vector<64x64xf32>
    %235 = arith.addf %234, %2 : vector<64x64xf32>
    %cst_101 = arith.constant dense<0xFF800000> : vector<64xf32>
    %236 = vector.multi_reduction <maximumf>, %235, %cst_101 [1] : vector<64x64xf32> to vector<64xf32>
    %237 = vector.shape_cast %236 : vector<64xf32> to vector<64x1xf32>
    %238 = vector.broadcast %237 : vector<64x1xf32> to vector<64x64xf32>
    %239 = arith.subf %235, %238 : vector<64x64xf32>
    %240 = math.exp %239 : vector<64x64xf32>
    %cst_102 = arith.constant dense<0.000000e+00> : vector<64xf32>
    %241 = vector.multi_reduction <add>, %240, %cst_102 [1] : vector<64x64xf32> to vector<64xf32>
    %242 = vector.shape_cast %241 : vector<64xf32> to vector<64x1xf32>
    %243 = tpu.reciprocal %242 {approx = true} : vector<64x1xf32> -> vector<64x1xf32>
    %244 = vector.broadcast %243 : vector<64x1xf32> to vector<64x64xf32>
    %245 = arith.mulf %240, %244 : vector<64x64xf32>
    %cst_103 = arith.constant dense<0.000000e+00> : vector<64x8xf32>
    %246 = tpu.matmul %245, %233, %cst_103 {dimension_numbers = #tpu.dot_dimension_numbers<[1], [0], [0], [1], [0, 0, 1, 1], [], []>} : vector<64x64xf32>, vector<64x8xf32>, vector<64x8xf32> -> vector<64x8xf32>
    %247 = vector.extract_strided_slice %171 {offsets = [3, 0, 0], sizes = [1, 8, 32], strides = [1, 1, 1]} : vector<4x8x32xf32> to vector<1x8x32xf32>
    %248 = vector.shape_cast %247 : vector<1x8x32xf32> to vector<8x32xf32>
    %cst_104 = arith.constant dense<0.000000e+00> : vector<64x32xf32>
    %249 = tpu.matmul %246, %248, %cst_104 {dimension_numbers = #tpu.dot_dimension_numbers<[1], [0], [0], [1], [0, 0, 1, 1], [], []>} : vector<64x8xf32>, vector<8x32xf32>, vector<64x32xf32> -> vector<64x32xf32>
    %250 = arith.addf %230, %249 : vector<64x32xf32>
    %c1_105 = arith.constant 1 : index
    %c0_106 = arith.constant 0 : index
    %c0_107 = arith.constant 0 : index
    %251 = vector.load %arg7[%c1_105, %c0_106, %c0_107] : memref<2x1x32xf32, #tpu.memory_space<vmem>>, vector<1x1x32xf32>
    %252 = vector.shape_cast %251 : vector<1x1x32xf32> to vector<1x32xf32>
    %253 = vector.broadcast %252 : vector<1x32xf32> to vector<64x32xf32>
    %254 = arith.addf %250, %253 : vector<64x32xf32>
    %255 = arith.addf %162, %254 : vector<64x32xf32>
    %c1_108 = arith.constant 1 : index
    %c0_109 = arith.constant 0 : index
    %c0_110 = arith.constant 0 : index
    %256 = vector.load %arg8[%c1_108, %c0_109, %c0_110] : memref<2x1x32xf32, #tpu.memory_space<vmem>>, vector<1x1x32xf32>
    %257 = vector.shape_cast %256 : vector<1x1x32xf32> to vector<1x32xf32>
    %c1_111 = arith.constant 1 : index
    %c0_112 = arith.constant 0 : index
    %c0_113 = arith.constant 0 : index
    %258 = vector.load %arg9[%c1_111, %c0_112, %c0_113] : memref<2x1x32xf32, #tpu.memory_space<vmem>>, vector<1x1x32xf32>
    %259 = vector.shape_cast %258 : vector<1x1x32xf32> to vector<1x32xf32>
    %cst_114 = arith.constant dense<0.000000e+00> : vector<64xf32>
    %260 = vector.multi_reduction <add>, %255, %cst_114 [1] : vector<64x32xf32> to vector<64xf32>
    %261 = vector.shape_cast %260 : vector<64xf32> to vector<64x1xf32>
    %cst_115 = arith.constant 3.200000e+01 : f32
    %262 = vector.broadcast %cst_115 : f32 to vector<64x1xf32>
    %263 = arith.divf %261, %262 : vector<64x1xf32>
    %264 = vector.broadcast %263 : vector<64x1xf32> to vector<64x32xf32>
    %265 = arith.subf %255, %264 : vector<64x32xf32>
    %266 = arith.mulf %265, %265 : vector<64x32xf32>
    %cst_116 = arith.constant dense<0.000000e+00> : vector<64xf32>
    %267 = vector.multi_reduction <add>, %266, %cst_116 [1] : vector<64x32xf32> to vector<64xf32>
    %268 = vector.shape_cast %267 : vector<64xf32> to vector<64x1xf32>
    %cst_117 = arith.constant 3.200000e+01 : f32
    %269 = vector.broadcast %cst_117 : f32 to vector<64x1xf32>
    %270 = arith.divf %268, %269 : vector<64x1xf32>
    %cst_118 = arith.constant 9.99999974E-6 : f32
    %271 = vector.broadcast %cst_118 : f32 to vector<64x1xf32>
    %272 = arith.addf %270, %271 : vector<64x1xf32>
    %273 = math.rsqrt %272 : vector<64x1xf32>
    %274 = vector.broadcast %273 : vector<64x1xf32> to vector<64x32xf32>
    %275 = arith.mulf %265, %274 : vector<64x32xf32>
    %276 = vector.broadcast %257 : vector<1x32xf32> to vector<64x32xf32>
    %277 = arith.mulf %275, %276 : vector<64x32xf32>
    %278 = vector.broadcast %259 : vector<1x32xf32> to vector<64x32xf32>
    %279 = arith.addf %277, %278 : vector<64x32xf32>
    %c1_119 = arith.constant 1 : index
    %c0_120 = arith.constant 0 : index
    %c0_121 = arith.constant 0 : index
    %280 = vector.load %arg10[%c1_119, %c0_120, %c0_121] : memref<2x32x64xf32, #tpu.memory_space<vmem>>, vector<1x32x64xf32>
    %281 = vector.shape_cast %280 : vector<1x32x64xf32> to vector<32x64xf32>
    %cst_122 = arith.constant dense<0.000000e+00> : vector<64x64xf32>
    %282 = tpu.matmul %279, %281, %cst_122 {dimension_numbers = #tpu.dot_dimension_numbers<[1], [0], [0], [1], [0, 0, 1, 1], [], []>} : vector<64x32xf32>, vector<32x64xf32>, vector<64x64xf32> -> vector<64x64xf32>
    %c1_123 = arith.constant 1 : index
    %c0_124 = arith.constant 0 : index
    %c0_125 = arith.constant 0 : index
    %283 = vector.load %arg11[%c1_123, %c0_124, %c0_125] : memref<2x1x64xf32, #tpu.memory_space<vmem>>, vector<1x1x64xf32>
    %284 = vector.shape_cast %283 : vector<1x1x64xf32> to vector<1x64xf32>
    %285 = vector.broadcast %284 : vector<1x64xf32> to vector<64x64xf32>
    %286 = arith.addf %282, %285 : vector<64x64xf32>
    %cst_126 = arith.constant 0.000000e+00 : f32
    %287 = vector.broadcast %cst_126 : f32 to vector<64x64xf32>
    %288 = arith.maximumf %286, %287 : vector<64x64xf32>
    %c1_127 = arith.constant 1 : index
    %c0_128 = arith.constant 0 : index
    %c0_129 = arith.constant 0 : index
    %289 = vector.load %arg12[%c1_127, %c0_128, %c0_129] : memref<2x64x32xf32, #tpu.memory_space<vmem>>, vector<1x64x32xf32>
    %290 = vector.shape_cast %289 : vector<1x64x32xf32> to vector<64x32xf32>
    %cst_130 = arith.constant dense<0.000000e+00> : vector<64x32xf32>
    %291 = tpu.matmul %288, %290, %cst_130 {dimension_numbers = #tpu.dot_dimension_numbers<[1], [0], [0], [1], [0, 0, 1, 1], [], []>} : vector<64x64xf32>, vector<64x32xf32>, vector<64x32xf32> -> vector<64x32xf32>
    %c1_131 = arith.constant 1 : index
    %c0_132 = arith.constant 0 : index
    %c0_133 = arith.constant 0 : index
    %292 = vector.load %arg13[%c1_131, %c0_132, %c0_133] : memref<2x1x32xf32, #tpu.memory_space<vmem>>, vector<1x1x32xf32>
    %293 = vector.shape_cast %292 : vector<1x1x32xf32> to vector<1x32xf32>
    %294 = vector.broadcast %293 : vector<1x32xf32> to vector<64x32xf32>
    %295 = arith.addf %291, %294 : vector<64x32xf32>
    %296 = arith.addf %279, %295 : vector<64x32xf32>
    %c1_134 = arith.constant 1 : index
    %c0_135 = arith.constant 0 : index
    %c0_136 = arith.constant 0 : index
    %297 = vector.load %arg14[%c1_134, %c0_135, %c0_136] : memref<2x1x32xf32, #tpu.memory_space<vmem>>, vector<1x1x32xf32>
    %298 = vector.shape_cast %297 : vector<1x1x32xf32> to vector<1x32xf32>
    %c1_137 = arith.constant 1 : index
    %c0_138 = arith.constant 0 : index
    %c0_139 = arith.constant 0 : index
    %299 = vector.load %arg15[%c1_137, %c0_138, %c0_139] : memref<2x1x32xf32, #tpu.memory_space<vmem>>, vector<1x1x32xf32>
    %300 = vector.shape_cast %299 : vector<1x1x32xf32> to vector<1x32xf32>
    %cst_140 = arith.constant dense<0.000000e+00> : vector<64xf32>
    %301 = vector.multi_reduction <add>, %296, %cst_140 [1] : vector<64x32xf32> to vector<64xf32>
    %302 = vector.shape_cast %301 : vector<64xf32> to vector<64x1xf32>
    %cst_141 = arith.constant 3.200000e+01 : f32
    %303 = vector.broadcast %cst_141 : f32 to vector<64x1xf32>
    %304 = arith.divf %302, %303 : vector<64x1xf32>
    %305 = vector.broadcast %304 : vector<64x1xf32> to vector<64x32xf32>
    %306 = arith.subf %296, %305 : vector<64x32xf32>
    %307 = arith.mulf %306, %306 : vector<64x32xf32>
    %cst_142 = arith.constant dense<0.000000e+00> : vector<64xf32>
    %308 = vector.multi_reduction <add>, %307, %cst_142 [1] : vector<64x32xf32> to vector<64xf32>
    %309 = vector.shape_cast %308 : vector<64xf32> to vector<64x1xf32>
    %cst_143 = arith.constant 3.200000e+01 : f32
    %310 = vector.broadcast %cst_143 : f32 to vector<64x1xf32>
    %311 = arith.divf %309, %310 : vector<64x1xf32>
    %cst_144 = arith.constant 9.99999974E-6 : f32
    %312 = vector.broadcast %cst_144 : f32 to vector<64x1xf32>
    %313 = arith.addf %311, %312 : vector<64x1xf32>
    %314 = math.rsqrt %313 : vector<64x1xf32>
    %315 = vector.broadcast %314 : vector<64x1xf32> to vector<64x32xf32>
    %316 = arith.mulf %306, %315 : vector<64x32xf32>
    %317 = vector.broadcast %298 : vector<1x32xf32> to vector<64x32xf32>
    %318 = arith.mulf %316, %317 : vector<64x32xf32>
    %319 = vector.broadcast %300 : vector<1x32xf32> to vector<64x32xf32>
    %320 = arith.addf %318, %319 : vector<64x32xf32>
    %c0_145 = arith.constant 0 : index
    %c0_146 = arith.constant 0 : index
    %321 = vector.load %arg16[%c0_145, %c0_146] : memref<32x32xf32, #tpu.memory_space<vmem>>, vector<32x32xf32>
    %cst_147 = arith.constant dense<0.000000e+00> : vector<64x32xf32>
    %322 = tpu.matmul %320, %321, %cst_147 {dimension_numbers = #tpu.dot_dimension_numbers<[1], [0], [0], [1], [0, 0, 1, 1], [], []>} : vector<64x32xf32>, vector<32x32xf32>, vector<64x32xf32> -> vector<64x32xf32>
    %c0_148 = arith.constant 0 : index
    %c0_149 = arith.constant 0 : index
    %323 = vector.load %arg17[%c0_148, %c0_149] : memref<1x32xf32, #tpu.memory_space<vmem>>, vector<1x32xf32>
    %324 = vector.broadcast %323 : vector<1x32xf32> to vector<64x32xf32>
    %325 = arith.addf %322, %324 : vector<64x32xf32>
    %c0_150 = arith.constant 0 : index
    %c0_151 = arith.constant 0 : index
    %326 = vector.load %arg18[%c0_150, %c0_151] : memref<32x4xf32, #tpu.memory_space<vmem>>, vector<32x4xf32>
    %cst_152 = arith.constant dense<0.000000e+00> : vector<64x4xf32>
    %327 = tpu.matmul %325, %326, %cst_152 {dimension_numbers = #tpu.dot_dimension_numbers<[1], [0], [0], [1], [0, 0, 1, 1], [], []>} : vector<64x32xf32>, vector<32x4xf32>, vector<64x4xf32> -> vector<64x4xf32>
    %c0_153 = arith.constant 0 : index
    %c0_154 = arith.constant 0 : index
    %328 = vector.load %arg19[%c0_153, %c0_154] : memref<1x4xf32, #tpu.memory_space<vmem>>, vector<1x4xf32>
    %329 = vector.broadcast %328 : vector<1x4xf32> to vector<64x4xf32>
    %330 = arith.addf %327, %329 : vector<64x4xf32>
    %cst_155 = arith.constant dense<0xFF800000> : vector<64xf32>
    %331 = vector.multi_reduction <maximumf>, %330, %cst_155 [1] : vector<64x4xf32> to vector<64xf32>
    %332 = vector.shape_cast %331 : vector<64xf32> to vector<64x1xf32>
    %333 = vector.broadcast %332 : vector<64x1xf32> to vector<64x4xf32>
    %334 = arith.subf %330, %333 : vector<64x4xf32>
    %335 = math.exp %334 : vector<64x4xf32>
    %cst_156 = arith.constant dense<0.000000e+00> : vector<64xf32>
    %336 = vector.multi_reduction <add>, %335, %cst_156 [1] : vector<64x4xf32> to vector<64xf32>
    %337 = vector.shape_cast %336 : vector<64xf32> to vector<64x1xf32>
    %338 = tpu.reciprocal %337 {approx = true} : vector<64x1xf32> -> vector<64x1xf32>
    %339 = vector.broadcast %338 : vector<64x1xf32> to vector<64x4xf32>
    %340 = arith.mulf %335, %339 : vector<64x4xf32>
    %c0_157 = arith.constant 0 : index
    %c0_158 = arith.constant 0 : index
    %341 = vector.load %arg20[%c0_157, %c0_158] : memref<4x32xf32, #tpu.memory_space<vmem>>, vector<4x32xf32>
    %cst_159 = arith.constant dense<0.000000e+00> : vector<64x32xf32>
    %342 = tpu.matmul %340, %341, %cst_159 {dimension_numbers = #tpu.dot_dimension_numbers<[1], [0], [0], [1], [0, 0, 1, 1], [], []>} : vector<64x4xf32>, vector<4x32xf32>, vector<64x32xf32> -> vector<64x32xf32>
    %343 = arith.mulf %325, %342 : vector<64x32xf32>
    %c0_160 = arith.constant 0 : index
    %c0_161 = arith.constant 0 : index
    %344 = vector.load %arg21[%c0_160, %c0_161] : memref<64x32xf32, #tpu.memory_space<vmem>>, vector<64x32xf32>
    tpu.vector_store %arg21[%c0_160, %c0_161], %343 {strides = array<i32>} : memref<64x32xf32, #tpu.memory_space<vmem>>, vector<64x32xf32>,
    return
  }
  func.func @transform_0(%arg0: i32) -> (i32, i32) {
    %c0_i32 = arith.constant 0 : i32
    %c0_i32_0 = arith.constant 0 : i32
    %c0_i32_1 = arith.constant 0 : i32
    return %c0_i32, %c0_i32_0 : i32, i32
  }
  func.func @transform_1(%arg0: i32) -> (i32, i32) {
    %c0_i32 = arith.constant 0 : i32
    %c0_i32_0 = arith.constant 0 : i32
    %c0_i32_1 = arith.constant 0 : i32
    return %c0_i32, %c0_i32_0 : i32, i32
  }
  func.func @transform_2(%arg0: i32) -> (i32, i32) {
    %c0_i32 = arith.constant 0 : i32
    %c0_i32_0 = arith.constant 0 : i32
    %c0_i32_1 = arith.constant 0 : i32
    return %c0_i32, %c0_i32_0 : i32, i32
  }
  func.func @transform_3(%arg0: i32) -> (i32, i32, i32) {
    %c0_i32 = arith.constant 0 : i32
    %c0_i32_0 = arith.constant 0 : i32
    %c0_i32_1 = arith.constant 0 : i32
    %c0_i32_2 = arith.constant 0 : i32
    return %c0_i32, %c0_i32_0, %c0_i32_1 : i32, i32, i32
  }
  func.func @transform_4(%arg0: i32) -> (i32, i32, i32) {
    %c0_i32 = arith.constant 0 : i32
    %c0_i32_0 = arith.constant 0 : i32
    %c0_i32_1 = arith.constant 0 : i32
    %c0_i32_2 = arith.constant 0 : i32
    return %c0_i32, %c0_i32_0, %c0_i32_1 : i32, i32, i32
  }
  func.func @transform_5(%arg0: i32) -> (i32, i32, i32, i32) {
    %c0_i32 = arith.constant 0 : i32
    %c0_i32_0 = arith.constant 0 : i32
    %c0_i32_1 = arith.constant 0 : i32
    %c0_i32_2 = arith.constant 0 : i32
    %c0_i32_3 = arith.constant 0 : i32
    return %c0_i32, %c0_i32_0, %c0_i32_1, %c0_i32_2 : i32, i32, i32, i32
  }
  func.func @transform_6(%arg0: i32) -> (i32, i32, i32) {
    %c0_i32 = arith.constant 0 : i32
    %c0_i32_0 = arith.constant 0 : i32
    %c0_i32_1 = arith.constant 0 : i32
    %c0_i32_2 = arith.constant 0 : i32
    return %c0_i32, %c0_i32_0, %c0_i32_1 : i32, i32, i32
  }
  func.func @transform_7(%arg0: i32) -> (i32, i32, i32) {
    %c0_i32 = arith.constant 0 : i32
    %c0_i32_0 = arith.constant 0 : i32
    %c0_i32_1 = arith.constant 0 : i32
    %c0_i32_2 = arith.constant 0 : i32
    return %c0_i32, %c0_i32_0, %c0_i32_1 : i32, i32, i32
  }
  func.func @transform_8(%arg0: i32) -> (i32, i32, i32) {
    %c0_i32 = arith.constant 0 : i32
    %c0_i32_0 = arith.constant 0 : i32
    %c0_i32_1 = arith.constant 0 : i32
    %c0_i32_2 = arith.constant 0 : i32
    return %c0_i32, %c0_i32_0, %c0_i32_1 : i32, i32, i32
  }
  func.func @transform_9(%arg0: i32) -> (i32, i32, i32) {
    %c0_i32 = arith.constant 0 : i32
    %c0_i32_0 = arith.constant 0 : i32
    %c0_i32_1 = arith.constant 0 : i32
    %c0_i32_2 = arith.constant 0 : i32
    return %c0_i32, %c0_i32_0, %c0_i32_1 : i32, i32, i32
  }
  func.func @transform_10(%arg0: i32) -> (i32, i32, i32) {
    %c0_i32 = arith.constant 0 : i32
    %c0_i32_0 = arith.constant 0 : i32
    %c0_i32_1 = arith.constant 0 : i32
    %c0_i32_2 = arith.constant 0 : i32
    return %c0_i32, %c0_i32_0, %c0_i32_1 : i32, i32, i32
  }
  func.func @transform_11(%arg0: i32) -> (i32, i32, i32) {
    %c0_i32 = arith.constant 0 : i32
    %c0_i32_0 = arith.constant 0 : i32
    %c0_i32_1 = arith.constant 0 : i32
    %c0_i32_2 = arith.constant 0 : i32
    return %c0_i32, %c0_i32_0, %c0_i32_1 : i32, i32, i32
  }
  func.func @transform_12(%arg0: i32) -> (i32, i32, i32) {
    %c0_i32 = arith.constant 0 : i32
    %c0_i32_0 = arith.constant 0 : i32
    %c0_i32_1 = arith.constant 0 : i32
    %c0_i32_2 = arith.constant 0 : i32
    return %c0_i32, %c0_i32_0, %c0_i32_1 : i32, i32, i32
  }
  func.func @transform_13(%arg0: i32) -> (i32, i32, i32) {
    %c0_i32 = arith.constant 0 : i32
    %c0_i32_0 = arith.constant 0 : i32
    %c0_i32_1 = arith.constant 0 : i32
    %c0_i32_2 = arith.constant 0 : i32
    return %c0_i32, %c0_i32_0, %c0_i32_1 : i32, i32, i32
  }
  func.func @transform_14(%arg0: i32) -> (i32, i32, i32) {
    %c0_i32 = arith.constant 0 : i32
    %c0_i32_0 = arith.constant 0 : i32
    %c0_i32_1 = arith.constant 0 : i32
    %c0_i32_2 = arith.constant 0 : i32
    return %c0_i32, %c0_i32_0, %c0_i32_1 : i32, i32, i32
  }
  func.func @transform_15(%arg0: i32) -> (i32, i32) {
    %c0_i32 = arith.constant 0 : i32
    %c0_i32_0 = arith.constant 0 : i32
    %c0_i32_1 = arith.constant 0 : i32
    return %c0_i32, %c0_i32_0 : i32, i32
  }
  func.func @transform_16(%arg0: i32) -> (i32, i32) {
    %c0_i32 = arith.constant 0 : i32
    %c0_i32_0 = arith.constant 0 : i32
    %c0_i32_1 = arith.constant 0 : i32
    return %c0_i32, %c0_i32_0 : i32, i32
  }
  func.func @transform_17(%arg0: i32) -> (i32, i32) {
    %c0_i32 = arith.constant 0 : i32
    %c0_i32_0 = arith.constant 0 : i32
    %c0_i32_1 = arith.constant 0 : i32
    return %c0_i32, %c0_i32_0 : i32, i32
  }
  func.func @transform_18(%arg0: i32) -> (i32, i32) {
    %c0_i32 = arith.constant 0 : i32
    %c0_i32_0 = arith.constant 0 : i32
    %c0_i32_1 = arith.constant 0 : i32
    return %c0_i32, %c0_i32_0 : i32, i32
  }
  func.func @transform_19(%arg0: i32) -> (i32, i32) {
    %c0_i32 = arith.constant 0 : i32
    %c0_i32_0 = arith.constant 0 : i32
    %c0_i32_1 = arith.constant 0 : i32
    return %c0_i32, %c0_i32_0 : i32, i32
  }
  func.func @transform_20(%arg0: i32) -> (i32, i32) {
    %c0_i32 = arith.constant 0 : i32
    %c0_i32_0 = arith.constant 0 : i32
    %c0_i32_1 = arith.constant 0 : i32
    return %c0_i32, %c0_i32_0 : i32, i32
  }
}

</mosaic_0001>

<llo_original>
// kernel: tpu_custom_call.1
$region0: #{tpu_custom_call.1}
  #allocation0 [shape = 'u32[]', space=smem, size = 0x4, offset = 0x4, fixed_abs, tag = 'smem constant byte address 0x4 - core index']
  #allocation1 [shape = 'u32[72,128]{1,0:T(1,128)}', space=vmem, size = 0x9000, scoped, tag = 'internal scratch']
  %s0 = inlined_call_operand.vmem [shape: f32[64,32], index: 0, kind: input, shape index: {}]
  %s1 = inlined_call_operand.vmem [shape: f32[64,32], index: 1, kind: input, shape index: {}]
  %s2 = inlined_call_operand.vmem [shape: f32[64,64], index: 2, kind: input, shape index: {}]
  %s3 = inlined_call_operand.vmem [shape: f32[2,32,96], index: 3, kind: input, shape index: {}]
  %s4 = inlined_call_operand.hbm [shape: f32[2,1,96], index: 4, kind: input, shape index: {}]
  %s5 = inlined_call_operand.vmem [shape: f32[2,4,8,32], index: 5, kind: input, shape index: {}]
  %s6 = inlined_call_operand.vmem [shape: f32[2,1,32], index: 6, kind: input, shape index: {}]
  %s7 = inlined_call_operand.hbm [shape: f32[2,1,32], index: 7, kind: input, shape index: {}]
  %s8 = inlined_call_operand.hbm [shape: f32[2,1,32], index: 8, kind: input, shape index: {}]
  %s9 = inlined_call_operand.vmem [shape: f32[2,32,64], index: 9, kind: input, shape index: {}]
  %s10 = inlined_call_operand.vmem [shape: f32[2,1,64], index: 10, kind: input, shape index: {}]
  %s11 = inlined_call_operand.vmem [shape: f32[2,64,32], index: 11, kind: input, shape index: {}]
  %s12 = inlined_call_operand.hbm [shape: f32[2,1,32], index: 12, kind: input, shape index: {}]
  %s13 = inlined_call_operand.hbm [shape: f32[2,1,32], index: 13, kind: input, shape index: {}]
  %s14 = inlined_call_operand.hbm [shape: f32[2,1,32], index: 14, kind: input, shape index: {}]
  %s15 = inlined_call_operand.vmem [shape: f32[32,32], index: 15, kind: input, shape index: {}]
  %s16 = inlined_call_operand.vmem [shape: f32[1,32], index: 16, kind: input, shape index: {}]
  %s17 = inlined_call_operand.vmem [shape: f32[32,4], index: 17, kind: input, shape index: {}]
  %s18 = inlined_call_operand.vmem [shape: f32[1,4], index: 18, kind: input, shape index: {}]
  %s19 = inlined_call_operand.vmem [shape: f32[4,32], index: 19, kind: input, shape index: {}]
  %s20 = inlined_call_operand.vmem [shape: f32[64,32], index: 20, kind: output, shape index: {}]
  %s21 = sld [smem:[#allocation0]]
  $region114: #{tpu_custom_call.1} parent=0
    _
  %s23 = ssub.s32 1, %s21
  %s24 = scalar_select 0, %s23, %s21
  $region1: #{tpu_custom_call.1} parent=0
    #allocation2 [shape = 'u8[1024]{0}', space=vmem, size = 0x400, scoped, tag = 'input window, operand 4, single buffered']
    #allocation3 [shape = 's32[1]{0}', space=sflag, size = 0x4, scoped, tag = 'scoped memory for tpu_custom_call.1']
    #allocation4 [shape = 'u8[1024]{0}', space=vmem, size = 0x400, scoped, tag = 'input window, operand 7, single buffered']
    #allocation5 [shape = 's32[1]{0}', space=sflag, size = 0x4, scoped, tag = 'scoped memory for tpu_custom_call.1']
    #allocation6 [shape = 'u8[1024]{0}', space=vmem, size = 0x400, scoped, tag = 'input window, operand 8, single buffered']
    #allocation7 [shape = 'u8[1024]{0}', space=vmem, size = 0x400, scoped, tag = 'input window, operand 12, single buffered']
    #allocation8 [shape = 's32[1]{0}', space=sflag, size = 0x4, scoped, tag = 'scoped memory for tpu_custom_call.1']
    #allocation9 [shape = 'u8[1024]{0}', space=vmem, size = 0x400, scoped, tag = 'input window, operand 13, single buffered']
    #allocation10 [shape = 'u8[1024]{0}', space=vmem, size = 0x400, scoped, tag = 'input window, operand 14, single buffered']
    #allocation11 [shape = 's32[1]{0}', space=sflag, size = 0x4, scoped, tag = 'scoped memory for tpu_custom_call.1']
    %25 = vsyncpa [#allocation3], 0
    %26 = vsyncpa [#allocation5], 0
    %27 = vsyncpa [#allocation8], 0
    %28 = vsyncpa [#allocation11], 0
    // Predicated region
    $region2: #{tpu_custom_call.1} parent=1 // pred_check
      _
    $region3: #{tpu_custom_call.1} parent=1 // pred_check_branch
      %30 = sbr.rel (0) target = $region5
    $region4: #{tpu_custom_call.1} parent=1 // pred_region
      _
    $region5: #{tpu_custom_call.1} parent=1 // pred_fallthru
      _
    // Predicated region
    $region6: #{tpu_custom_call.1} parent=1 // pred_check
      _
    $region7: #{tpu_custom_call.1} parent=1 // pred_check_branch
      %32 = sbr.rel (0) target = $region9
    $region8: #{tpu_custom_call.1} parent=1 // pred_region
      _
    $region9: #{tpu_custom_call.1} parent=1 // pred_fallthru
      _
    // Predicated region
    $region10: #{tpu_custom_call.1} parent=1 // pred_check
      _
    $region11: #{tpu_custom_call.1} parent=1 // pred_check_branch
      %34 = sbr.rel (0) target = $region13
    $region12: #{tpu_custom_call.1} parent=1 // pred_region
      _
    $region13: #{tpu_custom_call.1} parent=1 // pred_fallthru
      _
    // Predicated region
    $region14: #{tpu_custom_call.1} parent=1 // pred_check
      _
    $region15: #{tpu_custom_call.1} parent=1 // pred_check_branch
      %36 = sbr.rel (0) target = $region17
    $region16: #{tpu_custom_call.1} parent=1 // pred_region
      _
    $region17: #{tpu_custom_call.1} parent=1 // pred_fallthru
      _
    // Predicated region
    $region18: #{tpu_custom_call.1} parent=1 // pred_check
      _
    $region19: #{tpu_custom_call.1} parent=1 // pred_check_branch
      %38 = sbr.rel (0) target = $region21
    $region20: #{tpu_custom_call.1} parent=1 // pred_region
      %40 = vsyncadd [#allocation3], 0
      %s41 = sshll.u32 %s4, 4
      %s42 = int_to_ptr.hbm [resolvable:$true] %s41
      %s43 = sshll.u32 [#allocation2], 4
      %s44 = int_to_ptr.vmem [resolvable:$true] %s43
      %49 = dma.hbm_to_vmem [thread:$0]  %s42, 32, %s44, [#allocation3], 16, 16, 1
    $region21: #{tpu_custom_call.1} parent=1 // pred_fallthru
      _
    // Predicated region
    $region22: #{tpu_custom_call.1} parent=1 // pred_check
      _
    $region23: #{tpu_custom_call.1} parent=1 // pred_check_branch
      %51 = sbr.rel (0) target = $region25
    $region24: #{tpu_custom_call.1} parent=1 // pred_region
      _
    $region25: #{tpu_custom_call.1} parent=1 // pred_fallthru
      _
    // Predicated region
    $region26: #{tpu_custom_call.1} parent=1 // pred_check
      _
    $region27: #{tpu_custom_call.1} parent=1 // pred_check_branch
      %53 = sbr.rel (0) target = $region29
    $region28: #{tpu_custom_call.1} parent=1 // pred_region
      _
    $region29: #{tpu_custom_call.1} parent=1 // pred_fallthru
      _
    // Predicated region
    $region30: #{tpu_custom_call.1} parent=1 // pred_check
      _
    $region31: #{tpu_custom_call.1} parent=1 // pred_check_branch
      %55 = sbr.rel (0) target = $region33
    $region32: #{tpu_custom_call.1} parent=1 // pred_region
      %57 = vsyncadd [#allocation5], 0
      %s58 = sshll.u32 %s7, 4
      %s59 = int_to_ptr.hbm [resolvable:$true] %s58
      %s60 = sshll.u32 [#allocation4], 4
      %s61 = int_to_ptr.vmem [resolvable:$true] %s60
      %66 = dma.hbm_to_vmem [thread:$0]  %s59, 32, %s61, [#allocation5], 16, 16, 1
    $region33: #{tpu_custom_call.1} parent=1 // pred_fallthru
      _
    // Predicated region
    $region34: #{tpu_custom_call.1} parent=1 // pred_check
      _
    $region35: #{tpu_custom_call.1} parent=1 // pred_check_branch
      %68 = sbr.rel (0) target = $region37
    $region36: #{tpu_custom_call.1} parent=1 // pred_region
      %70 = vsyncadd [#allocation5], 0
      %s71 = sshll.u32 %s8, 4
      %s72 = int_to_ptr.hbm [resolvable:$true] %s71
      %s73 = sshll.u32 [#allocation6], 4
      %s74 = int_to_ptr.vmem [resolvable:$true] %s73
      %79 = dma.hbm_to_vmem [thread:$0]  %s72, 32, %s74, [#allocation5], 16, 16, 1
    $region37: #{tpu_custom_call.1} parent=1 // pred_fallthru
      _
    // Predicated region
    $region38: #{tpu_custom_call.1} parent=1 // pred_check
      _
    $region39: #{tpu_custom_call.1} parent=1 // pred_check_branch
      %81 = sbr.rel (0) target = $region41
    $region40: #{tpu_custom_call.1} parent=1 // pred_region
      _
    $region41: #{tpu_custom_call.1} parent=1 // pred_fallthru
      _
    // Predicated region
    $region42: #{tpu_custom_call.1} parent=1 // pred_check
      _
    $region43: #{tpu_custom_call.1} parent=1 // pred_check_branch
      %83 = sbr.rel (0) target = $region45
    $region44: #{tpu_custom_call.1} parent=1 // pred_region
      _
    $region45: #{tpu_custom_call.1} parent=1 // pred_fallthru
      _
    // Predicated region
    $region46: #{tpu_custom_call.1} parent=1 // pred_check
      _
    $region47: #{tpu_custom_call.1} parent=1 // pred_check_branch
      %85 = sbr.rel (0) target = $region49
    $region48: #{tpu_custom_call.1} parent=1 // pred_region
      _
    $region49: #{tpu_custom_call.1} parent=1 // pred_fallthru
      _
    // Predicated region
    $region50: #{tpu_custom_call.1} parent=1 // pred_check
      _
    $region51: #{tpu_custom_call.1} parent=1 // pred_check_branch
      %87 = sbr.rel (0) target = $region53
    $region52: #{tpu_custom_call.1} parent=1 // pred_region
      %89 = vsyncadd [#allocation8], 0
      %s90 = sshll.u32 %s12, 4
      %s91 = int_to_ptr.hbm [resolvable:$true] %s90
      %s92 = sshll.u32 [#allocation7], 4
      %s93 = int_to_ptr.vmem [resolvable:$true] %s92
      %98 = dma.hbm_to_vmem [thread:$0]  %s91, 32, %s93, [#allocation8], 16, 16, 1
    $region53: #{tpu_custom_call.1} parent=1 // pred_fallthru
      _
    // Predicated region
    $region54: #{tpu_custom_call.1} parent=1 // pred_check
      _
    $region55: #{tpu_custom_call.1} parent=1 // pred_check_branch
      %100 = sbr.rel (0) target = $region57
    $region56: #{tpu_custom_call.1} parent=1 // pred_region
      %102 = vsyncadd [#allocation8], 0
      %s103 = sshll.u32 %s13, 4
      %s104 = int_to_ptr.hbm [resolvable:$true] %s103
      %s105 = sshll.u32 [#allocation9], 4
      %s106 = int_to_ptr.vmem [resolvable:$true] %s105
      %111 = dma.hbm_to_vmem [thread:$0]  %s104, 32, %s106, [#allocation8], 16, 16, 1
    $region57: #{tpu_custom_call.1} parent=1 // pred_fallthru
      _
    // Predicated region
    $region58: #{tpu_custom_call.1} parent=1 // pred_check
      _
    $region59: #{tpu_custom_call.1} parent=1 // pred_check_branch
      %113 = sbr.rel (0) target = $region61
    $region60: #{tpu_custom_call.1} parent=1 // pred_region
      %115 = vsyncadd [#allocation11], 0
      %s116 = sshll.u32 %s14, 4
      %s117 = int_to_ptr.hbm [resolvable:$true] %s116
      %s118 = sshll.u32 [#allocation10], 4
      %s119 = int_to_ptr.vmem [resolvable:$true] %s118
      %124 = dma.hbm_to_vmem [thread:$0]  %s117, 32, %s119, [#allocation11], 16, 16, 1
    $region61: #{tpu_custom_call.1} parent=1 // pred_fallthru
      _
    // Predicated region
    $region62: #{tpu_custom_call.1} parent=1 // pred_check
      _
    $region63: #{tpu_custom_call.1} parent=1 // pred_check_branch
      %126 = sbr.rel (0) target = $region65
    $region64: #{tpu_custom_call.1} parent=1 // pred_region
      _
    $region65: #{tpu_custom_call.1} parent=1 // pred_fallthru
      _
    // Predicated region
    $region66: #{tpu_custom_call.1} parent=1 // pred_check
      _
    $region67: #{tpu_custom_call.1} parent=1 // pred_check_branch
      %128 = sbr.rel (0) target = $region69
    $region68: #{tpu_custom_call.1} parent=1 // pred_region
      _
    $region69: #{tpu_custom_call.1} parent=1 // pred_fallthru
      _
    // Predicated region
    $region70: #{tpu_custom_call.1} parent=1 // pred_check
      _
    $region71: #{tpu_custom_call.1} parent=1 // pred_check_branch
      %130 = sbr.rel (0) target = $region73
    $region72: #{tpu_custom_call.1} parent=1 // pred_region
      _
    $region73: #{tpu_custom_call.1} parent=1 // pred_fallthru
      _
    // Predicated region
    $region74: #{tpu_custom_call.1} parent=1 // pred_check
      _
    $region75: #{tpu_custom_call.1} parent=1 // pred_check_branch
      %132 = sbr.rel (0) target = $region77
    $region76: #{tpu_custom_call.1} parent=1 // pred_region
      _
    $region77: #{tpu_custom_call.1} parent=1 // pred_fallthru
      _
    // Predicated region
    $region78: #{tpu_custom_call.1} parent=1 // pred_check
      _
    $region79: #{tpu_custom_call.1} parent=1 // pred_check_branch
      %134 = sbr.rel (0) target = $region81
    $region80: #{tpu_custom_call.1} parent=1 // pred_region
      _
    $region81: #{tpu_custom_call.1} parent=1 // pred_fallthru
      _
    // Predicated region
    $region82: #{tpu_custom_call.1} parent=1 // pred_check
      _
    $region83: #{tpu_custom_call.1} parent=1 // pred_check_branch
      %136 = sbr.rel (0) target = $region85
    $region84: #{tpu_custom_call.1} parent=1 // pred_region
      %138 = dma.done [#allocation3], 32
    $region85: #{tpu_custom_call.1} parent=1 // pred_fallthru
      _
    // Predicated region
    $region86: #{tpu_custom_call.1} parent=1 // pred_check
      _
    $region87: #{tpu_custom_call.1} parent=1 // pred_check_branch
      %140 = sbr.rel (0) target = $region89
    $region88: #{tpu_custom_call.1} parent=1 // pred_region
      %142 = dma.done [#allocation5], 32
    $region89: #{tpu_custom_call.1} parent=1 // pred_fallthru
      _
    // Predicated region
    $region90: #{tpu_custom_call.1} parent=1 // pred_check
      _
    $region91: #{tpu_custom_call.1} parent=1 // pred_check_branch
      %144 = sbr.rel (0) target = $region93
    $region92: #{tpu_custom_call.1} parent=1 // pred_region
      %146 = dma.done [#allocation5], 32
    $region93: #{tpu_custom_call.1} parent=1 // pred_fallthru
      _
    // Predicated region
    $region94: #{tpu_custom_call.1} parent=1 // pred_check
      _
    $region95: #{tpu_custom_call.1} parent=1 // pred_check_branch
      %148 = sbr.rel (0) target = $region97
    $region96: #{tpu_custom_call.1} parent=1 // pred_region
      %150 = dma.done [#allocation8], 32
    $region97: #{tpu_custom_call.1} parent=1 // pred_fallthru
      _
    // Predicated region
    $region98: #{tpu_custom_call.1} parent=1 // pred_check
      _
    $region99: #{tpu_custom_call.1} parent=1 // pred_check_branch
      %152 = sbr.rel (0) target = $region101
    $region100: #{tpu_custom_call.1} parent=1 // pred_region
      %154 = dma.done [#allocation8], 32
    $region101: #{tpu_custom_call.1} parent=1 // pred_fallthru
      _
    // Predicated region
    $region102: #{tpu_custom_call.1} parent=1 // pred_check
      _
    $region103: #{tpu_custom_call.1} parent=1 // pred_check_branch
      %156 = sbr.rel (0) target = $region105
    $region104: #{tpu_custom_call.1} parent=1 // pred_region
      %158 = dma.done [#allocation11], 32
    $region105: #{tpu_custom_call.1} parent=1 // pred_fallthru
      _
    %v159 = vld [vmem:[%s0] sm:$0xff]
    %v160 = vld [vmem:[%s0 + $0x8] sm:$0xff]
    %v161 = vld [vmem:[%s0 + $0x10] sm:$0xff]
    %v162 = vld [vmem:[%s0 + $0x18] sm:$0xff]
    %v163 = vld [vmem:[%s0 + $0x20] sm:$0xff]
    %v164 = vld [vmem:[%s0 + $0x28] sm:$0xff]
    %v165 = vld [vmem:[%s0 + $0x30] sm:$0xff]
    %v166 = vld [vmem:[%s0 + $0x38] sm:$0xff]
    %v167 = vld [vmem:[%s1] sm:$0xff]
    %v168 = vld [vmem:[%s1 + $0x8] sm:$0xff]
    %v169 = vld [vmem:[%s1 + $0x10] sm:$0xff]
    %v170 = vld [vmem:[%s1 + $0x18] sm:$0xff]
    %v171 = vld [vmem:[%s1 + $0x20] sm:$0xff]
    %v172 = vld [vmem:[%s1 + $0x28] sm:$0xff]
    %v173 = vld [vmem:[%s1 + $0x30] sm:$0xff]
    %v174 = vld [vmem:[%s1 + $0x38] sm:$0xff]
    %v175 = vld [vmem:[%s2] sm:$0xff]
    %v176 = vld [vmem:[%s2 + $0x8] sm:$0xff]
    %v177 = vld [vmem:[%s2 + $0x10] sm:$0xff]
    %v178 = vld [vmem:[%s2 + $0x18] sm:$0xff]
    %v179 = vld [vmem:[%s2 + $0x20] sm:$0xff]
    %v180 = vld [vmem:[%s2 + $0x28] sm:$0xff]
    %v181 = vld [vmem:[%s2 + $0x30] sm:$0xff]
    %v182 = vld [vmem:[%s2 + $0x38] sm:$0xff]
    %v183 = vadd.f32 %v159, %v167
    %v184 = vadd.f32 %v160, %v168
    %v185 = vadd.f32 %v161, %v169
    %v186 = vadd.f32 %v162, %v170
    %v187 = vadd.f32 %v163, %v171
    %v188 = vadd.f32 %v164, %v172
    %v189 = vadd.f32 %v165, %v173
    %v190 = vadd.f32 %v166, %v174
    %v191 = vld [vmem:[%s3] sm:$0xff]
    %v192 = vld [vmem:[%s3 + $0x8] sm:$0xff]
    %v193 = vld [vmem:[%s3 + $0x10] sm:$0xff]
    %v194 = vld [vmem:[%s3 + $0x18] sm:$0xff]
    %v195 = vld [vmem:[#allocation2] sm:$0x1]
    %v197 = vperm.slane %v195, 0
    %vm199 = vcmask 261120
    %v201 = vsel %vm199, %v183, 0
    %v204 = vsel %vm199, %v184, 0
    %v207 = vsel %vm199, %v185, 0
    %v210 = vsel %vm199, %v186, 0
    %v213 = vsel %vm199, %v187, 0
    %v216 = vsel %vm199, %v188, 0
    %v219 = vsel %vm199, %v189, 0
    %v222 = vsel %vm199, %v190, 0
    %224 = vmatpush.msra.mxu0 0.0
    %225 = vmatpush.msra.mxu0 0.0
    %226 = vmatpush.msra.mxu0 0.0
    %227 = vmatpush.msra.mxu0 0.0
    %228 = vmatpush.msra.mxu0 0.0
    %229 = vmatpush.msra.mxu0 0.0
    %230 = vmatpush.msra.mxu0 0.0
    %231 = vmatpush.msra.mxu0 0.0
    %232 = vmatpush.msra.mxu0 0.0
    %233 = vmatpush.msra.mxu0 0.0
    %234 = vmatpush.msra.mxu0 0.0
    %235 = vmatpush.msra.mxu0 0.0
    %236 = vmatpush.msra.mxu0 %v194
    %237 = vmatpush.msra.mxu0 %v193
    %238 = vmatpush.msra.mxu0 %v192
    %239 = vmatpush.msra.mxu0 %v191
    %240 = vmatmul.f32.gmra.mxu0 %v201
    %v241 = vpop.f32.mrf.mxu0
    %v242 = vadd.f32 %v197, %v241
    %243 = vmatmul.f32.gmra.mxu0 %v204
    %v244 = vpop.f32.mrf.mxu0
    %v245 = vadd.f32 %v197, %v244
    %246 = vmatmul.f32.gmra.mxu0 %v207
    %v247 = vpop.f32.mrf.mxu0
    %v248 = vadd.f32 %v197, %v247
    %249 = vmatmul.f32.gmra.mxu0 %v210
    %v250 = vpop.f32.mrf.mxu0
    %v251 = vadd.f32 %v197, %v250
    %252 = vmatmul.f32.gmra.mxu0 %v213
    %v253 = vpop.f32.mrf.mxu0
    %v254 = vadd.f32 %v197, %v253
    %255 = vmatmul.f32.gmra.mxu0 %v216
    %v256 = vpop.f32.mrf.mxu0
    %v257 = vadd.f32 %v197, %v256
    %258 = vmatmul.f32.gmra.mxu0 %v219
    %v259 = vpop.f32.mrf.mxu0
    %v260 = vadd.f32 %v197, %v259
    %261 = vmatmul.f32.gmra.mxu0 %v222
    %v262 = vpop.f32.mrf.mxu0
    %v263 = vadd.f32 %v197, %v262
    %264 = vdwg.mxu0
    %v265 = vld [vmem:[%s5] sm:$0xff]
    %v266 = vld [vmem:[%s5 + $0x8] sm:$0xff]
    %v267 = vld [vmem:[%s5 + $0x10] sm:$0xff]
    %v268 = vld [vmem:[%s5 + $0x18] sm:$0xff]
    %277 = vrot.lane.b32.xlu0 %v242, 96
    %v278 = vpop.permute.xlu0 %277
    %279 = vrot.lane.b32.xlu0 %v245, 96
    %v280 = vpop.permute.xlu0 %279
    %281 = vrot.lane.b32.xlu0 %v248, 96
    %v282 = vpop.permute.xlu0 %281
    %283 = vrot.lane.b32.xlu0 %v251, 96
    %v284 = vpop.permute.xlu0 %283
    %285 = vrot.lane.b32.xlu0 %v254, 96
    %v286 = vpop.permute.xlu0 %285
    %287 = vrot.lane.b32.xlu0 %v257, 96
    %v288 = vpop.permute.xlu0 %287
    %289 = vrot.lane.b32.xlu0 %v260, 96
    %v290 = vpop.permute.xlu0 %289
    %291 = vrot.lane.b32.xlu0 %v263, 96
    %v292 = vpop.permute.xlu0 %291
    %vm293 = vcmask 64512
    %v294 = vsel %vm293, %v242, 0
    %v296 = vsel %vm293, %v245, 0
    %v298 = vsel %vm293, %v248, 0
    %v300 = vsel %vm293, %v251, 0
    %v302 = vsel %vm293, %v254, 0
    %v304 = vsel %vm293, %v257, 0
    %v306 = vsel %vm293, %v260, 0
    %v308 = vsel %vm293, %v263, 0
    %v310 = vsel %vm293, %v278, 0
    %v312 = vsel %vm293, %v280, 0
    %v314 = vsel %vm293, %v282, 0
    %v316 = vsel %vm293, %v284, 0
    %v318 = vsel %vm293, %v286, 0
    %v320 = vsel %vm293, %v288, 0
    %v322 = vsel %vm293, %v290, 0
    %v324 = vsel %vm293, %v292, 0
    %326 = vmatpush.xpose.msra.mxu0 0.0
    %327 = vmatpush.xpose.msra.mxu0 0.0
    %328 = vmatpush.xpose.msra.mxu0 0.0
    %329 = vmatpush.xpose.msra.mxu0 0.0
    %330 = vmatpush.xpose.msra.mxu0 0.0
    %331 = vmatpush.xpose.msra.mxu0 0.0
    %332 = vmatpush.xpose.msra.mxu0 0.0
    %333 = vmatpush.xpose.msra.mxu0 0.0
    %334 = vmatpush.xpose.msra.mxu0 %v324
    %335 = vmatpush.xpose.msra.mxu0 %v322
    %336 = vmatpush.xpose.msra.mxu0 %v320
    %337 = vmatpush.xpose.msra.mxu0 %v318
    %338 = vmatpush.xpose.msra.mxu0 %v316
    %339 = vmatpush.xpose.msra.mxu0 %v314
    %340 = vmatpush.xpose.msra.mxu0 %v312
    %341 = vmatpush.xpose.msra.mxu0 %v310
    %342 = vmatmul.f32.gmra.mxu0 %v294
    %v343 = vpop.f32.mrf.mxu0
    %v344 = vadd.f32 %v175, %v343
    %345 = vmatmul.f32.gmra.mxu0 %v296
    %v346 = vpop.f32.mrf.mxu0
    %v347 = vadd.f32 %v176, %v346
    %348 = vmatmul.f32.gmra.mxu0 %v298
    %v349 = vpop.f32.mrf.mxu0
    %v350 = vadd.f32 %v177, %v349
    %351 = vmatmul.f32.gmra.mxu0 %v300
    %v352 = vpop.f32.mrf.mxu0
    %v353 = vadd.f32 %v178, %v352
    %354 = vmatmul.f32.gmra.mxu0 %v302
    %v355 = vpop.f32.mrf.mxu0
    %v356 = vadd.f32 %v179, %v355
    %357 = vmatmul.f32.gmra.mxu0 %v304
    %v358 = vpop.f32.mrf.mxu0
    %v359 = vadd.f32 %v180, %v358
    %360 = vmatmul.f32.gmra.mxu0 %v306
    %v361 = vpop.f32.mrf.mxu0
    %v362 = vadd.f32 %v181, %v361
    %363 = vmatmul.f32.gmra.mxu0 %v308
    %v364 = vpop.f32.mrf.mxu0
    %v365 = vadd.f32 %v182, %v364
    %366 = vdwg.mxu0
    %vm367 = vcmask 523264
    %v368 = vsel %vm367, %v344, -inf
    %369 = vmax.xlane.f32.xlu0 %v368
    %v370 = vpop.xlane.xlu0 %369
    %v371 = vsel %vm367, %v347, -inf
    %372 = vmax.xlane.f32.xlu0 %v371
    %v373 = vpop.xlane.xlu0 %372
    %v374 = vsel %vm367, %v350, -inf
    %375 = vmax.xlane.f32.xlu0 %v374
    %v376 = vpop.xlane.xlu0 %375
    %v377 = vsel %vm367, %v353, -inf
    %378 = vmax.xlane.f32.xlu0 %v377
    %v379 = vpop.xlane.xlu0 %378
    %v380 = vsel %vm367, %v356, -inf
    %381 = vmax.xlane.f32.xlu0 %v380
    %v382 = vpop.xlane.xlu0 %381
    %v383 = vsel %vm367, %v359, -inf
    %384 = vmax.xlane.f32.xlu0 %v383
    %v385 = vpop.xlane.xlu0 %384
    %v386 = vsel %vm367, %v362, -inf
    %387 = vmax.xlane.f32.xlu0 %v386
    %v388 = vpop.xlane.xlu0 %387
    %v389 = vsel %vm367, %v365, -inf
    %390 = vmax.xlane.f32.xlu0 %v389
    %v391 = vpop.xlane.xlu0 %390
    %v392 = vsub.f32 %v344, %v370
    %v393 = vsub.f32 %v347, %v373
    %v394 = vsub.f32 %v350, %v376
    %v395 = vsub.f32 %v353, %v379
    %v396 = vsub.f32 %v356, %v382
    %v397 = vsub.f32 %v359, %v385
    %v398 = vsub.f32 %v362, %v388
    %v399 = vsub.f32 %v365, %v391
    %v400 = vmul.f32 %v392, 1.442695
    %v401 = vpow.pop %v400
    %v402 = vmul.f32 %v393, 1.442695
    %v403 = vpow.pop %v402
    %v404 = vmul.f32 %v394, 1.442695
    %v405 = vpow.pop %v404
    %v406 = vmul.f32 %v395, 1.442695
    %v407 = vpow.pop %v406
    %v408 = vmul.f32 %v396, 1.442695
    %v409 = vpow.pop %v408
    %v410 = vmul.f32 %v397, 1.442695
    %v411 = vpow.pop %v410
    %v412 = vmul.f32 %v398, 1.442695
    %v413 = vpow.pop %v412
    %v414 = vmul.f32 %v399, 1.442695
    %v415 = vpow.pop %v414
    %v416 = vsel %vm367, %v401, 0.0
    %417 = vadd.xlane.f32.xlu0 %v416
    %v418 = vpop.xlane.xlu0 %417
    %v419 = vsel %vm367, %v403, 0.0
    %420 = vadd.xlane.f32.xlu0 %v419
    %v421 = vpop.xlane.xlu0 %420
    %v422 = vsel %vm367, %v405, 0.0
    %423 = vadd.xlane.f32.xlu0 %v422
    %v424 = vpop.xlane.xlu0 %423
    %v425 = vsel %vm367, %v407, 0.0
    %426 = vadd.xlane.f32.xlu0 %v425
    %v427 = vpop.xlane.xlu0 %426
    %v428 = vsel %vm367, %v409, 0.0
    %429 = vadd.xlane.f32.xlu0 %v428
    %v430 = vpop.xlane.xlu0 %429
    %v431 = vsel %vm367, %v411, 0.0
    %432 = vadd.xlane.f32.xlu0 %v431
    %v433 = vpop.xlane.xlu0 %432
    %v434 = vsel %vm367, %v413, 0.0
    %435 = vadd.xlane.f32.xlu0 %v434
    %v436 = vpop.xlane.xlu0 %435
    %v437 = vsel %vm367, %v415, 0.0
    %438 = vadd.xlane.f32.xlu0 %v437
    %v439 = vpop.xlane.xlu0 %438
    %v440 = vrcp.pop %v418
    %v441 = vrcp.pop %v421
    %v442 = vrcp.pop %v424
    %v443 = vrcp.pop %v427
    %v444 = vrcp.pop %v430
    %v445 = vrcp.pop %v433
    %v446 = vrcp.pop %v436
    %v447 = vrcp.pop %v439
    %v448 = vmul.f32 %v401, %v440
    %v449 = vmul.f32 %v403, %v441
    %v450 = vmul.f32 %v405, %v442
    %v451 = vmul.f32 %v407, %v443
    %v452 = vmul.f32 %v409, %v444
    %v453 = vmul.f32 %v411, %v445
    %v454 = vmul.f32 %v413, %v446
    %v455 = vmul.f32 %v415, %v447
    %456 = vrot.lane.b32.xlu0 %v242, 64
    %v457 = vpop.permute.xlu0 %456
    %458 = vrot.lane.b32.xlu0 %v245, 64
    %v459 = vpop.permute.xlu0 %458
    %460 = vrot.lane.b32.xlu0 %v248, 64
    %v461 = vpop.permute.xlu0 %460
    %462 = vrot.lane.b32.xlu0 %v251, 64
    %v463 = vpop.permute.xlu0 %462
    %464 = vrot.lane.b32.xlu0 %v254, 64
    %v465 = vpop.permute.xlu0 %464
    %466 = vrot.lane.b32.xlu0 %v257, 64
    %v467 = vpop.permute.xlu0 %466
    %468 = vrot.lane.b32.xlu0 %v260, 64
    %v469 = vpop.permute.xlu0 %468
    %470 = vrot.lane.b32.xlu0 %v263, 64
    %v471 = vpop.permute.xlu0 %470
    %v481 = vsel %vm367, %v448, 0
    %v484 = vsel %vm367, %v449, 0
    %v487 = vsel %vm367, %v450, 0
    %v490 = vsel %vm367, %v451, 0
    %v493 = vsel %vm367, %v452, 0
    %v496 = vsel %vm367, %v453, 0
    %v499 = vsel %vm367, %v454, 0
    %v502 = vsel %vm367, %v455, 0
    %504 = vmatpush.msra.mxu0 0.0
    %505 = vmatpush.msra.mxu0 0.0
    %506 = vmatpush.msra.mxu0 0.0
    %507 = vmatpush.msra.mxu0 0.0
    %508 = vmatpush.msra.mxu0 0.0
    %509 = vmatpush.msra.mxu0 0.0
    %510 = vmatpush.msra.mxu0 0.0
    %511 = vmatpush.msra.mxu0 0.0
    %512 = vmatpush.msra.mxu0 %v471
    %513 = vmatpush.msra.mxu0 %v469
    %514 = vmatpush.msra.mxu0 %v467
    %515 = vmatpush.msra.mxu0 %v465
    %516 = vmatpush.msra.mxu0 %v463
    %517 = vmatpush.msra.mxu0 %v461
    %518 = vmatpush.msra.mxu0 %v459
    %519 = vmatpush.msra.mxu0 %v457
    %520 = vmatmul.f32.gmra.mxu0 %v481
    %v521 = vpop.f32.mrf.mxu0
    %v522 = vadd.f32 0.0, %v521
    %523 = vmatmul.f32.gmra.mxu0 %v484
    %v524 = vpop.f32.mrf.mxu0
    %v525 = vadd.f32 0.0, %v524
    %526 = vmatmul.f32.gmra.mxu0 %v487
    %v527 = vpop.f32.mrf.mxu0
    %v528 = vadd.f32 0.0, %v527
    %529 = vmatmul.f32.gmra.mxu0 %v490
    %v530 = vpop.f32.mrf.mxu0
    %v531 = vadd.f32 0.0, %v530
    %532 = vmatmul.f32.gmra.mxu0 %v493
    %v533 = vpop.f32.mrf.mxu0
    %v534 = vadd.f32 0.0, %v533
    %535 = vmatmul.f32.gmra.mxu0 %v496
    %v536 = vpop.f32.mrf.mxu0
    %v537 = vadd.f32 0.0, %v536
    %538 = vmatmul.f32.gmra.mxu0 %v499
    %v539 = vpop.f32.mrf.mxu0
    %v540 = vadd.f32 0.0, %v539
    %541 = vmatmul.f32.gmra.mxu0 %v502
    %v542 = vpop.f32.mrf.mxu0
    %v543 = vadd.f32 0.0, %v542
    %544 = vdwg.mxu0
    %545 = vrot.lane.b32.xlu0 %v242, 120
    %v546 = vpop.permute.xlu0 %545
    %547 = vrot.lane.b32.xlu0 %v245, 120
    %v548 = vpop.permute.xlu0 %547
    %549 = vrot.lane.b32.xlu0 %v248, 120
    %v550 = vpop.permute.xlu0 %549
    %551 = vrot.lane.b32.xlu0 %v251, 120
    %v552 = vpop.permute.xlu0 %551
    %553 = vrot.lane.b32.xlu0 %v254, 120
    %v554 = vpop.permute.xlu0 %553
    %555 = vrot.lane.b32.xlu0 %v257, 120
    %v556 = vpop.permute.xlu0 %555
    %557 = vrot.lane.b32.xlu0 %v260, 120
    %v558 = vpop.permute.xlu0 %557
    %559 = vrot.lane.b32.xlu0 %v263, 120
    %v560 = vpop.permute.xlu0 %559
    %561 = vrot.lane.b32.xlu0 %v242, 88
    %v562 = vpop.permute.xlu0 %561
    %563 = vrot.lane.b32.xlu0 %v245, 88
    %v564 = vpop.permute.xlu0 %563
    %565 = vrot.lane.b32.xlu0 %v248, 88
    %v566 = vpop.permute.xlu0 %565
    %567 = vrot.lane.b32.xlu0 %v251, 88
    %v568 = vpop.permute.xlu0 %567
    %569 = vrot.lane.b32.xlu0 %v254, 88
    %v570 = vpop.permute.xlu0 %569
    %571 = vrot.lane.b32.xlu0 %v257, 88
    %v572 = vpop.permute.xlu0 %571
    %573 = vrot.lane.b32.xlu0 %v260, 88
    %v574 = vpop.permute.xlu0 %573
    %575 = vrot.lane.b32.xlu0 %v263, 88
    %v576 = vpop.permute.xlu0 %575
    %v577 = vsel %vm293, %v546, 0
    %v579 = vsel %vm293, %v548, 0
    %v581 = vsel %vm293, %v550, 0
    %v583 = vsel %vm293, %v552, 0
    %v585 = vsel %vm293, %v554, 0
    %v587 = vsel %vm293, %v556, 0
    %v589 = vsel %vm293, %v558, 0
    %v591 = vsel %vm293, %v560, 0
    %v593 = vsel %vm293, %v562, 0
    %v595 = vsel %vm293, %v564, 0
    %v597 = vsel %vm293, %v566, 0
    %v599 = vsel %vm293, %v568, 0
    %v601 = vsel %vm293, %v570, 0
    %v603 = vsel %vm293, %v572, 0
    %v605 = vsel %vm293, %v574, 0
    %v607 = vsel %vm293, %v576, 0
    %609 = vmatpush.xpose.msra.mxu0 0.0
    %610 = vmatpush.xpose.msra.mxu0 0.0
    %611 = vmatpush.xpose.msra.mxu0 0.0
    %612 = vmatpush.xpose.msra.mxu0 0.0
    %613 = vmatpush.xpose.msra.mxu0 0.0
    %614 = vmatpush.xpose.msra.mxu0 0.0
    %615 = vmatpush.xpose.msra.mxu0 0.0
    %616 = vmatpush.xpose.msra.mxu0 0.0
    %617 = vmatpush.xpose.msra.mxu0 %v607
    %618 = vmatpush.xpose.msra.mxu0 %v605
    %619 = vmatpush.xpose.msra.mxu0 %v603
    %620 = vmatpush.xpose.msra.mxu0 %v601
    %621 = vmatpush.xpose.msra.mxu0 %v599
    %622 = vmatpush.xpose.msra.mxu0 %v597
    %623 = vmatpush.xpose.msra.mxu0 %v595
    %624 = vmatpush.xpose.msra.mxu0 %v593
    %625 = vmatmul.f32.gmra.mxu0 %v577
    %v626 = vpop.f32.mrf.mxu0
    %v627 = vadd.f32 %v175, %v626
    %628 = vmatmul.f32.gmra.mxu0 %v579
    %v629 = vpop.f32.mrf.mxu0
    %v630 = vadd.f32 %v176, %v629
    %631 = vmatmul.f32.gmra.mxu0 %v581
    %v632 = vpop.f32.mrf.mxu0
    %v633 = vadd.f32 %v177, %v632
    %634 = vmatmul.f32.gmra.mxu0 %v583
    %v635 = vpop.f32.mrf.mxu0
    %v636 = vadd.f32 %v178, %v635
    %637 = vmatmul.f32.gmra.mxu0 %v585
    %v638 = vpop.f32.mrf.mxu0
    %v639 = vadd.f32 %v179, %v638
    %640 = vmatmul.f32.gmra.mxu0 %v587
    %v641 = vpop.f32.mrf.mxu0
    %v642 = vadd.f32 %v180, %v641
    %643 = vmatmul.f32.gmra.mxu0 %v589
    %v644 = vpop.f32.mrf.mxu0
    %v645 = vadd.f32 %v181, %v644
    %646 = vmatmul.f32.gmra.mxu0 %v591
    %v647 = vpop.f32.mrf.mxu0
    %v648 = vadd.f32 %v182, %v647
    %649 = vdwg.mxu0
    %v650 = vsel %vm367, %v627, -inf
    %651 = vmax.xlane.f32.xlu0 %v650
    %v652 = vpop.xlane.xlu0 %651
    %v653 = vsel %vm367, %v630, -inf
    %654 = vmax.xlane.f32.xlu0 %v653
    %v655 = vpop.xlane.xlu0 %654
    %v656 = vsel %vm367, %v633, -inf
    %657 = vmax.xlane.f32.xlu0 %v656
    %v658 = vpop.xlane.xlu0 %657
    %v659 = vsel %vm367, %v636, -inf
    %660 = vmax.xlane.f32.xlu0 %v659
    %v661 = vpop.xlane.xlu0 %660
    %v662 = vsel %vm367, %v639, -inf
    %663 = vmax.xlane.f32.xlu0 %v662
    %v664 = vpop.xlane.xlu0 %663
    %v665 = vsel %vm367, %v642, -inf
    %666 = vmax.xlane.f32.xlu0 %v665
    %v667 = vpop.xlane.xlu0 %666
    %v668 = vsel %vm367, %v645, -inf
    %669 = vmax.xlane.f32.xlu0 %v668
    %v670 = vpop.xlane.xlu0 %669
    %v671 = vsel %vm367, %v648, -inf
    %672 = vmax.xlane.f32.xlu0 %v671
    %v673 = vpop.xlane.xlu0 %672
    %v674 = vsub.f32 %v627, %v652
    %v675 = vsub.f32 %v630, %v655
    %v676 = vsub.f32 %v633, %v658
    %v677 = vsub.f32 %v636, %v661
    %v678 = vsub.f32 %v639, %v664
    %v679 = vsub.f32 %v642, %v667
    %v680 = vsub.f32 %v645, %v670
    %v681 = vsub.f32 %v648, %v673
    %v682 = vmul.f32 %v674, 1.442695
    %v683 = vpow.pop %v682
    %v684 = vmul.f32 %v675, 1.442695
    %v685 = vpow.pop %v684
    %v686 = vmul.f32 %v676, 1.442695
    %v687 = vpow.pop %v686
    %v688 = vmul.f32 %v677, 1.442695
    %v689 = vpow.pop %v688
    %v690 = vmul.f32 %v678, 1.442695
    %v691 = vpow.pop %v690
    %v692 = vmul.f32 %v679, 1.442695
    %v693 = vpow.pop %v692
    %v694 = vmul.f32 %v680, 1.442695
    %v695 = vpow.pop %v694
    %v696 = vmul.f32 %v681, 1.442695
    %v697 = vpow.pop %v696
    %v698 = vsel %vm367, %v683, 0.0
    %699 = vadd.xlane.f32.xlu0 %v698
    %v700 = vpop.xlane.xlu0 %699
    %v701 = vsel %vm367, %v685, 0.0
    %702 = vadd.xlane.f32.xlu0 %v701
    %v703 = vpop.xlane.xlu0 %702
    %v704 = vsel %vm367, %v687, 0.0
    %705 = vadd.xlane.f32.xlu0 %v704
    %v706 = vpop.xlane.xlu0 %705
    %v707 = vsel %vm367, %v689, 0.0
    %708 = vadd.xlane.f32.xlu0 %v707
    %v709 = vpop.xlane.xlu0 %708
    %v710 = vsel %vm367, %v691, 0.0
    %711 = vadd.xlane.f32.xlu0 %v710
    %v712 = vpop.xlane.xlu0 %711
    %v713 = vsel %vm367, %v693, 0.0
    %714 = vadd.xlane.f32.xlu0 %v713
    %v715 = vpop.xlane.xlu0 %714
    %v716 = vsel %vm367, %v695, 0.0
    %717 = vadd.xlane.f32.xlu0 %v716
    %v718 = vpop.xlane.xlu0 %717
    %v719 = vsel %vm367, %v697, 0.0
    %720 = vadd.xlane.f32.xlu0 %v719
    %v721 = vpop.xlane.xlu0 %720
    %v722 = vrcp.pop %v700
    %v723 = vrcp.pop %v703
    %v724 = vrcp.pop %v706
    %v725 = vrcp.pop %v709
    %v726 = vrcp.pop %v712
    %v727 = vrcp.pop %v715
    %v728 = vrcp.pop %v718
    %v729 = vrcp.pop %v721
    %v730 = vmul.f32 %v683, %v722
    %v731 = vmul.f32 %v685, %v723
    %v732 = vmul.f32 %v687, %v724
    %v733 = vmul.f32 %v689, %v725
    %v734 = vmul.f32 %v691, %v726
    %v735 = vmul.f32 %v693, %v727
    %v736 = vmul.f32 %v695, %v728
    %v737 = vmul.f32 %v697, %v729
    %738 = vrot.lane.b32.xlu0 %v242, 56
    %v739 = vpop.permute.xlu0 %738
    %740 = vrot.lane.b32.xlu0 %v245, 56
    %v741 = vpop.permute.xlu0 %740
    %742 = vrot.lane.b32.xlu0 %v248, 56
    %v743 = vpop.permute.xlu0 %742
    %744 = vrot.lane.b32.xlu0 %v251, 56
    %v745 = vpop.permute.xlu0 %744
    %746 = vrot.lane.b32.xlu0 %v254, 56
    %v747 = vpop.permute.xlu0 %746
    %748 = vrot.lane.b32.xlu0 %v257, 56
    %v749 = vpop.permute.xlu0 %748
    %750 = vrot.lane.b32.xlu0 %v260, 56
    %v751 = vpop.permute.xlu0 %750
    %752 = vrot.lane.b32.xlu0 %v263, 56
    %v753 = vpop.permute.xlu0 %752
    %v763 = vsel %vm367, %v730, 0
    %v766 = vsel %vm367, %v731, 0
    %v769 = vsel %vm367, %v732, 0
    %v772 = vsel %vm367, %v733, 0
    %v775 = vsel %vm367, %v734, 0
    %v778 = vsel %vm367, %v735, 0
    %v781 = vsel %vm367, %v736, 0
    %v784 = vsel %vm367, %v737, 0
    %786 = vmatpush.msra.mxu0 0.0
    %787 = vmatpush.msra.mxu0 0.0
    %788 = vmatpush.msra.mxu0 0.0
    %789 = vmatpush.msra.mxu0 0.0
    %790 = vmatpush.msra.mxu0 0.0
    %791 = vmatpush.msra.mxu0 0.0
    %792 = vmatpush.msra.mxu0 0.0
    %793 = vmatpush.msra.mxu0 0.0
    %794 = vmatpush.msra.mxu0 %v753
    %795 = vmatpush.msra.mxu0 %v751
    %796 = vmatpush.msra.mxu0 %v749
    %797 = vmatpush.msra.mxu0 %v747
    %798 = vmatpush.msra.mxu0 %v745
    %799 = vmatpush.msra.mxu0 %v743
    %800 = vmatpush.msra.mxu0 %v741
    %801 = vmatpush.msra.mxu0 %v739
    %802 = vmatmul.f32.gmra.mxu0 %v763
    %v803 = vpop.f32.mrf.mxu0
    %v804 = vadd.f32 0.0, %v803
    %805 = vmatmul.f32.gmra.mxu0 %v766
    %v806 = vpop.f32.mrf.mxu0
    %v807 = vadd.f32 0.0, %v806
    %808 = vmatmul.f32.gmra.mxu0 %v769
    %v809 = vpop.f32.mrf.mxu0
    %v810 = vadd.f32 0.0, %v809
    %811 = vmatmul.f32.gmra.mxu0 %v772
    %v812 = vpop.f32.mrf.mxu0
    %v813 = vadd.f32 0.0, %v812
    %814 = vmatmul.f32.gmra.mxu0 %v775
    %v815 = vpop.f32.mrf.mxu0
    %v816 = vadd.f32 0.0, %v815
    %817 = vmatmul.f32.gmra.mxu0 %v778
    %v818 = vpop.f32.mrf.mxu0
    %v819 = vadd.f32 0.0, %v818
    %820 = vmatmul.f32.gmra.mxu0 %v781
    %v821 = vpop.f32.mrf.mxu0
    %v822 = vadd.f32 0.0, %v821
    %823 = vmatmul.f32.gmra.mxu0 %v784
    %v824 = vpop.f32.mrf.mxu0
    %v825 = vadd.f32 0.0, %v824
    %826 = vdwg.mxu0
    %v828 = vsel %vm293, %v804, 0
    %v831 = vsel %vm293, %v807, 0
    %v834 = vsel %vm293, %v810, 0
    %v837 = vsel %vm293, %v813, 0
    %v840 = vsel %vm293, %v816, 0
    %v843 = vsel %vm293, %v819, 0
    %v846 = vsel %vm293, %v822, 0
    %v849 = vsel %vm293, %v825, 0
    %851 = vmatpush.msra.mxu0 0.0
    %852 = vmatpush.msra.mxu0 0.0
    %853 = vmatpush.msra.mxu0 0.0
    %854 = vmatpush.msra.mxu0 0.0
    %855 = vmatpush.msra.mxu0 0.0
    %856 = vmatpush.msra.mxu0 0.0
    %857 = vmatpush.msra.mxu0 0.0
    %858 = vmatpush.msra.mxu0 0.0
    %859 = vmatpush.msra.mxu0 0.0
    %860 = vmatpush.msra.mxu0 0.0
    %861 = vmatpush.msra.mxu0 0.0
    %862 = vmatpush.msra.mxu0 0.0
    %863 = vmatpush.msra.mxu0 0.0
    %864 = vmatpush.msra.mxu0 0.0
    %865 = vmatpush.msra.mxu0 0.0
    %866 = vmatpush.msra.mxu0 %v266
    %867 = vmatmul.f32.gmra.mxu0 %v828
    %v868 = vpop.f32.mrf.mxu0
    %v869 = vadd.f32 0.0, %v868
    %870 = vmatmul.f32.gmra.mxu0 %v831
    %v871 = vpop.f32.mrf.mxu0
    %v872 = vadd.f32 0.0, %v871
    %873 = vmatmul.f32.gmra.mxu0 %v834
    %v874 = vpop.f32.mrf.mxu0
    %v875 = vadd.f32 0.0, %v874
    %876 = vmatmul.f32.gmra.mxu0 %v837
    %v877 = vpop.f32.mrf.mxu0
    %v878 = vadd.f32 0.0, %v877
    %879 = vmatmul.f32.gmra.mxu0 %v840
    %v880 = vpop.f32.mrf.mxu0
    %v881 = vadd.f32 0.0, %v880
    %882 = vmatmul.f32.gmra.mxu0 %v843
    %v883 = vpop.f32.mrf.mxu0
    %v884 = vadd.f32 0.0, %v883
    %885 = vmatmul.f32.gmra.mxu0 %v846
    %v886 = vpop.f32.mrf.mxu0
    %v887 = vadd.f32 0.0, %v886
    %888 = vmatmul.f32.gmra.mxu0 %v849
    %v889 = vpop.f32.mrf.mxu0
    %v890 = vadd.f32 0.0, %v889
    %891 = vdwg.mxu0
    %v893 = vsel %vm293, %v522, 0
    %v896 = vsel %vm293, %v525, 0
    %v899 = vsel %vm293, %v528, 0
    %v902 = vsel %vm293, %v531, 0
    %v905 = vsel %vm293, %v534, 0
    %v908 = vsel %vm293, %v537, 0
    %v911 = vsel %vm293, %v540, 0
    %v914 = vsel %vm293, %v543, 0
    %916 = vmatpush.msra.mxu0 0.0
    %917 = vmatpush.msra.mxu0 0.0
    %918 = vmatpush.msra.mxu0 0.0
    %919 = vmatpush.msra.mxu0 0.0
    %920 = vmatpush.msra.mxu0 0.0
    %921 = vmatpush.msra.mxu0 0.0
    %922 = vmatpush.msra.mxu0 0.0
    %923 = vmatpush.msra.mxu0 0.0
    %924 = vmatpush.msra.mxu0 0.0
    %925 = vmatpush.msra.mxu0 0.0
    %926 = vmatpush.msra.mxu0 0.0
    %927 = vmatpush.msra.mxu0 0.0
    %928 = vmatpush.msra.mxu0 0.0
    %929 = vmatpush.msra.mxu0 0.0
    %930 = vmatpush.msra.mxu0 0.0
    %931 = vmatpush.msra.mxu0 %v265
    %932 = vmatmul.f32.gmra.mxu0 %v893
    %v933 = vpop.f32.mrf.mxu0
    %v934 = vadd.f32 %v869, %v933
    %935 = vmatmul.f32.gmra.mxu0 %v896
    %v936 = vpop.f32.mrf.mxu0
    %v937 = vadd.f32 %v872, %v936
    %938 = vmatmul.f32.gmra.mxu0 %v899
    %v939 = vpop.f32.mrf.mxu0
    %v940 = vadd.f32 %v875, %v939
    %941 = vmatmul.f32.gmra.mxu0 %v902
    %v942 = vpop.f32.mrf.mxu0
    %v943 = vadd.f32 %v878, %v942
    %944 = vmatmul.f32.gmra.mxu0 %v905
    %v945 = vpop.f32.mrf.mxu0
    %v946 = vadd.f32 %v881, %v945
    %947 = vmatmul.f32.gmra.mxu0 %v908
    %v948 = vpop.f32.mrf.mxu0
    %v949 = vadd.f32 %v884, %v948
    %950 = vmatmul.f32.gmra.mxu0 %v911
    %v951 = vpop.f32.mrf.mxu0
    %v952 = vadd.f32 %v887, %v951
    %953 = vmatmul.f32.gmra.mxu0 %v914
    %v954 = vpop.f32.mrf.mxu0
    %v955 = vadd.f32 %v890, %v954
    %956 = vdwg.mxu0
    %957 = vrot.lane.b32.xlu0 %v242, 112
    %v958 = vpop.permute.xlu0 %957
    %959 = vrot.lane.b32.xlu0 %v245, 112
    %v960 = vpop.permute.xlu0 %959
    %961 = vrot.lane.b32.xlu0 %v248, 112
    %v962 = vpop.permute.xlu0 %961
    %963 = vrot.lane.b32.xlu0 %v251, 112
    %v964 = vpop.permute.xlu0 %963
    %965 = vrot.lane.b32.xlu0 %v254, 112
    %v966 = vpop.permute.xlu0 %965
    %967 = vrot.lane.b32.xlu0 %v257, 112
    %v968 = vpop.permute.xlu0 %967
    %969 = vrot.lane.b32.xlu0 %v260, 112
    %v970 = vpop.permute.xlu0 %969
    %971 = vrot.lane.b32.xlu0 %v263, 112
    %v972 = vpop.permute.xlu0 %971
    %973 = vrot.lane.b32.xlu0 %v242, 80
    %v974 = vpop.permute.xlu0 %973
    %975 = vrot.lane.b32.xlu0 %v245, 80
    %v976 = vpop.permute.xlu0 %975
    %977 = vrot.lane.b32.xlu0 %v248, 80
    %v978 = vpop.permute.xlu0 %977
    %979 = vrot.lane.b32.xlu0 %v251, 80
    %v980 = vpop.permute.xlu0 %979
    %981 = vrot.lane.b32.xlu0 %v254, 80
    %v982 = vpop.permute.xlu0 %981
    %983 = vrot.lane.b32.xlu0 %v257, 80
    %v984 = vpop.permute.xlu0 %983
    %985 = vrot.lane.b32.xlu0 %v260, 80
    %v986 = vpop.permute.xlu0 %985
    %987 = vrot.lane.b32.xlu0 %v263, 80
    %v988 = vpop.permute.xlu0 %987
    %v989 = vsel %vm293, %v958, 0
    %v991 = vsel %vm293, %v960, 0
    %v993 = vsel %vm293, %v962, 0
    %v995 = vsel %vm293, %v964, 0
    %v997 = vsel %vm293, %v966, 0
    %v999 = vsel %vm293, %v968, 0
    %v1001 = vsel %vm293, %v970, 0
    %v1003 = vsel %vm293, %v972, 0
    %v1005 = vsel %vm293, %v974, 0
    %v1007 = vsel %vm293, %v976, 0
    %v1009 = vsel %vm293, %v978, 0
    %v1011 = vsel %vm293, %v980, 0
    %v1013 = vsel %vm293, %v982, 0
    %v1015 = vsel %vm293, %v984, 0
    %v1017 = vsel %vm293, %v986, 0
    %v1019 = vsel %vm293, %v988, 0
    %1021 = vmatpush.xpose.msra.mxu0 0.0
    %1022 = vmatpush.xpose.msra.mxu0 0.0
    %1023 = vmatpush.xpose.msra.mxu0 0.0
    %1024 = vmatpush.xpose.msra.mxu0 0.0
    %1025 = vmatpush.xpose.msra.mxu0 0.0
    %1026 = vmatpush.xpose.msra.mxu0 0.0
    %1027 = vmatpush.xpose.msra.mxu0 0.0
    %1028 = vmatpush.xpose.msra.mxu0 0.0
    %1029 = vmatpush.xpose.msra.mxu0 %v1019
    %1030 = vmatpush.xpose.msra.mxu0 %v1017
    %1031 = vmatpush.xpose.msra.mxu0 %v1015
    %1032 = vmatpush.xpose.msra.mxu0 %v1013
    %1033 = vmatpush.xpose.msra.mxu0 %v1011
    %1034 = vmatpush.xpose.msra.mxu0 %v1009
    %1035 = vmatpush.xpose.msra.mxu0 %v1007
    %1036 = vmatpush.xpose.msra.mxu0 %v1005
    %1037 = vmatmul.f32.gmra.mxu0 %v989
    %v1038 = vpop.f32.mrf.mxu0
    %v1039 = vadd.f32 %v175, %v1038
    %1040 = vmatmul.f32.gmra.mxu0 %v991
    %v1041 = vpop.f32.mrf.mxu0
    %v1042 = vadd.f32 %v176, %v1041
    %1043 = vmatmul.f32.gmra.mxu0 %v993
    %v1044 = vpop.f32.mrf.mxu0
    %v1045 = vadd.f32 %v177, %v1044
    %1046 = vmatmul.f32.gmra.mxu0 %v995
    %v1047 = vpop.f32.mrf.mxu0
    %v1048 = vadd.f32 %v178, %v1047
    %1049 = vmatmul.f32.gmra.mxu0 %v997
    %v1050 = vpop.f32.mrf.mxu0
    %v1051 = vadd.f32 %v179, %v1050
    %1052 = vmatmul.f32.gmra.mxu0 %v999
    %v1053 = vpop.f32.mrf.mxu0
    %v1054 = vadd.f32 %v180, %v1053
    %1055 = vmatmul.f32.gmra.mxu0 %v1001
    %v1056 = vpop.f32.mrf.mxu0
    %v1057 = vadd.f32 %v181, %v1056
    %1058 = vmatmul.f32.gmra.mxu0 %v1003
    %v1059 = vpop.f32.mrf.mxu0
    %v1060 = vadd.f32 %v182, %v1059
    %1061 = vdwg.mxu0
    %v1062 = vsel %vm367, %v1039, -inf
    %1063 = vmax.xlane.f32.xlu0 %v1062
    %v1064 = vpop.xlane.xlu0 %1063
    %v1065 = vsel %vm367, %v1042, -inf
    %1066 = vmax.xlane.f32.xlu0 %v1065
    %v1067 = vpop.xlane.xlu0 %1066
    %v1068 = vsel %vm367, %v1045, -inf
    %1069 = vmax.xlane.f32.xlu0 %v1068
    %v1070 = vpop.xlane.xlu0 %1069
    %v1071 = vsel %vm367, %v1048, -inf
    %1072 = vmax.xlane.f32.xlu0 %v1071
    %v1073 = vpop.xlane.xlu0 %1072
    %v1074 = vsel %vm367, %v1051, -inf
    %1075 = vmax.xlane.f32.xlu0 %v1074
    %v1076 = vpop.xlane.xlu0 %1075
    %v1077 = vsel %vm367, %v1054, -inf
    %1078 = vmax.xlane.f32.xlu0 %v1077
    %v1079 = vpop.xlane.xlu0 %1078
    %v1080 = vsel %vm367, %v1057, -inf
    %1081 = vmax.xlane.f32.xlu0 %v1080
    %v1082 = vpop.xlane.xlu0 %1081
    %v1083 = vsel %vm367, %v1060, -inf
    %1084 = vmax.xlane.f32.xlu0 %v1083
    %v1085 = vpop.xlane.xlu0 %1084
    %v1086 = vsub.f32 %v1039, %v1064
    %v1087 = vsub.f32 %v1042, %v1067
    %v1088 = vsub.f32 %v1045, %v1070
    %v1089 = vsub.f32 %v1048, %v1073
    %v1090 = vsub.f32 %v1051, %v1076
    %v1091 = vsub.f32 %v1054, %v1079
    %v1092 = vsub.f32 %v1057, %v1082
    %v1093 = vsub.f32 %v1060, %v1085
    %v1094 = vmul.f32 %v1086, 1.442695
    %v1095 = vpow.pop %v1094
    %v1096 = vmul.f32 %v1087, 1.442695
    %v1097 = vpow.pop %v1096
    %v1098 = vmul.f32 %v1088, 1.442695
    %v1099 = vpow.pop %v1098
    %v1100 = vmul.f32 %v1089, 1.442695
    %v1101 = vpow.pop %v1100
    %v1102 = vmul.f32 %v1090, 1.442695
    %v1103 = vpow.pop %v1102
    %v1104 = vmul.f32 %v1091, 1.442695
    %v1105 = vpow.pop %v1104
    %v1106 = vmul.f32 %v1092, 1.442695
    %v1107 = vpow.pop %v1106
    %v1108 = vmul.f32 %v1093, 1.442695
    %v1109 = vpow.pop %v1108
    %v1110 = vsel %vm367, %v1095, 0.0
    %1111 = vadd.xlane.f32.xlu0 %v1110
    %v1112 = vpop.xlane.xlu0 %1111
    %v1113 = vsel %vm367, %v1097, 0.0
    %1114 = vadd.xlane.f32.xlu0 %v1113
    %v1115 = vpop.xlane.xlu0 %1114
    %v1116 = vsel %vm367, %v1099, 0.0
    %1117 = vadd.xlane.f32.xlu0 %v1116
    %v1118 = vpop.xlane.xlu0 %1117
    %v1119 = vsel %vm367, %v1101, 0.0
    %1120 = vadd.xlane.f32.xlu0 %v1119
    %v1121 = vpop.xlane.xlu0 %1120
    %v1122 = vsel %vm367, %v1103, 0.0
    %1123 = vadd.xlane.f32.xlu0 %v1122
    %v1124 = vpop.xlane.xlu0 %1123
    %v1125 = vsel %vm367, %v1105, 0.0
    %1126 = vadd.xlane.f32.xlu0 %v1125
    %v1127 = vpop.xlane.xlu0 %1126
    %v1128 = vsel %vm367, %v1107, 0.0
    %1129 = vadd.xlane.f32.xlu0 %v1128
    %v1130 = vpop.xlane.xlu0 %1129
    %v1131 = vsel %vm367, %v1109, 0.0
    %1132 = vadd.xlane.f32.xlu0 %v1131
    %v1133 = vpop.xlane.xlu0 %1132
    %v1134 = vrcp.pop %v1112
    %v1135 = vrcp.pop %v1115
    %v1136 = vrcp.pop %v1118
    %v1137 = vrcp.pop %v1121
    %v1138 = vrcp.pop %v1124
    %v1139 = vrcp.pop %v1127
    %v1140 = vrcp.pop %v1130
    %v1141 = vrcp.pop %v1133
    %v1142 = vmul.f32 %v1095, %v1134
    %v1143 = vmul.f32 %v1097, %v1135
    %v1144 = vmul.f32 %v1099, %v1136
    %v1145 = vmul.f32 %v1101, %v1137
    %v1146 = vmul.f32 %v1103, %v1138
    %v1147 = vmul.f32 %v1105, %v1139
    %v1148 = vmul.f32 %v1107, %v1140
    %v1149 = vmul.f32 %v1109, %v1141
    %1150 = vrot.lane.b32.xlu0 %v242, 48
    %v1151 = vpop.permute.xlu0 %1150
    %1152 = vrot.lane.b32.xlu0 %v245, 48
    %v1153 = vpop.permute.xlu0 %1152
    %1154 = vrot.lane.b32.xlu0 %v248, 48
    %v1155 = vpop.permute.xlu0 %1154
    %1156 = vrot.lane.b32.xlu0 %v251, 48
    %v1157 = vpop.permute.xlu0 %1156
    %1158 = vrot.lane.b32.xlu0 %v254, 48
    %v1159 = vpop.permute.xlu0 %1158
    %1160 = vrot.lane.b32.xlu0 %v257, 48
    %v1161 = vpop.permute.xlu0 %1160
    %1162 = vrot.lane.b32.xlu0 %v260, 48
    %v1163 = vpop.permute.xlu0 %1162
    %1164 = vrot.lane.b32.xlu0 %v263, 48
    %v1165 = vpop.permute.xlu0 %1164
    %v1175 = vsel %vm367, %v1142, 0
    %v1178 = vsel %vm367, %v1143, 0
    %v1181 = vsel %vm367, %v1144, 0
    %v1184 = vsel %vm367, %v1145, 0
    %v1187 = vsel %vm367, %v1146, 0
    %v1190 = vsel %vm367, %v1147, 0
    %v1193 = vsel %vm367, %v1148, 0
    %v1196 = vsel %vm367, %v1149, 0
    %1198 = vmatpush.msra.mxu0 0.0
    %1199 = vmatpush.msra.mxu0 0.0
    %1200 = vmatpush.msra.mxu0 0.0
    %1201 = vmatpush.msra.mxu0 0.0
    %1202 = vmatpush.msra.mxu0 0.0
    %1203 = vmatpush.msra.mxu0 0.0
    %1204 = vmatpush.msra.mxu0 0.0
    %1205 = vmatpush.msra.mxu0 0.0
    %1206 = vmatpush.msra.mxu0 %v1165
    %1207 = vmatpush.msra.mxu0 %v1163
    %1208 = vmatpush.msra.mxu0 %v1161
    %1209 = vmatpush.msra.mxu0 %v1159
    %1210 = vmatpush.msra.mxu0 %v1157
    %1211 = vmatpush.msra.mxu0 %v1155
    %1212 = vmatpush.msra.mxu0 %v1153
    %1213 = vmatpush.msra.mxu0 %v1151
    %1214 = vmatmul.f32.gmra.mxu0 %v1175
    %v1215 = vpop.f32.mrf.mxu0
    %v1216 = vadd.f32 0.0, %v1215
    %1217 = vmatmul.f32.gmra.mxu0 %v1178
    %v1218 = vpop.f32.mrf.mxu0
    %v1219 = vadd.f32 0.0, %v1218
    %1220 = vmatmul.f32.gmra.mxu0 %v1181
    %v1221 = vpop.f32.mrf.mxu0
    %v1222 = vadd.f32 0.0, %v1221
    %1223 = vmatmul.f32.gmra.mxu0 %v1184
    %v1224 = vpop.f32.mrf.mxu0
    %v1225 = vadd.f32 0.0, %v1224
    %1226 = vmatmul.f32.gmra.mxu0 %v1187
    %v1227 = vpop.f32.mrf.mxu0
    %v1228 = vadd.f32 0.0, %v1227
    %1229 = vmatmul.f32.gmra.mxu0 %v1190
    %v1230 = vpop.f32.mrf.mxu0
    %v1231 = vadd.f32 0.0, %v1230
    %1232 = vmatmul.f32.gmra.mxu0 %v1193
    %v1233 = vpop.f32.mrf.mxu0
    %v1234 = vadd.f32 0.0, %v1233
    %1235 = vmatmul.f32.gmra.mxu0 %v1196
    %v1236 = vpop.f32.mrf.mxu0
    %v1237 = vadd.f32 0.0, %v1236
    %1238 = vdwg.mxu0
    %v1240 = vsel %vm293, %v1216, 0
    %v1243 = vsel %vm293, %v1219, 0
    %v1246 = vsel %vm293, %v1222, 0
    %v1249 = vsel %vm293, %v1225, 0
    %v1252 = vsel %vm293, %v1228, 0
    %v1255 = vsel %vm293, %v1231, 0
    %v1258 = vsel %vm293, %v1234, 0
    %v1261 = vsel %vm293, %v1237, 0
    %1263 = vmatpush.msra.mxu0 0.0
    %1264 = vmatpush.msra.mxu0 0.0
    %1265 = vmatpush.msra.mxu0 0.0
    %1266 = vmatpush.msra.mxu0 0.0
    %1267 = vmatpush.msra.mxu0 0.0
    %1268 = vmatpush.msra.mxu0 0.0
    %1269 = vmatpush.msra.mxu0 0.0
    %1270 = vmatpush.msra.mxu0 0.0
    %1271 = vmatpush.msra.mxu0 0.0
    %1272 = vmatpush.msra.mxu0 0.0
    %1273 = vmatpush.msra.mxu0 0.0
    %1274 = vmatpush.msra.mxu0 0.0
    %1275 = vmatpush.msra.mxu0 0.0
    %1276 = vmatpush.msra.mxu0 0.0
    %1277 = vmatpush.msra.mxu0 0.0
    %1278 = vmatpush.msra.mxu0 %v267
    %1279 = vmatmul.f32.gmra.mxu0 %v1240
    %v1280 = vpop.f32.mrf.mxu0
    %v1281 = vadd.f32 0.0, %v1280
    %1282 = vmatmul.f32.gmra.mxu0 %v1243
    %v1283 = vpop.f32.mrf.mxu0
    %v1284 = vadd.f32 0.0, %v1283
    %1285 = vmatmul.f32.gmra.mxu0 %v1246
    %v1286 = vpop.f32.mrf.mxu0
    %v1287 = vadd.f32 0.0, %v1286
    %1288 = vmatmul.f32.gmra.mxu0 %v1249
    %v1289 = vpop.f32.mrf.mxu0
    %v1290 = vadd.f32 0.0, %v1289
    %1291 = vmatmul.f32.gmra.mxu0 %v1252
    %v1292 = vpop.f32.mrf.mxu0
    %v1293 = vadd.f32 0.0, %v1292
    %1294 = vmatmul.f32.gmra.mxu0 %v1255
    %v1295 = vpop.f32.mrf.mxu0
    %v1296 = vadd.f32 0.0, %v1295
    %1297 = vmatmul.f32.gmra.mxu0 %v1258
    %v1298 = vpop.f32.mrf.mxu0
    %v1299 = vadd.f32 0.0, %v1298
    %1300 = vmatmul.f32.gmra.mxu0 %v1261
    %v1301 = vpop.f32.mrf.mxu0
    %v1302 = vadd.f32 0.0, %v1301
    %1303 = vdwg.mxu0
    %v1304 = vadd.f32 %v934, %v1281
    %v1305 = vadd.f32 %v937, %v1284
    %v1306 = vadd.f32 %v940, %v1287
    %v1307 = vadd.f32 %v943, %v1290
    %v1308 = vadd.f32 %v946, %v1293
    %v1309 = vadd.f32 %v949, %v1296
    %v1310 = vadd.f32 %v952, %v1299
    %v1311 = vadd.f32 %v955, %v1302
    %1312 = vrot.lane.b32.xlu0 %v242, 104
    %v1313 = vpop.permute.xlu0 %1312
    %1314 = vrot.lane.b32.xlu0 %v245, 104
    %v1315 = vpop.permute.xlu0 %1314
    %1316 = vrot.lane.b32.xlu0 %v248, 104
    %v1317 = vpop.permute.xlu0 %1316
    %1318 = vrot.lane.b32.xlu0 %v251, 104
    %v1319 = vpop.permute.xlu0 %1318
    %1320 = vrot.lane.b32.xlu0 %v254, 104
    %v1321 = vpop.permute.xlu0 %1320
    %1322 = vrot.lane.b32.xlu0 %v257, 104
    %v1323 = vpop.permute.xlu0 %1322
    %1324 = vrot.lane.b32.xlu0 %v260, 104
    %v1325 = vpop.permute.xlu0 %1324
    %1326 = vrot.lane.b32.xlu0 %v263, 104
    %v1327 = vpop.permute.xlu0 %1326
    %1328 = vrot.lane.b32.xlu0 %v242, 72
    %v1329 = vpop.permute.xlu0 %1328
    %1330 = vrot.lane.b32.xlu0 %v245, 72
    %v1331 = vpop.permute.xlu0 %1330
    %1332 = vrot.lane.b32.xlu0 %v248, 72
    %v1333 = vpop.permute.xlu0 %1332
    %1334 = vrot.lane.b32.xlu0 %v251, 72
    %v1335 = vpop.permute.xlu0 %1334
    %1336 = vrot.lane.b32.xlu0 %v254, 72
    %v1337 = vpop.permute.xlu0 %1336
    %1338 = vrot.lane.b32.xlu0 %v257, 72
    %v1339 = vpop.permute.xlu0 %1338
    %1340 = vrot.lane.b32.xlu0 %v260, 72
    %v1341 = vpop.permute.xlu0 %1340
    %1342 = vrot.lane.b32.xlu0 %v263, 72
    %v1343 = vpop.permute.xlu0 %1342
    %v1344 = vsel %vm293, %v1313, 0
    %v1346 = vsel %vm293, %v1315, 0
    %v1348 = vsel %vm293, %v1317, 0
    %v1350 = vsel %vm293, %v1319, 0
    %v1352 = vsel %vm293, %v1321, 0
    %v1354 = vsel %vm293, %v1323, 0
    %v1356 = vsel %vm293, %v1325, 0
    %v1358 = vsel %vm293, %v1327, 0
    %v1360 = vsel %vm293, %v1329, 0
    %v1362 = vsel %vm293, %v1331, 0
    %v1364 = vsel %vm293, %v1333, 0
    %v1366 = vsel %vm293, %v1335, 0
    %v1368 = vsel %vm293, %v1337, 0
    %v1370 = vsel %vm293, %v1339, 0
    %v1372 = vsel %vm293, %v1341, 0
    %v1374 = vsel %vm293, %v1343, 0
    %1376 = vmatpush.xpose.msra.mxu0 0.0
    %1377 = vmatpush.xpose.msra.mxu0 0.0
    %1378 = vmatpush.xpose.msra.mxu0 0.0
    %1379 = vmatpush.xpose.msra.mxu0 0.0
    %1380 = vmatpush.xpose.msra.mxu0 0.0
    %1381 = vmatpush.xpose.msra.mxu0 0.0
    %1382 = vmatpush.xpose.msra.mxu0 0.0
    %1383 = vmatpush.xpose.msra.mxu0 0.0
    %1384 = vmatpush.xpose.msra.mxu0 %v1374
    %1385 = vmatpush.xpose.msra.mxu0 %v1372
    %1386 = vmatpush.xpose.msra.mxu0 %v1370
    %1387 = vmatpush.xpose.msra.mxu0 %v1368
    %1388 = vmatpush.xpose.msra.mxu0 %v1366
    %1389 = vmatpush.xpose.msra.mxu0 %v1364
    %1390 = vmatpush.xpose.msra.mxu0 %v1362
    %1391 = vmatpush.xpose.msra.mxu0 %v1360
    %1392 = vmatmul.f32.gmra.mxu0 %v1344
    %v1393 = vpop.f32.mrf.mxu0
    %v1394 = vadd.f32 %v175, %v1393
    %1395 = vmatmul.f32.gmra.mxu0 %v1346
    %v1396 = vpop.f32.mrf.mxu0
    %v1397 = vadd.f32 %v176, %v1396
    %1398 = vmatmul.f32.gmra.mxu0 %v1348
    %v1399 = vpop.f32.mrf.mxu0
    %v1400 = vadd.f32 %v177, %v1399
    %1401 = vmatmul.f32.gmra.mxu0 %v1350
    %v1402 = vpop.f32.mrf.mxu0
    %v1403 = vadd.f32 %v178, %v1402
    %1404 = vmatmul.f32.gmra.mxu0 %v1352
    %v1405 = vpop.f32.mrf.mxu0
    %v1406 = vadd.f32 %v179, %v1405
    %1407 = vmatmul.f32.gmra.mxu0 %v1354
    %v1408 = vpop.f32.mrf.mxu0
    %v1409 = vadd.f32 %v180, %v1408
    %1410 = vmatmul.f32.gmra.mxu0 %v1356
    %v1411 = vpop.f32.mrf.mxu0
    %v1412 = vadd.f32 %v181, %v1411
    %1413 = vmatmul.f32.gmra.mxu0 %v1358
    %v1414 = vpop.f32.mrf.mxu0
    %v1415 = vadd.f32 %v182, %v1414
    %1416 = vdwg.mxu0
    %v1417 = vsel %vm367, %v1394, -inf
    %1418 = vmax.xlane.f32.xlu0 %v1417
    %v1419 = vpop.xlane.xlu0 %1418
    %v1420 = vsel %vm367, %v1397, -inf
    %1421 = vmax.xlane.f32.xlu0 %v1420
    %v1422 = vpop.xlane.xlu0 %1421
    %v1423 = vsel %vm367, %v1400, -inf
    %1424 = vmax.xlane.f32.xlu0 %v1423
    %v1425 = vpop.xlane.xlu0 %1424
    %v1426 = vsel %vm367, %v1403, -inf
    %1427 = vmax.xlane.f32.xlu0 %v1426
    %v1428 = vpop.xlane.xlu0 %1427
    %v1429 = vsel %vm367, %v1406, -inf
    %1430 = vmax.xlane.f32.xlu0 %v1429
    %v1431 = vpop.xlane.xlu0 %1430
    %v1432 = vsel %vm367, %v1409, -inf
    %1433 = vmax.xlane.f32.xlu0 %v1432
    %v1434 = vpop.xlane.xlu0 %1433
    %v1435 = vsel %vm367, %v1412, -inf
    %1436 = vmax.xlane.f32.xlu0 %v1435
    %v1437 = vpop.xlane.xlu0 %1436
    %v1438 = vsel %vm367, %v1415, -inf
    %1439 = vmax.xlane.f32.xlu0 %v1438
    %v1440 = vpop.xlane.xlu0 %1439
    %v1441 = vsub.f32 %v1394, %v1419
    %v1442 = vsub.f32 %v1397, %v1422
    %v1443 = vsub.f32 %v1400, %v1425
    %v1444 = vsub.f32 %v1403, %v1428
    %v1445 = vsub.f32 %v1406, %v1431
    %v1446 = vsub.f32 %v1409, %v1434
    %v1447 = vsub.f32 %v1412, %v1437
    %v1448 = vsub.f32 %v1415, %v1440
    %v1449 = vmul.f32 %v1441, 1.442695
    %v1450 = vpow.pop %v1449
    %v1451 = vmul.f32 %v1442, 1.442695
    %v1452 = vpow.pop %v1451
    %v1453 = vmul.f32 %v1443, 1.442695
    %v1454 = vpow.pop %v1453
    %v1455 = vmul.f32 %v1444, 1.442695
    %v1456 = vpow.pop %v1455
    %v1457 = vmul.f32 %v1445, 1.442695
    %v1458 = vpow.pop %v1457
    %v1459 = vmul.f32 %v1446, 1.442695
    %v1460 = vpow.pop %v1459
    %v1461 = vmul.f32 %v1447, 1.442695
    %v1462 = vpow.pop %v1461
    %v1463 = vmul.f32 %v1448, 1.442695
    %v1464 = vpow.pop %v1463
    %v1465 = vsel %vm367, %v1450, 0.0
    %1466 = vadd.xlane.f32.xlu0 %v1465
    %v1467 = vpop.xlane.xlu0 %1466
    %v1468 = vsel %vm367, %v1452, 0.0
    %1469 = vadd.xlane.f32.xlu0 %v1468
    %v1470 = vpop.xlane.xlu0 %1469
    %v1471 = vsel %vm367, %v1454, 0.0
    %1472 = vadd.xlane.f32.xlu0 %v1471
    %v1473 = vpop.xlane.xlu0 %1472
    %v1474 = vsel %vm367, %v1456, 0.0
    %1475 = vadd.xlane.f32.xlu0 %v1474
    %v1476 = vpop.xlane.xlu0 %1475
    %v1477 = vsel %vm367, %v1458, 0.0
    %1478 = vadd.xlane.f32.xlu0 %v1477
    %v1479 = vpop.xlane.xlu0 %1478
    %v1480 = vsel %vm367, %v1460, 0.0
    %1481 = vadd.xlane.f32.xlu0 %v1480
    %v1482 = vpop.xlane.xlu0 %1481
    %v1483 = vsel %vm367, %v1462, 0.0
    %1484 = vadd.xlane.f32.xlu0 %v1483
    %v1485 = vpop.xlane.xlu0 %1484
    %v1486 = vsel %vm367, %v1464, 0.0
    %1487 = vadd.xlane.f32.xlu0 %v1486
    %v1488 = vpop.xlane.xlu0 %1487
    %v1489 = vrcp.pop %v1467
    %v1490 = vrcp.pop %v1470
    %v1491 = vrcp.pop %v1473
    %v1492 = vrcp.pop %v1476
    %v1493 = vrcp.pop %v1479
    %v1494 = vrcp.pop %v1482
    %v1495 = vrcp.pop %v1485
    %v1496 = vrcp.pop %v1488
    %v1497 = vmul.f32 %v1450, %v1489
    %v1498 = vmul.f32 %v1452, %v1490
    %v1499 = vmul.f32 %v1454, %v1491
    %v1500 = vmul.f32 %v1456, %v1492
    %v1501 = vmul.f32 %v1458, %v1493
    %v1502 = vmul.f32 %v1460, %v1494
    %v1503 = vmul.f32 %v1462, %v1495
    %v1504 = vmul.f32 %v1464, %v1496
    %1505 = vrot.lane.b32.xlu0 %v242, 40
    %v1506 = vpop.permute.xlu0 %1505
    %1507 = vrot.lane.b32.xlu0 %v245, 40
    %v1508 = vpop.permute.xlu0 %1507
    %1509 = vrot.lane.b32.xlu0 %v248, 40
    %v1510 = vpop.permute.xlu0 %1509
    %1511 = vrot.lane.b32.xlu0 %v251, 40
    %v1512 = vpop.permute.xlu0 %1511
    %1513 = vrot.lane.b32.xlu0 %v254, 40
    %v1514 = vpop.permute.xlu0 %1513
    %1515 = vrot.lane.b32.xlu0 %v257, 40
    %v1516 = vpop.permute.xlu0 %1515
    %1517 = vrot.lane.b32.xlu0 %v260, 40
    %v1518 = vpop.permute.xlu0 %1517
    %1519 = vrot.lane.b32.xlu0 %v263, 40
    %v1520 = vpop.permute.xlu0 %1519
    %v1530 = vsel %vm367, %v1497, 0
    %v1533 = vsel %vm367, %v1498, 0
    %v1536 = vsel %vm367, %v1499, 0
    %v1539 = vsel %vm367, %v1500, 0
    %v1542 = vsel %vm367, %v1501, 0
    %v1545 = vsel %vm367, %v1502, 0
    %v1548 = vsel %vm367, %v1503, 0
    %v1551 = vsel %vm367, %v1504, 0
    %1553 = vmatpush.msra.mxu0 0.0
    %1554 = vmatpush.msra.mxu0 0.0
    %1555 = vmatpush.msra.mxu0 0.0
    %1556 = vmatpush.msra.mxu0 0.0
    %1557 = vmatpush.msra.mxu0 0.0
    %1558 = vmatpush.msra.mxu0 0.0
    %1559 = vmatpush.msra.mxu0 0.0
    %1560 = vmatpush.msra.mxu0 0.0
    %1561 = vmatpush.msra.mxu0 %v1520
    %1562 = vmatpush.msra.mxu0 %v1518
    %1563 = vmatpush.msra.mxu0 %v1516
    %1564 = vmatpush.msra.mxu0 %v1514
    %1565 = vmatpush.msra.mxu0 %v1512
    %1566 = vmatpush.msra.mxu0 %v1510
    %1567 = vmatpush.msra.mxu0 %v1508
    %1568 = vmatpush.msra.mxu0 %v1506
    %1569 = vmatmul.f32.gmra.mxu0 %v1530
    %v1570 = vpop.f32.mrf.mxu0
    %v1571 = vadd.f32 0.0, %v1570
    %1572 = vmatmul.f32.gmra.mxu0 %v1533
    %v1573 = vpop.f32.mrf.mxu0
    %v1574 = vadd.f32 0.0, %v1573
    %1575 = vmatmul.f32.gmra.mxu0 %v1536
    %v1576 = vpop.f32.mrf.mxu0
    %v1577 = vadd.f32 0.0, %v1576
    %1578 = vmatmul.f32.gmra.mxu0 %v1539
    %v1579 = vpop.f32.mrf.mxu0
    %v1580 = vadd.f32 0.0, %v1579
    %1581 = vmatmul.f32.gmra.mxu0 %v1542
    %v1582 = vpop.f32.mrf.mxu0
    %v1583 = vadd.f32 0.0, %v1582
    %1584 = vmatmul.f32.gmra.mxu0 %v1545
    %v1585 = vpop.f32.mrf.mxu0
    %v1586 = vadd.f32 0.0, %v1585
    %1587 = vmatmul.f32.gmra.mxu0 %v1548
    %v1588 = vpop.f32.mrf.mxu0
    %v1589 = vadd.f32 0.0, %v1588
    %1590 = vmatmul.f32.gmra.mxu0 %v1551
    %v1591 = vpop.f32.mrf.mxu0
    %v1592 = vadd.f32 0.0, %v1591
    %1593 = vdwg.mxu0
    %v1595 = vsel %vm293, %v1571, 0
    %v1598 = vsel %vm293, %v1574, 0
    %v1601 = vsel %vm293, %v1577, 0
    %v1604 = vsel %vm293, %v1580, 0
    %v1607 = vsel %vm293, %v1583, 0
    %v1610 = vsel %vm293, %v1586, 0
    %v1613 = vsel %vm293, %v1589, 0
    %v1616 = vsel %vm293, %v1592, 0
    %1618 = vmatpush.msra.mxu0 0.0
    %1619 = vmatpush.msra.mxu0 0.0
    %1620 = vmatpush.msra.mxu0 0.0
    %1621 = vmatpush.msra.mxu0 0.0
    %1622 = vmatpush.msra.mxu0 0.0
    %1623 = vmatpush.msra.mxu0 0.0
    %1624 = vmatpush.msra.mxu0 0.0
    %1625 = vmatpush.msra.mxu0 0.0
    %1626 = vmatpush.msra.mxu0 0.0
    %1627 = vmatpush.msra.mxu0 0.0
    %1628 = vmatpush.msra.mxu0 0.0
    %1629 = vmatpush.msra.mxu0 0.0
    %1630 = vmatpush.msra.mxu0 0.0
    %1631 = vmatpush.msra.mxu0 0.0
    %1632 = vmatpush.msra.mxu0 0.0
    %1633 = vmatpush.msra.mxu0 %v268
    %1634 = vmatmul.f32.gmra.mxu0 %v1595
    %v1635 = vpop.f32.mrf.mxu0
    %v1636 = vadd.f32 0.0, %v1635
    %1637 = vmatmul.f32.gmra.mxu0 %v1598
    %v1638 = vpop.f32.mrf.mxu0
    %v1639 = vadd.f32 0.0, %v1638
    %1640 = vmatmul.f32.gmra.mxu0 %v1601
    %v1641 = vpop.f32.mrf.mxu0
    %v1642 = vadd.f32 0.0, %v1641
    %1643 = vmatmul.f32.gmra.mxu0 %v1604
    %v1644 = vpop.f32.mrf.mxu0
    %v1645 = vadd.f32 0.0, %v1644
    %1646 = vmatmul.f32.gmra.mxu0 %v1607
    %v1647 = vpop.f32.mrf.mxu0
    %v1648 = vadd.f32 0.0, %v1647
    %1649 = vmatmul.f32.gmra.mxu0 %v1610
    %v1650 = vpop.f32.mrf.mxu0
    %v1651 = vadd.f32 0.0, %v1650
    %1652 = vmatmul.f32.gmra.mxu0 %v1613
    %v1653 = vpop.f32.mrf.mxu0
    %v1654 = vadd.f32 0.0, %v1653
    %1655 = vmatmul.f32.gmra.mxu0 %v1616
    %v1656 = vpop.f32.mrf.mxu0
    %v1657 = vadd.f32 0.0, %v1656
    %1658 = vdwg.mxu0
    %v1659 = vadd.f32 %v1304, %v1636
    %v1660 = vadd.f32 %v1305, %v1639
    %v1661 = vadd.f32 %v1306, %v1642
    %v1662 = vadd.f32 %v1307, %v1645
    %v1663 = vadd.f32 %v1308, %v1648
    %v1664 = vadd.f32 %v1309, %v1651
    %v1665 = vadd.f32 %v1310, %v1654
    %v1666 = vadd.f32 %v1311, %v1657
    %v1667 = vld [vmem:[%s6] sm:$0x1]
    %v1669 = vperm.slane %v1667, 0
    %v1671 = vadd.f32 %v1659, %v1669
    %v1672 = vadd.f32 %v1660, %v1669
    %v1673 = vadd.f32 %v1661, %v1669
    %v1674 = vadd.f32 %v1662, %v1669
    %v1675 = vadd.f32 %v1663, %v1669
    %v1676 = vadd.f32 %v1664, %v1669
    %v1677 = vadd.f32 %v1665, %v1669
    %v1678 = vadd.f32 %v1666, %v1669
    %v1679 = vadd.f32 %v183, %v1671
    %v1680 = vadd.f32 %v184, %v1672
    %v1681 = vadd.f32 %v185, %v1673
    %v1682 = vadd.f32 %v186, %v1674
    %v1683 = vadd.f32 %v187, %v1675
    %v1684 = vadd.f32 %v188, %v1676
    %v1685 = vadd.f32 %v189, %v1677
    %v1686 = vadd.f32 %v190, %v1678
    %v1687 = vld [vmem:[#allocation4] sm:$0x1]
    %v1688 = vld [vmem:[#allocation6] sm:$0x1]
    %v1689 = vsel %vm199, %v1679, 0.0
    %1690 = vadd.xlane.f32.xlu0 %v1689
    %v1691 = vpop.xlane.xlu0 %1690
    %v1692 = vsel %vm199, %v1680, 0.0
    %1693 = vadd.xlane.f32.xlu0 %v1692
    %v1694 = vpop.xlane.xlu0 %1693
    %v1695 = vsel %vm199, %v1681, 0.0
    %1696 = vadd.xlane.f32.xlu0 %v1695
    %v1697 = vpop.xlane.xlu0 %1696
    %v1698 = vsel %vm199, %v1682, 0.0
    %1699 = vadd.xlane.f32.xlu0 %v1698
    %v1700 = vpop.xlane.xlu0 %1699
    %v1701 = vsel %vm199, %v1683, 0.0
    %1702 = vadd.xlane.f32.xlu0 %v1701
    %v1703 = vpop.xlane.xlu0 %1702
    %v1704 = vsel %vm199, %v1684, 0.0
    %1705 = vadd.xlane.f32.xlu0 %v1704
    %v1706 = vpop.xlane.xlu0 %1705
    %v1707 = vsel %vm199, %v1685, 0.0
    %1708 = vadd.xlane.f32.xlu0 %v1707
    %v1709 = vpop.xlane.xlu0 %1708
    %v1710 = vsel %vm199, %v1686, 0.0
    %1711 = vadd.xlane.f32.xlu0 %v1710
    %v1712 = vpop.xlane.xlu0 %1711
    %v1713 = vrcp.pop 32.0
    %v1714 = vmul.f32 32.0, %v1713
    %v1715 = vsub.f32 1.0, %v1714
    %v1716 = vmul.f32 %v1713, %v1715
    %v1717 = vadd.f32 %v1713, %v1716
    %vm1718 = vweird.f32 %v1713
    %v1719 = vsel %vm1718, %v1713, %v1717
    %v1720 = vmul.f32 %v1691, %v1719
    %v1721 = vmul.f32 %v1694, %v1719
    %v1722 = vmul.f32 %v1697, %v1719
    %v1723 = vmul.f32 %v1700, %v1719
    %v1724 = vmul.f32 %v1703, %v1719
    %v1725 = vmul.f32 %v1706, %v1719
    %v1726 = vmul.f32 %v1709, %v1719
    %v1727 = vmul.f32 %v1712, %v1719
    %v1728 = vsub.f32 %v1679, %v1720
    %v1729 = vsub.f32 %v1680, %v1721
    %v1730 = vsub.f32 %v1681, %v1722
    %v1731 = vsub.f32 %v1682, %v1723
    %v1732 = vsub.f32 %v1683, %v1724
    %v1733 = vsub.f32 %v1684, %v1725
    %v1734 = vsub.f32 %v1685, %v1726
    %v1735 = vsub.f32 %v1686, %v1727
    %v1736 = vmul.f32 %v1728, %v1728
    %v1737 = vmul.f32 %v1729, %v1729
    %v1738 = vmul.f32 %v1730, %v1730
    %v1739 = vmul.f32 %v1731, %v1731
    %v1740 = vmul.f32 %v1732, %v1732
    %v1741 = vmul.f32 %v1733, %v1733
    %v1742 = vmul.f32 %v1734, %v1734
    %v1743 = vmul.f32 %v1735, %v1735
    %v1744 = vsel %vm199, %v1736, 0.0
    %1745 = vadd.xlane.f32.xlu0 %v1744
    %v1746 = vpop.xlane.xlu0 %1745
    %v1747 = vsel %vm199, %v1737, 0.0
    %1748 = vadd.xlane.f32.xlu0 %v1747
    %v1749 = vpop.xlane.xlu0 %1748
    %v1750 = vsel %vm199, %v1738, 0.0
    %1751 = vadd.xlane.f32.xlu0 %v1750
    %v1752 = vpop.xlane.xlu0 %1751
    %v1753 = vsel %vm199, %v1739, 0.0
    %1754 = vadd.xlane.f32.xlu0 %v1753
    %v1755 = vpop.xlane.xlu0 %1754
    %v1756 = vsel %vm199, %v1740, 0.0
    %1757 = vadd.xlane.f32.xlu0 %v1756
    %v1758 = vpop.xlane.xlu0 %1757
    %v1759 = vsel %vm199, %v1741, 0.0
    %1760 = vadd.xlane.f32.xlu0 %v1759
    %v1761 = vpop.xlane.xlu0 %1760
    %v1762 = vsel %vm199, %v1742, 0.0
    %1763 = vadd.xlane.f32.xlu0 %v1762
    %v1764 = vpop.xlane.xlu0 %1763
    %v1765 = vsel %vm199, %v1743, 0.0
    %1766 = vadd.xlane.f32.xlu0 %v1765
    %v1767 = vpop.xlane.xlu0 %1766
    %v1768 = vmul.f32 %v1746, %v1719
    %v1769 = vmul.f32 %v1749, %v1719
    %v1770 = vmul.f32 %v1752, %v1719
    %v1771 = vmul.f32 %v1755, %v1719
    %v1772 = vmul.f32 %v1758, %v1719
    %v1773 = vmul.f32 %v1761, %v1719
    %v1774 = vmul.f32 %v1764, %v1719
    %v1775 = vmul.f32 %v1767, %v1719
    %v1776 = vadd.f32 %v1768, 1e-05
    %v1777 = vadd.f32 %v1769, 1e-05
    %v1778 = vadd.f32 %v1770, 1e-05
    %v1779 = vadd.f32 %v1771, 1e-05
    %v1780 = vadd.f32 %v1772, 1e-05
    %v1781 = vadd.f32 %v1773, 1e-05
    %v1782 = vadd.f32 %v1774, 1e-05
    %v1783 = vadd.f32 %v1775, 1e-05
    %v1784 = vrsqrt.pop %v1776
    %v1785 = vmul.f32 %v1784, %v1776
    %v1786 = vmul.f32 %v1785, %v1784
    %v1787 = vmul.f32 0.5, %v1786
    %v1788 = vsub.f32 1.5, %v1787
    %v1789 = vmul.f32 %v1784, %v1788
    %vm1790 = vweird.f32 %v1776
    %vm1791 = vweird.f32 %v1784
    %vm1792 = vmor %vm1790, %vm1791
    %v1793 = vsel %vm1792, %v1784, %v1789
    %v1794 = vrsqrt.pop %v1777
    %v1795 = vmul.f32 %v1794, %v1777
    %v1796 = vmul.f32 %v1795, %v1794
    %v1797 = vmul.f32 0.5, %v1796
    %v1798 = vsub.f32 1.5, %v1797
    %v1799 = vmul.f32 %v1794, %v1798
    %vm1800 = vweird.f32 %v1777
    %vm1801 = vweird.f32 %v1794
    %vm1802 = vmor %vm1800, %vm1801
    %v1803 = vsel %vm1802, %v1794, %v1799
    %v1804 = vrsqrt.pop %v1778
    %v1805 = vmul.f32 %v1804, %v1778
    %v1806 = vmul.f32 %v1805, %v1804
    %v1807 = vmul.f32 0.5, %v1806
    %v1808 = vsub.f32 1.5, %v1807
    %v1809 = vmul.f32 %v1804, %v1808
    %vm1810 = vweird.f32 %v1778
    %vm1811 = vweird.f32 %v1804
    %vm1812 = vmor %vm1810, %vm1811
    %v1813 = vsel %vm1812, %v1804, %v1809
    %v1814 = vrsqrt.pop %v1779
    %v1815 = vmul.f32 %v1814, %v1779
    %v1816 = vmul.f32 %v1815, %v1814
    %v1817 = vmul.f32 0.5, %v1816
    %v1818 = vsub.f32 1.5, %v1817
    %v1819 = vmul.f32 %v1814, %v1818
    %vm1820 = vweird.f32 %v1779
    %vm1821 = vweird.f32 %v1814
    %vm1822 = vmor %vm1820, %vm1821
    %v1823 = vsel %vm1822, %v1814, %v1819
    %v1824 = vrsqrt.pop %v1780
    %v1825 = vmul.f32 %v1824, %v1780
    %v1826 = vmul.f32 %v1825, %v1824
    %v1827 = vmul.f32 0.5, %v1826
    %v1828 = vsub.f32 1.5, %v1827
    %v1829 = vmul.f32 %v1824, %v1828
    %vm1830 = vweird.f32 %v1780
    %vm1831 = vweird.f32 %v1824
    %vm1832 = vmor %vm1830, %vm1831
    %v1833 = vsel %vm1832, %v1824, %v1829
    %v1834 = vrsqrt.pop %v1781
    %v1835 = vmul.f32 %v1834, %v1781
    %v1836 = vmul.f32 %v1835, %v1834
    %v1837 = vmul.f32 0.5, %v1836
    %v1838 = vsub.f32 1.5, %v1837
    %v1839 = vmul.f32 %v1834, %v1838
    %vm1840 = vweird.f32 %v1781
    %vm1841 = vweird.f32 %v1834
    %vm1842 = vmor %vm1840, %vm1841
    %v1843 = vsel %vm1842, %v1834, %v1839
    %v1844 = vrsqrt.pop %v1782
    %v1845 = vmul.f32 %v1844, %v1782
    %v1846 = vmul.f32 %v1845, %v1844
    %v1847 = vmul.f32 0.5, %v1846
    %v1848 = vsub.f32 1.5, %v1847
    %v1849 = vmul.f32 %v1844, %v1848
    %vm1850 = vweird.f32 %v1782
    %vm1851 = vweird.f32 %v1844
    %vm1852 = vmor %vm1850, %vm1851
    %v1853 = vsel %vm1852, %v1844, %v1849
    %v1854 = vrsqrt.pop %v1783
    %v1855 = vmul.f32 %v1854, %v1783
    %v1856 = vmul.f32 %v1855, %v1854
    %v1857 = vmul.f32 0.5, %v1856
    %v1858 = vsub.f32 1.5, %v1857
    %v1859 = vmul.f32 %v1854, %v1858
    %vm1860 = vweird.f32 %v1783
    %vm1861 = vweird.f32 %v1854
    %vm1862 = vmor %vm1860, %vm1861
    %v1863 = vsel %vm1862, %v1854, %v1859
    %v1864 = vmul.f32 %v1728, %v1793
    %v1865 = vmul.f32 %v1729, %v1803
    %v1866 = vmul.f32 %v1730, %v1813
    %v1867 = vmul.f32 %v1731, %v1823
    %v1868 = vmul.f32 %v1732, %v1833
    %v1869 = vmul.f32 %v1733, %v1843
    %v1870 = vmul.f32 %v1734, %v1853
    %v1871 = vmul.f32 %v1735, %v1863
    %v1873 = vperm.slane %v1687, 0
    %v1875 = vmul.f32 %v1864, %v1873
    %v1876 = vmul.f32 %v1865, %v1873
    %v1877 = vmul.f32 %v1866, %v1873
    %v1878 = vmul.f32 %v1867, %v1873
    %v1879 = vmul.f32 %v1868, %v1873
    %v1880 = vmul.f32 %v1869, %v1873
    %v1881 = vmul.f32 %v1870, %v1873
    %v1882 = vmul.f32 %v1871, %v1873
    %v1884 = vperm.slane %v1688, 0
    %v1886 = vadd.f32 %v1875, %v1884
    %v1887 = vadd.f32 %v1876, %v1884
    %v1888 = vadd.f32 %v1877, %v1884
    %v1889 = vadd.f32 %v1878, %v1884
    %v1890 = vadd.f32 %v1879, %v1884
    %v1891 = vadd.f32 %v1880, %v1884
    %v1892 = vadd.f32 %v1881, %v1884
    %v1893 = vadd.f32 %v1882, %v1884
    %v1894 = vld [vmem:[%s9] sm:$0xff]
    %v1895 = vld [vmem:[%s9 + $0x8] sm:$0xff]
    %v1896 = vld [vmem:[%s9 + $0x10] sm:$0xff]
    %v1897 = vld [vmem:[%s9 + $0x18] sm:$0xff]
    %v1898 = vld [vmem:[%s10] sm:$0x1]
    %v1900 = vperm.slane %v1898, 0
    %v1903 = vsel %vm199, %v1886, 0
    %v1906 = vsel %vm199, %v1887, 0
    %v1909 = vsel %vm199, %v1888, 0
    %v1912 = vsel %vm199, %v1889, 0
    %v1915 = vsel %vm199, %v1890, 0
    %v1918 = vsel %vm199, %v1891, 0
    %v1921 = vsel %vm199, %v1892, 0
    %v1924 = vsel %vm199, %v1893, 0
    %1926 = vmatpush.msra.mxu0 0.0
    %1927 = vmatpush.msra.mxu0 0.0
    %1928 = vmatpush.msra.mxu0 0.0
    %1929 = vmatpush.msra.mxu0 0.0
    %1930 = vmatpush.msra.mxu0 0.0
    %1931 = vmatpush.msra.mxu0 0.0
    %1932 = vmatpush.msra.mxu0 0.0
    %1933 = vmatpush.msra.mxu0 0.0
    %1934 = vmatpush.msra.mxu0 0.0
    %1935 = vmatpush.msra.mxu0 0.0
    %1936 = vmatpush.msra.mxu0 0.0
    %1937 = vmatpush.msra.mxu0 0.0
    %1938 = vmatpush.msra.mxu0 %v1897
    %1939 = vmatpush.msra.mxu0 %v1896
    %1940 = vmatpush.msra.mxu0 %v1895
    %1941 = vmatpush.msra.mxu0 %v1894
    %1942 = vmatmul.f32.gmra.mxu0 %v1903
    %v1943 = vpop.f32.mrf.mxu0
    %v1944 = vadd.f32 %v1900, %v1943
    %1945 = vmatmul.f32.gmra.mxu0 %v1906
    %v1946 = vpop.f32.mrf.mxu0
    %v1947 = vadd.f32 %v1900, %v1946
    %1948 = vmatmul.f32.gmra.mxu0 %v1909
    %v1949 = vpop.f32.mrf.mxu0
    %v1950 = vadd.f32 %v1900, %v1949
    %1951 = vmatmul.f32.gmra.mxu0 %v1912
    %v1952 = vpop.f32.mrf.mxu0
    %v1953 = vadd.f32 %v1900, %v1952
    %1954 = vmatmul.f32.gmra.mxu0 %v1915
    %v1955 = vpop.f32.mrf.mxu0
    %v1956 = vadd.f32 %v1900, %v1955
    %1957 = vmatmul.f32.gmra.mxu0 %v1918
    %v1958 = vpop.f32.mrf.mxu0
    %v1959 = vadd.f32 %v1900, %v1958
    %1960 = vmatmul.f32.gmra.mxu0 %v1921
    %v1961 = vpop.f32.mrf.mxu0
    %v1962 = vadd.f32 %v1900, %v1961
    %1963 = vmatmul.f32.gmra.mxu0 %v1924
    %v1964 = vpop.f32.mrf.mxu0
    %v1965 = vadd.f32 %v1900, %v1964
    %1966 = vdwg.mxu0
    %v1967 = vmax.f32 %v1944, 0.0
    %v1968 = vmax.f32 %v1947, 0.0
    %v1969 = vmax.f32 %v1950, 0.0
    %v1970 = vmax.f32 %v1953, 0.0
    %v1971 = vmax.f32 %v1956, 0.0
    %v1972 = vmax.f32 %v1959, 0.0
    %v1973 = vmax.f32 %v1962, 0.0
    %v1974 = vmax.f32 %v1965, 0.0
    %v1975 = vld [vmem:[%s11] sm:$0xff]
    %v1976 = vld [vmem:[%s11 + $0x8] sm:$0xff]
    %v1977 = vld [vmem:[%s11 + $0x10] sm:$0xff]
    %v1978 = vld [vmem:[%s11 + $0x18] sm:$0xff]
    %v1979 = vld [vmem:[%s11 + $0x20] sm:$0xff]
    %v1980 = vld [vmem:[%s11 + $0x28] sm:$0xff]
    %v1981 = vld [vmem:[%s11 + $0x30] sm:$0xff]
    %v1982 = vld [vmem:[%s11 + $0x38] sm:$0xff]
    %v1983 = vld [vmem:[#allocation7] sm:$0x1]
    %v1985 = vperm.slane %v1983, 0
    %v1988 = vsel %vm367, %v1967, 0
    %v1991 = vsel %vm367, %v1968, 0
    %v1994 = vsel %vm367, %v1969, 0
    %v1997 = vsel %vm367, %v1970, 0
    %v2000 = vsel %vm367, %v1971, 0
    %v2003 = vsel %vm367, %v1972, 0
    %v2006 = vsel %vm367, %v1973, 0
    %v2009 = vsel %vm367, %v1974, 0
    %2011 = vmatpush.msra.mxu0 0.0
    %2012 = vmatpush.msra.mxu0 0.0
    %2013 = vmatpush.msra.mxu0 0.0
    %2014 = vmatpush.msra.mxu0 0.0
    %2015 = vmatpush.msra.mxu0 0.0
    %2016 = vmatpush.msra.mxu0 0.0
    %2017 = vmatpush.msra.mxu0 0.0
    %2018 = vmatpush.msra.mxu0 0.0
    %2019 = vmatpush.msra.mxu0 %v1982
    %2020 = vmatpush.msra.mxu0 %v1981
    %2021 = vmatpush.msra.mxu0 %v1980
    %2022 = vmatpush.msra.mxu0 %v1979
    %2023 = vmatpush.msra.mxu0 %v1978
    %2024 = vmatpush.msra.mxu0 %v1977
    %2025 = vmatpush.msra.mxu0 %v1976
    %2026 = vmatpush.msra.mxu0 %v1975
    %2027 = vmatmul.f32.gmra.mxu0 %v1988
    %v2028 = vpop.f32.mrf.mxu0
    %v2029 = vadd.f32 %v1985, %v2028
    %2030 = vmatmul.f32.gmra.mxu0 %v1991
    %v2031 = vpop.f32.mrf.mxu0
    %v2032 = vadd.f32 %v1985, %v2031
    %2033 = vmatmul.f32.gmra.mxu0 %v1994
    %v2034 = vpop.f32.mrf.mxu0
    %v2035 = vadd.f32 %v1985, %v2034
    %2036 = vmatmul.f32.gmra.mxu0 %v1997
    %v2037 = vpop.f32.mrf.mxu0
    %v2038 = vadd.f32 %v1985, %v2037
    %2039 = vmatmul.f32.gmra.mxu0 %v2000
    %v2040 = vpop.f32.mrf.mxu0
    %v2041 = vadd.f32 %v1985, %v2040
    %2042 = vmatmul.f32.gmra.mxu0 %v2003
    %v2043 = vpop.f32.mrf.mxu0
    %v2044 = vadd.f32 %v1985, %v2043
    %2045 = vmatmul.f32.gmra.mxu0 %v2006
    %v2046 = vpop.f32.mrf.mxu0
    %v2047 = vadd.f32 %v1985, %v2046
    %2048 = vmatmul.f32.gmra.mxu0 %v2009
    %v2049 = vpop.f32.mrf.mxu0
    %v2050 = vadd.f32 %v1985, %v2049
    %2051 = vdwg.mxu0
    %v2052 = vadd.f32 %v1886, %v2029
    %v2053 = vadd.f32 %v1887, %v2032
    %v2054 = vadd.f32 %v1888, %v2035
    %v2055 = vadd.f32 %v1889, %v2038
    %v2056 = vadd.f32 %v1890, %v2041
    %v2057 = vadd.f32 %v1891, %v2044
    %v2058 = vadd.f32 %v1892, %v2047
    %v2059 = vadd.f32 %v1893, %v2050
    %v2060 = vld [vmem:[#allocation9] sm:$0x1]
    %v2061 = vld [vmem:[#allocation10] sm:$0x1]
    %v2062 = vsel %vm199, %v2052, 0.0
    %2063 = vadd.xlane.f32.xlu0 %v2062
    %v2064 = vpop.xlane.xlu0 %2063
    %v2065 = vsel %vm199, %v2053, 0.0
    %2066 = vadd.xlane.f32.xlu0 %v2065
    %v2067 = vpop.xlane.xlu0 %2066
    %v2068 = vsel %vm199, %v2054, 0.0
    %2069 = vadd.xlane.f32.xlu0 %v2068
    %v2070 = vpop.xlane.xlu0 %2069
    %v2071 = vsel %vm199, %v2055, 0.0
    %2072 = vadd.xlane.f32.xlu0 %v2071
    %v2073 = vpop.xlane.xlu0 %2072
    %v2074 = vsel %vm199, %v2056, 0.0
    %2075 = vadd.xlane.f32.xlu0 %v2074
    %v2076 = vpop.xlane.xlu0 %2075
    %v2077 = vsel %vm199, %v2057, 0.0
    %2078 = vadd.xlane.f32.xlu0 %v2077
    %v2079 = vpop.xlane.xlu0 %2078
    %v2080 = vsel %vm199, %v2058, 0.0
    %2081 = vadd.xlane.f32.xlu0 %v2080
    %v2082 = vpop.xlane.xlu0 %2081
    %v2083 = vsel %vm199, %v2059, 0.0
    %2084 = vadd.xlane.f32.xlu0 %v2083
    %v2085 = vpop.xlane.xlu0 %2084
    %v2086 = vmul.f32 %v2064, %v1719
    %v2087 = vmul.f32 %v2067, %v1719
    %v2088 = vmul.f32 %v2070, %v1719
    %v2089 = vmul.f32 %v2073, %v1719
    %v2090 = vmul.f32 %v2076, %v1719
    %v2091 = vmul.f32 %v2079, %v1719
    %v2092 = vmul.f32 %v2082, %v1719
    %v2093 = vmul.f32 %v2085, %v1719
    %v2094 = vsub.f32 %v2052, %v2086
    %v2095 = vsub.f32 %v2053, %v2087
    %v2096 = vsub.f32 %v2054, %v2088
    %v2097 = vsub.f32 %v2055, %v2089
    %v2098 = vsub.f32 %v2056, %v2090
    %v2099 = vsub.f32 %v2057, %v2091
    %v2100 = vsub.f32 %v2058, %v2092
    %v2101 = vsub.f32 %v2059, %v2093
    %v2102 = vmul.f32 %v2094, %v2094
    %v2103 = vmul.f32 %v2095, %v2095
    %v2104 = vmul.f32 %v2096, %v2096
    %v2105 = vmul.f32 %v2097, %v2097
    %v2106 = vmul.f32 %v2098, %v2098
    %v2107 = vmul.f32 %v2099, %v2099
    %v2108 = vmul.f32 %v2100, %v2100
    %v2109 = vmul.f32 %v2101, %v2101
    %v2110 = vsel %vm199, %v2102, 0.0
    %2111 = vadd.xlane.f32.xlu0 %v2110
    %v2112 = vpop.xlane.xlu0 %2111
    %v2113 = vsel %vm199, %v2103, 0.0
    %2114 = vadd.xlane.f32.xlu0 %v2113
    %v2115 = vpop.xlane.xlu0 %2114
    %v2116 = vsel %vm199, %v2104, 0.0
    %2117 = vadd.xlane.f32.xlu0 %v2116
    %v2118 = vpop.xlane.xlu0 %2117
    %v2119 = vsel %vm199, %v2105, 0.0
    %2120 = vadd.xlane.f32.xlu0 %v2119
    %v2121 = vpop.xlane.xlu0 %2120
    %v2122 = vsel %vm199, %v2106, 0.0
    %2123 = vadd.xlane.f32.xlu0 %v2122
    %v2124 = vpop.xlane.xlu0 %2123
    %v2125 = vsel %vm199, %v2107, 0.0
    %2126 = vadd.xlane.f32.xlu0 %v2125
    %v2127 = vpop.xlane.xlu0 %2126
    %v2128 = vsel %vm199, %v2108, 0.0
    %2129 = vadd.xlane.f32.xlu0 %v2128
    %v2130 = vpop.xlane.xlu0 %2129
    %v2131 = vsel %vm199, %v2109, 0.0
    %2132 = vadd.xlane.f32.xlu0 %v2131
    %v2133 = vpop.xlane.xlu0 %2132
    %v2134 = vmul.f32 %v2112, %v1719
    %v2135 = vmul.f32 %v2115, %v1719
    %v2136 = vmul.f32 %v2118, %v1719
    %v2137 = vmul.f32 %v2121, %v1719
    %v2138 = vmul.f32 %v2124, %v1719
    %v2139 = vmul.f32 %v2127, %v1719
    %v2140 = vmul.f32 %v2130, %v1719
    %v2141 = vmul.f32 %v2133, %v1719
    %v2142 = vadd.f32 %v2134, 1e-05
    %v2143 = vadd.f32 %v2135, 1e-05
    %v2144 = vadd.f32 %v2136, 1e-05
    %v2145 = vadd.f32 %v2137, 1e-05
    %v2146 = vadd.f32 %v2138, 1e-05
    %v2147 = vadd.f32 %v2139, 1e-05
    %v2148 = vadd.f32 %v2140, 1e-05
    %v2149 = vadd.f32 %v2141, 1e-05
    %v2150 = vrsqrt.pop %v2142
    %v2151 = vmul.f32 %v2150, %v2142
    %v2152 = vmul.f32 %v2151, %v2150
    %v2153 = vmul.f32 0.5, %v2152
    %v2154 = vsub.f32 1.5, %v2153
    %v2155 = vmul.f32 %v2150, %v2154
    %vm2156 = vweird.f32 %v2142
    %vm2157 = vweird.f32 %v2150
    %vm2158 = vmor %vm2156, %vm2157
    %v2159 = vsel %vm2158, %v2150, %v2155
    %v2160 = vrsqrt.pop %v2143
    %v2161 = vmul.f32 %v2160, %v2143
    %v2162 = vmul.f32 %v2161, %v2160
    %v2163 = vmul.f32 0.5, %v2162
    %v2164 = vsub.f32 1.5, %v2163
    %v2165 = vmul.f32 %v2160, %v2164
    %vm2166 = vweird.f32 %v2143
    %vm2167 = vweird.f32 %v2160
    %vm2168 = vmor %vm2166, %vm2167
    %v2169 = vsel %vm2168, %v2160, %v2165
    %v2170 = vrsqrt.pop %v2144
    %v2171 = vmul.f32 %v2170, %v2144
    %v2172 = vmul.f32 %v2171, %v2170
    %v2173 = vmul.f32 0.5, %v2172
    %v2174 = vsub.f32 1.5, %v2173
    %v2175 = vmul.f32 %v2170, %v2174
    %vm2176 = vweird.f32 %v2144
    %vm2177 = vweird.f32 %v2170
    %vm2178 = vmor %vm2176, %vm2177
    %v2179 = vsel %vm2178, %v2170, %v2175
    %v2180 = vrsqrt.pop %v2145
    %v2181 = vmul.f32 %v2180, %v2145
    %v2182 = vmul.f32 %v2181, %v2180
    %v2183 = vmul.f32 0.5, %v2182
    %v2184 = vsub.f32 1.5, %v2183
    %v2185 = vmul.f32 %v2180, %v2184
    %vm2186 = vweird.f32 %v2145
    %vm2187 = vweird.f32 %v2180
    %vm2188 = vmor %vm2186, %vm2187
    %v2189 = vsel %vm2188, %v2180, %v2185
    %v2190 = vrsqrt.pop %v2146
    %v2191 = vmul.f32 %v2190, %v2146
    %v2192 = vmul.f32 %v2191, %v2190
    %v2193 = vmul.f32 0.5, %v2192
    %v2194 = vsub.f32 1.5, %v2193
    %v2195 = vmul.f32 %v2190, %v2194
    %vm2196 = vweird.f32 %v2146
    %vm2197 = vweird.f32 %v2190
    %vm2198 = vmor %vm2196, %vm2197
    %v2199 = vsel %vm2198, %v2190, %v2195
    %v2200 = vrsqrt.pop %v2147
    %v2201 = vmul.f32 %v2200, %v2147
    %v2202 = vmul.f32 %v2201, %v2200
    %v2203 = vmul.f32 0.5, %v2202
    %v2204 = vsub.f32 1.5, %v2203
    %v2205 = vmul.f32 %v2200, %v2204
    %vm2206 = vweird.f32 %v2147
    %vm2207 = vweird.f32 %v2200
    %vm2208 = vmor %vm2206, %vm2207
    %v2209 = vsel %vm2208, %v2200, %v2205
    %v2210 = vrsqrt.pop %v2148
    %v2211 = vmul.f32 %v2210, %v2148
    %v2212 = vmul.f32 %v2211, %v2210
    %v2213 = vmul.f32 0.5, %v2212
    %v2214 = vsub.f32 1.5, %v2213
    %v2215 = vmul.f32 %v2210, %v2214
    %vm2216 = vweird.f32 %v2148
    %vm2217 = vweird.f32 %v2210
    %vm2218 = vmor %vm2216, %vm2217
    %v2219 = vsel %vm2218, %v2210, %v2215
    %v2220 = vrsqrt.pop %v2149
    %v2221 = vmul.f32 %v2220, %v2149
    %v2222 = vmul.f32 %v2221, %v2220
    %v2223 = vmul.f32 0.5, %v2222
    %v2224 = vsub.f32 1.5, %v2223
    %v2225 = vmul.f32 %v2220, %v2224
    %vm2226 = vweird.f32 %v2149
    %vm2227 = vweird.f32 %v2220
    %vm2228 = vmor %vm2226, %vm2227
    %v2229 = vsel %vm2228, %v2220, %v2225
    %v2230 = vmul.f32 %v2094, %v2159
    %v2231 = vmul.f32 %v2095, %v2169
    %v2232 = vmul.f32 %v2096, %v2179
    %v2233 = vmul.f32 %v2097, %v2189
    %v2234 = vmul.f32 %v2098, %v2199
    %v2235 = vmul.f32 %v2099, %v2209
    %v2236 = vmul.f32 %v2100, %v2219
    %v2237 = vmul.f32 %v2101, %v2229
    %v2239 = vperm.slane %v2060, 0
    %v2241 = vmul.f32 %v2230, %v2239
    %v2242 = vmul.f32 %v2231, %v2239
    %v2243 = vmul.f32 %v2232, %v2239
    %v2244 = vmul.f32 %v2233, %v2239
    %v2245 = vmul.f32 %v2234, %v2239
    %v2246 = vmul.f32 %v2235, %v2239
    %v2247 = vmul.f32 %v2236, %v2239
    %v2248 = vmul.f32 %v2237, %v2239
    %v2250 = vperm.slane %v2061, 0
    %v2252 = vadd.f32 %v2241, %v2250
    %v2253 = vadd.f32 %v2242, %v2250
    %v2254 = vadd.f32 %v2243, %v2250
    %v2255 = vadd.f32 %v2244, %v2250
    %v2256 = vadd.f32 %v2245, %v2250
    %v2257 = vadd.f32 %v2246, %v2250
    %v2258 = vadd.f32 %v2247, %v2250
    %v2259 = vadd.f32 %v2248, %v2250
    %v2260 = vadd.f32 %v2252, %v167
    %v2261 = vadd.f32 %v2253, %v168
    %v2262 = vadd.f32 %v2254, %v169
    %v2263 = vadd.f32 %v2255, %v170
    %v2264 = vadd.f32 %v2256, %v171
    %v2265 = vadd.f32 %v2257, %v172
    %v2266 = vadd.f32 %v2258, %v173
    %v2267 = vadd.f32 %v2259, %v174
    %s2268 = scalar_lea.vmem %s3, 32
    %v2269 = vld [vmem:[%s2268] sm:$0xff]
    %v2270 = vld [vmem:[%s2268 + $0x8] sm:$0xff]
    %v2271 = vld [vmem:[%s2268 + $0x10] sm:$0xff]
    %v2272 = vld [vmem:[%s2268 + $0x18] sm:$0xff]
    %s2273 = scalar_lea.vmem [#allocation2], 1
    %v2274 = vld [vmem:[%s2273] sm:$0x1]
    %v2276 = vperm.slane %v2274, 0
    %v2279 = vsel %vm199, %v2260, 0
    %v2282 = vsel %vm199, %v2261, 0
    %v2285 = vsel %vm199, %v2262, 0
    %v2288 = vsel %vm199, %v2263, 0
    %v2291 = vsel %vm199, %v2264, 0
    %v2294 = vsel %vm199, %v2265, 0
    %v2297 = vsel %vm199, %v2266, 0
    %v2300 = vsel %vm199, %v2267, 0
    %2302 = vmatpush.msra.mxu0 0.0
    %2303 = vmatpush.msra.mxu0 0.0
    %2304 = vmatpush.msra.mxu0 0.0
    %2305 = vmatpush.msra.mxu0 0.0
    %2306 = vmatpush.msra.mxu0 0.0
    %2307 = vmatpush.msra.mxu0 0.0
    %2308 = vmatpush.msra.mxu0 0.0
    %2309 = vmatpush.msra.mxu0 0.0
    %2310 = vmatpush.msra.mxu0 0.0
    %2311 = vmatpush.msra.mxu0 0.0
    %2312 = vmatpush.msra.mxu0 0.0
    %2313 = vmatpush.msra.mxu0 0.0
    %2314 = vmatpush.msra.mxu0 %v2272
    %2315 = vmatpush.msra.mxu0 %v2271
    %2316 = vmatpush.msra.mxu0 %v2270
    %2317 = vmatpush.msra.mxu0 %v2269
    %2318 = vmatmul.f32.gmra.mxu0 %v2279
    %v2319 = vpop.f32.mrf.mxu0
    %v2320 = vadd.f32 %v2276, %v2319
    %2321 = vmatmul.f32.gmra.mxu0 %v2282
    %v2322 = vpop.f32.mrf.mxu0
    %v2323 = vadd.f32 %v2276, %v2322
    %2324 = vmatmul.f32.gmra.mxu0 %v2285
    %v2325 = vpop.f32.mrf.mxu0
    %v2326 = vadd.f32 %v2276, %v2325
    %2327 = vmatmul.f32.gmra.mxu0 %v2288
    %v2328 = vpop.f32.mrf.mxu0
    %v2329 = vadd.f32 %v2276, %v2328
    %2330 = vmatmul.f32.gmra.mxu0 %v2291
    %v2331 = vpop.f32.mrf.mxu0
    %v2332 = vadd.f32 %v2276, %v2331
    %2333 = vmatmul.f32.gmra.mxu0 %v2294
    %v2334 = vpop.f32.mrf.mxu0
    %v2335 = vadd.f32 %v2276, %v2334
    %2336 = vmatmul.f32.gmra.mxu0 %v2297
    %v2337 = vpop.f32.mrf.mxu0
    %v2338 = vadd.f32 %v2276, %v2337
    %2339 = vmatmul.f32.gmra.mxu0 %v2300
    %v2340 = vpop.f32.mrf.mxu0
    %v2341 = vadd.f32 %v2276, %v2340
    %2342 = vdwg.mxu0
    %s2343 = scalar_lea.vmem %s5, 32
    %v2344 = vld [vmem:[%s2343] sm:$0xff]
    %v2345 = vld [vmem:[%s2343 + $0x8] sm:$0xff]
    %v2346 = vld [vmem:[%s2343 + $0x10] sm:$0xff]
    %v2347 = vld [vmem:[%s2343 + $0x18] sm:$0xff]
    %2356 = vrot.lane.b32.xlu0 %v2320, 96
    %v2357 = vpop.permute.xlu0 %2356
    %2358 = vrot.lane.b32.xlu0 %v2323, 96
    %v2359 = vpop.permute.xlu0 %2358
    %2360 = vrot.lane.b32.xlu0 %v2326, 96
    %v2361 = vpop.permute.xlu0 %2360
    %2362 = vrot.lane.b32.xlu0 %v2329, 96
    %v2363 = vpop.permute.xlu0 %2362
    %2364 = vrot.lane.b32.xlu0 %v2332, 96
    %v2365 = vpop.permute.xlu0 %2364
    %2366 = vrot.lane.b32.xlu0 %v2335, 96
    %v2367 = vpop.permute.xlu0 %2366
    %2368 = vrot.lane.b32.xlu0 %v2338, 96
    %v2369 = vpop.permute.xlu0 %2368
    %2370 = vrot.lane.b32.xlu0 %v2341, 96
    %v2371 = vpop.permute.xlu0 %2370
    %v2372 = vsel %vm293, %v2320, 0
    %v2374 = vsel %vm293, %v2323, 0
    %v2376 = vsel %vm293, %v2326, 0
    %v2378 = vsel %vm293, %v2329, 0
    %v2380 = vsel %vm293, %v2332, 0
    %v2382 = vsel %vm293, %v2335, 0
    %v2384 = vsel %vm293, %v2338, 0
    %v2386 = vsel %vm293, %v2341, 0
    %v2388 = vsel %vm293, %v2357, 0
    %v2390 = vsel %vm293, %v2359, 0
    %v2392 = vsel %vm293, %v2361, 0
    %v2394 = vsel %vm293, %v2363, 0
    %v2396 = vsel %vm293, %v2365, 0
    %v2398 = vsel %vm293, %v2367, 0
    %v2400 = vsel %vm293, %v2369, 0
    %v2402 = vsel %vm293, %v2371, 0
    %2404 = vmatpush.xpose.msra.mxu0 0.0
    %2405 = vmatpush.xpose.msra.mxu0 0.0
    %2406 = vmatpush.xpose.msra.mxu0 0.0
    %2407 = vmatpush.xpose.msra.mxu0 0.0
    %2408 = vmatpush.xpose.msra.mxu0 0.0
    %2409 = vmatpush.xpose.msra.mxu0 0.0
    %2410 = vmatpush.xpose.msra.mxu0 0.0
    %2411 = vmatpush.xpose.msra.mxu0 0.0
    %2412 = vmatpush.xpose.msra.mxu0 %v2402
    %2413 = vmatpush.xpose.msra.mxu0 %v2400
    %2414 = vmatpush.xpose.msra.mxu0 %v2398
    %2415 = vmatpush.xpose.msra.mxu0 %v2396
    %2416 = vmatpush.xpose.msra.mxu0 %v2394
    %2417 = vmatpush.xpose.msra.mxu0 %v2392
    %2418 = vmatpush.xpose.msra.mxu0 %v2390
    %2419 = vmatpush.xpose.msra.mxu0 %v2388
    %2420 = vmatmul.f32.gmra.mxu0 %v2372
    %v2421 = vpop.f32.mrf.mxu0
    %v2422 = vadd.f32 %v175, %v2421
    %2423 = vmatmul.f32.gmra.mxu0 %v2374
    %v2424 = vpop.f32.mrf.mxu0
    %v2425 = vadd.f32 %v176, %v2424
    %2426 = vmatmul.f32.gmra.mxu0 %v2376
    %v2427 = vpop.f32.mrf.mxu0
    %v2428 = vadd.f32 %v177, %v2427
    %2429 = vmatmul.f32.gmra.mxu0 %v2378
    %v2430 = vpop.f32.mrf.mxu0
    %v2431 = vadd.f32 %v178, %v2430
    %2432 = vmatmul.f32.gmra.mxu0 %v2380
    %v2433 = vpop.f32.mrf.mxu0
    %v2434 = vadd.f32 %v179, %v2433
    %2435 = vmatmul.f32.gmra.mxu0 %v2382
    %v2436 = vpop.f32.mrf.mxu0
    %v2437 = vadd.f32 %v180, %v2436
    %2438 = vmatmul.f32.gmra.mxu0 %v2384
    %v2439 = vpop.f32.mrf.mxu0
    %v2440 = vadd.f32 %v181, %v2439
    %2441 = vmatmul.f32.gmra.mxu0 %v2386
    %v2442 = vpop.f32.mrf.mxu0
    %v2443 = vadd.f32 %v182, %v2442
    %2444 = vdwg.mxu0
    %v2445 = vsel %vm367, %v2422, -inf
    %2446 = vmax.xlane.f32.xlu0 %v2445
    %v2447 = vpop.xlane.xlu0 %2446
    %v2448 = vsel %vm367, %v2425, -inf
    %2449 = vmax.xlane.f32.xlu0 %v2448
    %v2450 = vpop.xlane.xlu0 %2449
    %v2451 = vsel %vm367, %v2428, -inf
    %2452 = vmax.xlane.f32.xlu0 %v2451
    %v2453 = vpop.xlane.xlu0 %2452
    %v2454 = vsel %vm367, %v2431, -inf
    %2455 = vmax.xlane.f32.xlu0 %v2454
    %v2456 = vpop.xlane.xlu0 %2455
    %v2457 = vsel %vm367, %v2434, -inf
    %2458 = vmax.xlane.f32.xlu0 %v2457
    %v2459 = vpop.xlane.xlu0 %2458
    %v2460 = vsel %vm367, %v2437, -inf
    %2461 = vmax.xlane.f32.xlu0 %v2460
    %v2462 = vpop.xlane.xlu0 %2461
    %v2463 = vsel %vm367, %v2440, -inf
    %2464 = vmax.xlane.f32.xlu0 %v2463
    %v2465 = vpop.xlane.xlu0 %2464
    %v2466 = vsel %vm367, %v2443, -inf
    %2467 = vmax.xlane.f32.xlu0 %v2466
    %v2468 = vpop.xlane.xlu0 %2467
    %v2469 = vsub.f32 %v2422, %v2447
    %v2470 = vsub.f32 %v2425, %v2450
    %v2471 = vsub.f32 %v2428, %v2453
    %v2472 = vsub.f32 %v2431, %v2456
    %v2473 = vsub.f32 %v2434, %v2459
    %v2474 = vsub.f32 %v2437, %v2462
    %v2475 = vsub.f32 %v2440, %v2465
    %v2476 = vsub.f32 %v2443, %v2468
    %v2477 = vmul.f32 %v2469, 1.442695
    %v2478 = vpow.pop %v2477
    %v2479 = vmul.f32 %v2470, 1.442695
    %v2480 = vpow.pop %v2479
    %v2481 = vmul.f32 %v2471, 1.442695
    %v2482 = vpow.pop %v2481
    %v2483 = vmul.f32 %v2472, 1.442695
    %v2484 = vpow.pop %v2483
    %v2485 = vmul.f32 %v2473, 1.442695
    %v2486 = vpow.pop %v2485
    %v2487 = vmul.f32 %v2474, 1.442695
    %v2488 = vpow.pop %v2487
    %v2489 = vmul.f32 %v2475, 1.442695
    %v2490 = vpow.pop %v2489
    %v2491 = vmul.f32 %v2476, 1.442695
    %v2492 = vpow.pop %v2491
    %v2493 = vsel %vm367, %v2478, 0.0
    %2494 = vadd.xlane.f32.xlu0 %v2493
    %v2495 = vpop.xlane.xlu0 %2494
    %v2496 = vsel %vm367, %v2480, 0.0
    %2497 = vadd.xlane.f32.xlu0 %v2496
    %v2498 = vpop.xlane.xlu0 %2497
    %v2499 = vsel %vm367, %v2482, 0.0
    %2500 = vadd.xlane.f32.xlu0 %v2499
    %v2501 = vpop.xlane.xlu0 %2500
    %v2502 = vsel %vm367, %v2484, 0.0
    %2503 = vadd.xlane.f32.xlu0 %v2502
    %v2504 = vpop.xlane.xlu0 %2503
    %v2505 = vsel %vm367, %v2486, 0.0
    %2506 = vadd.xlane.f32.xlu0 %v2505
    %v2507 = vpop.xlane.xlu0 %2506
    %v2508 = vsel %vm367, %v2488, 0.0
    %2509 = vadd.xlane.f32.xlu0 %v2508
    %v2510 = vpop.xlane.xlu0 %2509
    %v2511 = vsel %vm367, %v2490, 0.0
    %2512 = vadd.xlane.f32.xlu0 %v2511
    %v2513 = vpop.xlane.xlu0 %2512
    %v2514 = vsel %vm367, %v2492, 0.0
    %2515 = vadd.xlane.f32.xlu0 %v2514
    %v2516 = vpop.xlane.xlu0 %2515
    %v2517 = vrcp.pop %v2495
    %v2518 = vrcp.pop %v2498
    %v2519 = vrcp.pop %v2501
    %v2520 = vrcp.pop %v2504
    %v2521 = vrcp.pop %v2507
    %v2522 = vrcp.pop %v2510
    %v2523 = vrcp.pop %v2513
    %v2524 = vrcp.pop %v2516
    %v2525 = vmul.f32 %v2478, %v2517
    %v2526 = vmul.f32 %v2480, %v2518
    %v2527 = vmul.f32 %v2482, %v2519
    %v2528 = vmul.f32 %v2484, %v2520
    %v2529 = vmul.f32 %v2486, %v2521
    %v2530 = vmul.f32 %v2488, %v2522
    %v2531 = vmul.f32 %v2490, %v2523
    %v2532 = vmul.f32 %v2492, %v2524
    %2533 = vrot.lane.b32.xlu0 %v2320, 64
    %v2534 = vpop.permute.xlu0 %2533
    %2535 = vrot.lane.b32.xlu0 %v2323, 64
    %v2536 = vpop.permute.xlu0 %2535
    %2537 = vrot.lane.b32.xlu0 %v2326, 64
    %v2538 = vpop.permute.xlu0 %2537
    %2539 = vrot.lane.b32.xlu0 %v2329, 64
    %v2540 = vpop.permute.xlu0 %2539
    %2541 = vrot.lane.b32.xlu0 %v2332, 64
    %v2542 = vpop.permute.xlu0 %2541
    %2543 = vrot.lane.b32.xlu0 %v2335, 64
    %v2544 = vpop.permute.xlu0 %2543
    %2545 = vrot.lane.b32.xlu0 %v2338, 64
    %v2546 = vpop.permute.xlu0 %2545
    %2547 = vrot.lane.b32.xlu0 %v2341, 64
    %v2548 = vpop.permute.xlu0 %2547
    %v2558 = vsel %vm367, %v2525, 0
    %v2561 = vsel %vm367, %v2526, 0
    %v2564 = vsel %vm367, %v2527, 0
    %v2567 = vsel %vm367, %v2528, 0
    %v2570 = vsel %vm367, %v2529, 0
    %v2573 = vsel %vm367, %v2530, 0
    %v2576 = vsel %vm367, %v2531, 0
    %v2579 = vsel %vm367, %v2532, 0
    %2581 = vmatpush.msra.mxu0 0.0
    %2582 = vmatpush.msra.mxu0 0.0
    %2583 = vmatpush.msra.mxu0 0.0
    %2584 = vmatpush.msra.mxu0 0.0
    %2585 = vmatpush.msra.mxu0 0.0
    %2586 = vmatpush.msra.mxu0 0.0
    %2587 = vmatpush.msra.mxu0 0.0
    %2588 = vmatpush.msra.mxu0 0.0
    %2589 = vmatpush.msra.mxu0 %v2548
    %2590 = vmatpush.msra.mxu0 %v2546
    %2591 = vmatpush.msra.mxu0 %v2544
    %2592 = vmatpush.msra.mxu0 %v2542
    %2593 = vmatpush.msra.mxu0 %v2540
    %2594 = vmatpush.msra.mxu0 %v2538
    %2595 = vmatpush.msra.mxu0 %v2536
    %2596 = vmatpush.msra.mxu0 %v2534
    %2597 = vmatmul.f32.gmra.mxu0 %v2558
    %v2598 = vpop.f32.mrf.mxu0
    %v2599 = vadd.f32 0.0, %v2598
    %2600 = vmatmul.f32.gmra.mxu0 %v2561
    %v2601 = vpop.f32.mrf.mxu0
    %v2602 = vadd.f32 0.0, %v2601
    %2603 = vmatmul.f32.gmra.mxu0 %v2564
    %v2604 = vpop.f32.mrf.mxu0
    %v2605 = vadd.f32 0.0, %v2604
    %2606 = vmatmul.f32.gmra.mxu0 %v2567
    %v2607 = vpop.f32.mrf.mxu0
    %v2608 = vadd.f32 0.0, %v2607
    %2609 = vmatmul.f32.gmra.mxu0 %v2570
    %v2610 = vpop.f32.mrf.mxu0
    %v2611 = vadd.f32 0.0, %v2610
    %2612 = vmatmul.f32.gmra.mxu0 %v2573
    %v2613 = vpop.f32.mrf.mxu0
    %v2614 = vadd.f32 0.0, %v2613
    %2615 = vmatmul.f32.gmra.mxu0 %v2576
    %v2616 = vpop.f32.mrf.mxu0
    %v2617 = vadd.f32 0.0, %v2616
    %2618 = vmatmul.f32.gmra.mxu0 %v2579
    %v2619 = vpop.f32.mrf.mxu0
    %v2620 = vadd.f32 0.0, %v2619
    %2621 = vdwg.mxu0
    %2622 = vrot.lane.b32.xlu0 %v2320, 120
    %v2623 = vpop.permute.xlu0 %2622
    %2624 = vrot.lane.b32.xlu0 %v2323, 120
    %v2625 = vpop.permute.xlu0 %2624
    %2626 = vrot.lane.b32.xlu0 %v2326, 120
    %v2627 = vpop.permute.xlu0 %2626
    %2628 = vrot.lane.b32.xlu0 %v2329, 120
    %v2629 = vpop.permute.xlu0 %2628
    %2630 = vrot.lane.b32.xlu0 %v2332, 120
    %v2631 = vpop.permute.xlu0 %2630
    %2632 = vrot.lane.b32.xlu0 %v2335, 120
    %v2633 = vpop.permute.xlu0 %2632
    %2634 = vrot.lane.b32.xlu0 %v2338, 120
    %v2635 = vpop.permute.xlu0 %2634
    %2636 = vrot.lane.b32.xlu0 %v2341, 120
    %v2637 = vpop.permute.xlu0 %2636
    %2638 = vrot.lane.b32.xlu0 %v2320, 88
    %v2639 = vpop.permute.xlu0 %2638
    %2640 = vrot.lane.b32.xlu0 %v2323, 88
    %v2641 = vpop.permute.xlu0 %2640
    %2642 = vrot.lane.b32.xlu0 %v2326, 88
    %v2643 = vpop.permute.xlu0 %2642
    %2644 = vrot.lane.b32.xlu0 %v2329, 88
    %v2645 = vpop.permute.xlu0 %2644
    %2646 = vrot.lane.b32.xlu0 %v2332, 88
    %v2647 = vpop.permute.xlu0 %2646
    %2648 = vrot.lane.b32.xlu0 %v2335, 88
    %v2649 = vpop.permute.xlu0 %2648
    %2650 = vrot.lane.b32.xlu0 %v2338, 88
    %v2651 = vpop.permute.xlu0 %2650
    %2652 = vrot.lane.b32.xlu0 %v2341, 88
    %v2653 = vpop.permute.xlu0 %2652
    %v2654 = vsel %vm293, %v2623, 0
    %v2656 = vsel %vm293, %v2625, 0
    %v2658 = vsel %vm293, %v2627, 0
    %v2660 = vsel %vm293, %v2629, 0
    %v2662 = vsel %vm293, %v2631, 0
    %v2664 = vsel %vm293, %v2633, 0
    %v2666 = vsel %vm293, %v2635, 0
    %v2668 = vsel %vm293, %v2637, 0
    %v2670 = vsel %vm293, %v2639, 0
    %v2672 = vsel %vm293, %v2641, 0
    %v2674 = vsel %vm293, %v2643, 0
    %v2676 = vsel %vm293, %v2645, 0
    %v2678 = vsel %vm293, %v2647, 0
    %v2680 = vsel %vm293, %v2649, 0
    %v2682 = vsel %vm293, %v2651, 0
    %v2684 = vsel %vm293, %v2653, 0
    %2686 = vmatpush.xpose.msra.mxu0 0.0
    %2687 = vmatpush.xpose.msra.mxu0 0.0
    %2688 = vmatpush.xpose.msra.mxu0 0.0
    %2689 = vmatpush.xpose.msra.mxu0 0.0
    %2690 = vmatpush.xpose.msra.mxu0 0.0
    %2691 = vmatpush.xpose.msra.mxu0 0.0
    %2692 = vmatpush.xpose.msra.mxu0 0.0
    %2693 = vmatpush.xpose.msra.mxu0 0.0
    %2694 = vmatpush.xpose.msra.mxu0 %v2684
    %2695 = vmatpush.xpose.msra.mxu0 %v2682
    %2696 = vmatpush.xpose.msra.mxu0 %v2680
    %2697 = vmatpush.xpose.msra.mxu0 %v2678
    %2698 = vmatpush.xpose.msra.mxu0 %v2676
    %2699 = vmatpush.xpose.msra.mxu0 %v2674
    %2700 = vmatpush.xpose.msra.mxu0 %v2672
    %2701 = vmatpush.xpose.msra.mxu0 %v2670
    %2702 = vmatmul.f32.gmra.mxu0 %v2654
    %v2703 = vpop.f32.mrf.mxu0
    %v2704 = vadd.f32 %v175, %v2703
    %2705 = vmatmul.f32.gmra.mxu0 %v2656
    %v2706 = vpop.f32.mrf.mxu0
    %v2707 = vadd.f32 %v176, %v2706
    %2708 = vmatmul.f32.gmra.mxu0 %v2658
    %v2709 = vpop.f32.mrf.mxu0
    %v2710 = vadd.f32 %v177, %v2709
    %2711 = vmatmul.f32.gmra.mxu0 %v2660
    %v2712 = vpop.f32.mrf.mxu0
    %v2713 = vadd.f32 %v178, %v2712
    %2714 = vmatmul.f32.gmra.mxu0 %v2662
    %v2715 = vpop.f32.mrf.mxu0
    %v2716 = vadd.f32 %v179, %v2715
    %2717 = vmatmul.f32.gmra.mxu0 %v2664
    %v2718 = vpop.f32.mrf.mxu0
    %v2719 = vadd.f32 %v180, %v2718
    %2720 = vmatmul.f32.gmra.mxu0 %v2666
    %v2721 = vpop.f32.mrf.mxu0
    %v2722 = vadd.f32 %v181, %v2721
    %2723 = vmatmul.f32.gmra.mxu0 %v2668
    %v2724 = vpop.f32.mrf.mxu0
    %v2725 = vadd.f32 %v182, %v2724
    %2726 = vdwg.mxu0
    %v2727 = vsel %vm367, %v2704, -inf
    %2728 = vmax.xlane.f32.xlu0 %v2727
    %v2729 = vpop.xlane.xlu0 %2728
    %v2730 = vsel %vm367, %v2707, -inf
    %2731 = vmax.xlane.f32.xlu0 %v2730
    %v2732 = vpop.xlane.xlu0 %2731
    %v2733 = vsel %vm367, %v2710, -inf
    %2734 = vmax.xlane.f32.xlu0 %v2733
    %v2735 = vpop.xlane.xlu0 %2734
    %v2736 = vsel %vm367, %v2713, -inf
    %2737 = vmax.xlane.f32.xlu0 %v2736
    %v2738 = vpop.xlane.xlu0 %2737
    %v2739 = vsel %vm367, %v2716, -inf
    %2740 = vmax.xlane.f32.xlu0 %v2739
    %v2741 = vpop.xlane.xlu0 %2740
    %v2742 = vsel %vm367, %v2719, -inf
    %2743 = vmax.xlane.f32.xlu0 %v2742
    %v2744 = vpop.xlane.xlu0 %2743
    %v2745 = vsel %vm367, %v2722, -inf
    %2746 = vmax.xlane.f32.xlu0 %v2745
    %v2747 = vpop.xlane.xlu0 %2746
    %v2748 = vsel %vm367, %v2725, -inf
    %2749 = vmax.xlane.f32.xlu0 %v2748
    %v2750 = vpop.xlane.xlu0 %2749
    %v2751 = vsub.f32 %v2704, %v2729
    %v2752 = vsub.f32 %v2707, %v2732
    %v2753 = vsub.f32 %v2710, %v2735
    %v2754 = vsub.f32 %v2713, %v2738
    %v2755 = vsub.f32 %v2716, %v2741
    %v2756 = vsub.f32 %v2719, %v2744
    %v2757 = vsub.f32 %v2722, %v2747
    %v2758 = vsub.f32 %v2725, %v2750
    %v2759 = vmul.f32 %v2751, 1.442695
    %v2760 = vpow.pop %v2759
    %v2761 = vmul.f32 %v2752, 1.442695
    %v2762 = vpow.pop %v2761
    %v2763 = vmul.f32 %v2753, 1.442695
    %v2764 = vpow.pop %v2763
    %v2765 = vmul.f32 %v2754, 1.442695
    %v2766 = vpow.pop %v2765
    %v2767 = vmul.f32 %v2755, 1.442695
    %v2768 = vpow.pop %v2767
    %v2769 = vmul.f32 %v2756, 1.442695
    %v2770 = vpow.pop %v2769
    %v2771 = vmul.f32 %v2757, 1.442695
    %v2772 = vpow.pop %v2771
    %v2773 = vmul.f32 %v2758, 1.442695
    %v2774 = vpow.pop %v2773
    %v2775 = vsel %vm367, %v2760, 0.0
    %2776 = vadd.xlane.f32.xlu0 %v2775
    %v2777 = vpop.xlane.xlu0 %2776
    %v2778 = vsel %vm367, %v2762, 0.0
    %2779 = vadd.xlane.f32.xlu0 %v2778
    %v2780 = vpop.xlane.xlu0 %2779
    %v2781 = vsel %vm367, %v2764, 0.0
    %2782 = vadd.xlane.f32.xlu0 %v2781
    %v2783 = vpop.xlane.xlu0 %2782
    %v2784 = vsel %vm367, %v2766, 0.0
    %2785 = vadd.xlane.f32.xlu0 %v2784
    %v2786 = vpop.xlane.xlu0 %2785
    %v2787 = vsel %vm367, %v2768, 0.0
    %2788 = vadd.xlane.f32.xlu0 %v2787
    %v2789 = vpop.xlane.xlu0 %2788
    %v2790 = vsel %vm367, %v2770, 0.0
    %2791 = vadd.xlane.f32.xlu0 %v2790
    %v2792 = vpop.xlane.xlu0 %2791
    %v2793 = vsel %vm367, %v2772, 0.0
    %2794 = vadd.xlane.f32.xlu0 %v2793
    %v2795 = vpop.xlane.xlu0 %2794
    %v2796 = vsel %vm367, %v2774, 0.0
    %2797 = vadd.xlane.f32.xlu0 %v2796
    %v2798 = vpop.xlane.xlu0 %2797
    %v2799 = vrcp.pop %v2777
    %v2800 = vrcp.pop %v2780
    %v2801 = vrcp.pop %v2783
    %v2802 = vrcp.pop %v2786
    %v2803 = vrcp.pop %v2789
    %v2804 = vrcp.pop %v2792
    %v2805 = vrcp.pop %v2795
    %v2806 = vrcp.pop %v2798
    %v2807 = vmul.f32 %v2760, %v2799
    %v2808 = vmul.f32 %v2762, %v2800
    %v2809 = vmul.f32 %v2764, %v2801
    %v2810 = vmul.f32 %v2766, %v2802
    %v2811 = vmul.f32 %v2768, %v2803
    %v2812 = vmul.f32 %v2770, %v2804
    %v2813 = vmul.f32 %v2772, %v2805
    %v2814 = vmul.f32 %v2774, %v2806
    %2815 = vrot.lane.b32.xlu0 %v2320, 56
    %v2816 = vpop.permute.xlu0 %2815
    %2817 = vrot.lane.b32.xlu0 %v2323, 56
    %v2818 = vpop.permute.xlu0 %2817
    %2819 = vrot.lane.b32.xlu0 %v2326, 56
    %v2820 = vpop.permute.xlu0 %2819
    %2821 = vrot.lane.b32.xlu0 %v2329, 56
    %v2822 = vpop.permute.xlu0 %2821
    %2823 = vrot.lane.b32.xlu0 %v2332, 56
    %v2824 = vpop.permute.xlu0 %2823
    %2825 = vrot.lane.b32.xlu0 %v2335, 56
    %v2826 = vpop.permute.xlu0 %2825
    %2827 = vrot.lane.b32.xlu0 %v2338, 56
    %v2828 = vpop.permute.xlu0 %2827
    %2829 = vrot.lane.b32.xlu0 %v2341, 56
    %v2830 = vpop.permute.xlu0 %2829
    %v2840 = vsel %vm367, %v2807, 0
    %v2843 = vsel %vm367, %v2808, 0
    %v2846 = vsel %vm367, %v2809, 0
    %v2849 = vsel %vm367, %v2810, 0
    %v2852 = vsel %vm367, %v2811, 0
    %v2855 = vsel %vm367, %v2812, 0
    %v2858 = vsel %vm367, %v2813, 0
    %v2861 = vsel %vm367, %v2814, 0
    %2863 = vmatpush.msra.mxu0 0.0
    %2864 = vmatpush.msra.mxu0 0.0
    %2865 = vmatpush.msra.mxu0 0.0
    %2866 = vmatpush.msra.mxu0 0.0
    %2867 = vmatpush.msra.mxu0 0.0
    %2868 = vmatpush.msra.mxu0 0.0
    %2869 = vmatpush.msra.mxu0 0.0
    %2870 = vmatpush.msra.mxu0 0.0
    %2871 = vmatpush.msra.mxu0 %v2830
    %2872 = vmatpush.msra.mxu0 %v2828
    %2873 = vmatpush.msra.mxu0 %v2826
    %2874 = vmatpush.msra.mxu0 %v2824
    %2875 = vmatpush.msra.mxu0 %v2822
    %2876 = vmatpush.msra.mxu0 %v2820
    %2877 = vmatpush.msra.mxu0 %v2818
    %2878 = vmatpush.msra.mxu0 %v2816
    %2879 = vmatmul.f32.gmra.mxu0 %v2840
    %v2880 = vpop.f32.mrf.mxu0
    %v2881 = vadd.f32 0.0, %v2880
    %2882 = vmatmul.f32.gmra.mxu0 %v2843
    %v2883 = vpop.f32.mrf.mxu0
    %v2884 = vadd.f32 0.0, %v2883
    %2885 = vmatmul.f32.gmra.mxu0 %v2846
    %v2886 = vpop.f32.mrf.mxu0
    %v2887 = vadd.f32 0.0, %v2886
    %2888 = vmatmul.f32.gmra.mxu0 %v2849
    %v2889 = vpop.f32.mrf.mxu0
    %v2890 = vadd.f32 0.0, %v2889
    %2891 = vmatmul.f32.gmra.mxu0 %v2852
    %v2892 = vpop.f32.mrf.mxu0
    %v2893 = vadd.f32 0.0, %v2892
    %2894 = vmatmul.f32.gmra.mxu0 %v2855
    %v2895 = vpop.f32.mrf.mxu0
    %v2896 = vadd.f32 0.0, %v2895
    %2897 = vmatmul.f32.gmra.mxu0 %v2858
    %v2898 = vpop.f32.mrf.mxu0
    %v2899 = vadd.f32 0.0, %v2898
    %2900 = vmatmul.f32.gmra.mxu0 %v2861
    %v2901 = vpop.f32.mrf.mxu0
    %v2902 = vadd.f32 0.0, %v2901
    %2903 = vdwg.mxu0
    %v2905 = vsel %vm293, %v2881, 0
    %v2908 = vsel %vm293, %v2884, 0
    %v2911 = vsel %vm293, %v2887, 0
    %v2914 = vsel %vm293, %v2890, 0
    %v2917 = vsel %vm293, %v2893, 0
    %v2920 = vsel %vm293, %v2896, 0
    %v2923 = vsel %vm293, %v2899, 0
    %v2926 = vsel %vm293, %v2902, 0
    %2928 = vmatpush.msra.mxu0 0.0
    %2929 = vmatpush.msra.mxu0 0.0
    %2930 = vmatpush.msra.mxu0 0.0
    %2931 = vmatpush.msra.mxu0 0.0
    %2932 = vmatpush.msra.mxu0 0.0
    %2933 = vmatpush.msra.mxu0 0.0
    %2934 = vmatpush.msra.mxu0 0.0
    %2935 = vmatpush.msra.mxu0 0.0
    %2936 = vmatpush.msra.mxu0 0.0
    %2937 = vmatpush.msra.mxu0 0.0
    %2938 = vmatpush.msra.mxu0 0.0
    %2939 = vmatpush.msra.mxu0 0.0
    %2940 = vmatpush.msra.mxu0 0.0
    %2941 = vmatpush.msra.mxu0 0.0
    %2942 = vmatpush.msra.mxu0 0.0
    %2943 = vmatpush.msra.mxu0 %v2345
    %2944 = vmatmul.f32.gmra.mxu0 %v2905
    %v2945 = vpop.f32.mrf.mxu0
    %v2946 = vadd.f32 0.0, %v2945
    %2947 = vmatmul.f32.gmra.mxu0 %v2908
    %v2948 = vpop.f32.mrf.mxu0
    %v2949 = vadd.f32 0.0, %v2948
    %2950 = vmatmul.f32.gmra.mxu0 %v2911
    %v2951 = vpop.f32.mrf.mxu0
    %v2952 = vadd.f32 0.0, %v2951
    %2953 = vmatmul.f32.gmra.mxu0 %v2914
    %v2954 = vpop.f32.mrf.mxu0
    %v2955 = vadd.f32 0.0, %v2954
    %2956 = vmatmul.f32.gmra.mxu0 %v2917
    %v2957 = vpop.f32.mrf.mxu0
    %v2958 = vadd.f32 0.0, %v2957
    %2959 = vmatmul.f32.gmra.mxu0 %v2920
    %v2960 = vpop.f32.mrf.mxu0
    %v2961 = vadd.f32 0.0, %v2960
    %2962 = vmatmul.f32.gmra.mxu0 %v2923
    %v2963 = vpop.f32.mrf.mxu0
    %v2964 = vadd.f32 0.0, %v2963
    %2965 = vmatmul.f32.gmra.mxu0 %v2926
    %v2966 = vpop.f32.mrf.mxu0
    %v2967 = vadd.f32 0.0, %v2966
    %2968 = vdwg.mxu0
    %v2970 = vsel %vm293, %v2599, 0
    %v2973 = vsel %vm293, %v2602, 0
    %v2976 = vsel %vm293, %v2605, 0
    %v2979 = vsel %vm293, %v2608, 0
    %v2982 = vsel %vm293, %v2611, 0
    %v2985 = vsel %vm293, %v2614, 0
    %v2988 = vsel %vm293, %v2617, 0
    %v2991 = vsel %vm293, %v2620, 0
    %2993 = vmatpush.msra.mxu0 0.0
    %2994 = vmatpush.msra.mxu0 0.0
    %2995 = vmatpush.msra.mxu0 0.0
    %2996 = vmatpush.msra.mxu0 0.0
    %2997 = vmatpush.msra.mxu0 0.0
    %2998 = vmatpush.msra.mxu0 0.0
    %2999 = vmatpush.msra.mxu0 0.0
    %3000 = vmatpush.msra.mxu0 0.0
    %3001 = vmatpush.msra.mxu0 0.0
    %3002 = vmatpush.msra.mxu0 0.0
    %3003 = vmatpush.msra.mxu0 0.0
    %3004 = vmatpush.msra.mxu0 0.0
    %3005 = vmatpush.msra.mxu0 0.0
    %3006 = vmatpush.msra.mxu0 0.0
    %3007 = vmatpush.msra.mxu0 0.0
    %3008 = vmatpush.msra.mxu0 %v2344
    %3009 = vmatmul.f32.gmra.mxu0 %v2970
    %v3010 = vpop.f32.mrf.mxu0
    %v3011 = vadd.f32 %v2946, %v3010
    %3012 = vmatmul.f32.gmra.mxu0 %v2973
    %v3013 = vpop.f32.mrf.mxu0
    %v3014 = vadd.f32 %v2949, %v3013
    %3015 = vmatmul.f32.gmra.mxu0 %v2976
    %v3016 = vpop.f32.mrf.mxu0
    %v3017 = vadd.f32 %v2952, %v3016
    %3018 = vmatmul.f32.gmra.mxu0 %v2979
    %v3019 = vpop.f32.mrf.mxu0
    %v3020 = vadd.f32 %v2955, %v3019
    %3021 = vmatmul.f32.gmra.mxu0 %v2982
    %v3022 = vpop.f32.mrf.mxu0
    %v3023 = vadd.f32 %v2958, %v3022
    %3024 = vmatmul.f32.gmra.mxu0 %v2985
    %v3025 = vpop.f32.mrf.mxu0
    %v3026 = vadd.f32 %v2961, %v3025
    %3027 = vmatmul.f32.gmra.mxu0 %v2988
    %v3028 = vpop.f32.mrf.mxu0
    %v3029 = vadd.f32 %v2964, %v3028
    %3030 = vmatmul.f32.gmra.mxu0 %v2991
    %v3031 = vpop.f32.mrf.mxu0
    %v3032 = vadd.f32 %v2967, %v3031
    %3033 = vdwg.mxu0
    %3034 = vrot.lane.b32.xlu0 %v2320, 112
    %v3035 = vpop.permute.xlu0 %3034
    %3036 = vrot.lane.b32.xlu0 %v2323, 112
    %v3037 = vpop.permute.xlu0 %3036
    %3038 = vrot.lane.b32.xlu0 %v2326, 112
    %v3039 = vpop.permute.xlu0 %3038
    %3040 = vrot.lane.b32.xlu0 %v2329, 112
    %v3041 = vpop.permute.xlu0 %3040
    %3042 = vrot.lane.b32.xlu0 %v2332, 112
    %v3043 = vpop.permute.xlu0 %3042
    %3044 = vrot.lane.b32.xlu0 %v2335, 112
    %v3045 = vpop.permute.xlu0 %3044
    %3046 = vrot.lane.b32.xlu0 %v2338, 112
    %v3047 = vpop.permute.xlu0 %3046
    %3048 = vrot.lane.b32.xlu0 %v2341, 112
    %v3049 = vpop.permute.xlu0 %3048
    %3050 = vrot.lane.b32.xlu0 %v2320, 80
    %v3051 = vpop.permute.xlu0 %3050
    %3052 = vrot.lane.b32.xlu0 %v2323, 80
    %v3053 = vpop.permute.xlu0 %3052
    %3054 = vrot.lane.b32.xlu0 %v2326, 80
    %v3055 = vpop.permute.xlu0 %3054
    %3056 = vrot.lane.b32.xlu0 %v2329, 80
    %v3057 = vpop.permute.xlu0 %3056
    %3058 = vrot.lane.b32.xlu0 %v2332, 80
    %v3059 = vpop.permute.xlu0 %3058
    %3060 = vrot.lane.b32.xlu0 %v2335, 80
    %v3061 = vpop.permute.xlu0 %3060
    %3062 = vrot.lane.b32.xlu0 %v2338, 80
    %v3063 = vpop.permute.xlu0 %3062
    %3064 = vrot.lane.b32.xlu0 %v2341, 80
    %v3065 = vpop.permute.xlu0 %3064
    %v3066 = vsel %vm293, %v3035, 0
    %v3068 = vsel %vm293, %v3037, 0
    %v3070 = vsel %vm293, %v3039, 0
    %v3072 = vsel %vm293, %v3041, 0
    %v3074 = vsel %vm293, %v3043, 0
    %v3076 = vsel %vm293, %v3045, 0
    %v3078 = vsel %vm293, %v3047, 0
    %v3080 = vsel %vm293, %v3049, 0
    %v3082 = vsel %vm293, %v3051, 0
    %v3084 = vsel %vm293, %v3053, 0
    %v3086 = vsel %vm293, %v3055, 0
    %v3088 = vsel %vm293, %v3057, 0
    %v3090 = vsel %vm293, %v3059, 0
    %v3092 = vsel %vm293, %v3061, 0
    %v3094 = vsel %vm293, %v3063, 0
    %v3096 = vsel %vm293, %v3065, 0
    %3098 = vmatpush.xpose.msra.mxu0 0.0
    %3099 = vmatpush.xpose.msra.mxu0 0.0
    %3100 = vmatpush.xpose.msra.mxu0 0.0
    %3101 = vmatpush.xpose.msra.mxu0 0.0
    %3102 = vmatpush.xpose.msra.mxu0 0.0
    %3103 = vmatpush.xpose.msra.mxu0 0.0
    %3104 = vmatpush.xpose.msra.mxu0 0.0
    %3105 = vmatpush.xpose.msra.mxu0 0.0
    %3106 = vmatpush.xpose.msra.mxu0 %v3096
    %3107 = vmatpush.xpose.msra.mxu0 %v3094
    %3108 = vmatpush.xpose.msra.mxu0 %v3092
    %3109 = vmatpush.xpose.msra.mxu0 %v3090
    %3110 = vmatpush.xpose.msra.mxu0 %v3088
    %3111 = vmatpush.xpose.msra.mxu0 %v3086
    %3112 = vmatpush.xpose.msra.mxu0 %v3084
    %3113 = vmatpush.xpose.msra.mxu0 %v3082
    %3114 = vmatmul.f32.gmra.mxu0 %v3066
    %v3115 = vpop.f32.mrf.mxu0
    %v3116 = vadd.f32 %v175, %v3115
    %3117 = vmatmul.f32.gmra.mxu0 %v3068
    %v3118 = vpop.f32.mrf.mxu0
    %v3119 = vadd.f32 %v176, %v3118
    %3120 = vmatmul.f32.gmra.mxu0 %v3070
    %v3121 = vpop.f32.mrf.mxu0
    %v3122 = vadd.f32 %v177, %v3121
    %3123 = vmatmul.f32.gmra.mxu0 %v3072
    %v3124 = vpop.f32.mrf.mxu0
    %v3125 = vadd.f32 %v178, %v3124
    %3126 = vmatmul.f32.gmra.mxu0 %v3074
    %v3127 = vpop.f32.mrf.mxu0
    %v3128 = vadd.f32 %v179, %v3127
    %3129 = vmatmul.f32.gmra.mxu0 %v3076
    %v3130 = vpop.f32.mrf.mxu0
    %v3131 = vadd.f32 %v180, %v3130
    %3132 = vmatmul.f32.gmra.mxu0 %v3078
    %v3133 = vpop.f32.mrf.mxu0
    %v3134 = vadd.f32 %v181, %v3133
    %3135 = vmatmul.f32.gmra.mxu0 %v3080
    %v3136 = vpop.f32.mrf.mxu0
    %v3137 = vadd.f32 %v182, %v3136
    %3138 = vdwg.mxu0
    %v3139 = vsel %vm367, %v3116, -inf
    %3140 = vmax.xlane.f32.xlu0 %v3139
    %v3141 = vpop.xlane.xlu0 %3140
    %v3142 = vsel %vm367, %v3119, -inf
    %3143 = vmax.xlane.f32.xlu0 %v3142
    %v3144 = vpop.xlane.xlu0 %3143
    %v3145 = vsel %vm367, %v3122, -inf
    %3146 = vmax.xlane.f32.xlu0 %v3145
    %v3147 = vpop.xlane.xlu0 %3146
    %v3148 = vsel %vm367, %v3125, -inf
    %3149 = vmax.xlane.f32.xlu0 %v3148
    %v3150 = vpop.xlane.xlu0 %3149
    %v3151 = vsel %vm367, %v3128, -inf
    %3152 = vmax.xlane.f32.xlu0 %v3151
    %v3153 = vpop.xlane.xlu0 %3152
    %v3154 = vsel %vm367, %v3131, -inf
    %3155 = vmax.xlane.f32.xlu0 %v3154
    %v3156 = vpop.xlane.xlu0 %3155
    %v3157 = vsel %vm367, %v3134, -inf
    %3158 = vmax.xlane.f32.xlu0 %v3157
    %v3159 = vpop.xlane.xlu0 %3158
    %v3160 = vsel %vm367, %v3137, -inf
    %3161 = vmax.xlane.f32.xlu0 %v3160
    %v3162 = vpop.xlane.xlu0 %3161
    %v3163 = vsub.f32 %v3116, %v3141
    %v3164 = vsub.f32 %v3119, %v3144
    %v3165 = vsub.f32 %v3122, %v3147
    %v3166 = vsub.f32 %v3125, %v3150
    %v3167 = vsub.f32 %v3128, %v3153
    %v3168 = vsub.f32 %v3131, %v3156
    %v3169 = vsub.f32 %v3134, %v3159
    %v3170 = vsub.f32 %v3137, %v3162
    %v3171 = vmul.f32 %v3163, 1.442695
    %v3172 = vpow.pop %v3171
    %v3173 = vmul.f32 %v3164, 1.442695
    %v3174 = vpow.pop %v3173
    %v3175 = vmul.f32 %v3165, 1.442695
    %v3176 = vpow.pop %v3175
    %v3177 = vmul.f32 %v3166, 1.442695
    %v3178 = vpow.pop %v3177
    %v3179 = vmul.f32 %v3167, 1.442695
    %v3180 = vpow.pop %v3179
    %v3181 = vmul.f32 %v3168, 1.442695
    %v3182 = vpow.pop %v3181
    %v3183 = vmul.f32 %v3169, 1.442695
    %v3184 = vpow.pop %v3183
    %v3185 = vmul.f32 %v3170, 1.442695
    %v3186 = vpow.pop %v3185
    %v3187 = vsel %vm367, %v3172, 0.0
    %3188 = vadd.xlane.f32.xlu0 %v3187
    %v3189 = vpop.xlane.xlu0 %3188
    %v3190 = vsel %vm367, %v3174, 0.0
    %3191 = vadd.xlane.f32.xlu0 %v3190
    %v3192 = vpop.xlane.xlu0 %3191
    %v3193 = vsel %vm367, %v3176, 0.0
    %3194 = vadd.xlane.f32.xlu0 %v3193
    %v3195 = vpop.xlane.xlu0 %3194
    %v3196 = vsel %vm367, %v3178, 0.0
    %3197 = vadd.xlane.f32.xlu0 %v3196
    %v3198 = vpop.xlane.xlu0 %3197
    %v3199 = vsel %vm367, %v3180, 0.0
    %3200 = vadd.xlane.f32.xlu0 %v3199
    %v3201 = vpop.xlane.xlu0 %3200
    %v3202 = vsel %vm367, %v3182, 0.0
    %3203 = vadd.xlane.f32.xlu0 %v3202
    %v3204 = vpop.xlane.xlu0 %3203
    %v3205 = vsel %vm367, %v3184, 0.0
    %3206 = vadd.xlane.f32.xlu0 %v3205
    %v3207 = vpop.xlane.xlu0 %3206
    %v3208 = vsel %vm367, %v3186, 0.0
    %3209 = vadd.xlane.f32.xlu0 %v3208
    %v3210 = vpop.xlane.xlu0 %3209
    %v3211 = vrcp.pop %v3189
    %v3212 = vrcp.pop %v3192
    %v3213 = vrcp.pop %v3195
    %v3214 = vrcp.pop %v3198
    %v3215 = vrcp.pop %v3201
    %v3216 = vrcp.pop %v3204
    %v3217 = vrcp.pop %v3207
    %v3218 = vrcp.pop %v3210
    %v3219 = vmul.f32 %v3172, %v3211
    %v3220 = vmul.f32 %v3174, %v3212
    %v3221 = vmul.f32 %v3176, %v3213
    %v3222 = vmul.f32 %v3178, %v3214
    %v3223 = vmul.f32 %v3180, %v3215
    %v3224 = vmul.f32 %v3182, %v3216
    %v3225 = vmul.f32 %v3184, %v3217
    %v3226 = vmul.f32 %v3186, %v3218
    %3227 = vrot.lane.b32.xlu0 %v2320, 48
    %v3228 = vpop.permute.xlu0 %3227
    %3229 = vrot.lane.b32.xlu0 %v2323, 48
    %v3230 = vpop.permute.xlu0 %3229
    %3231 = vrot.lane.b32.xlu0 %v2326, 48
    %v3232 = vpop.permute.xlu0 %3231
    %3233 = vrot.lane.b32.xlu0 %v2329, 48
    %v3234 = vpop.permute.xlu0 %3233
    %3235 = vrot.lane.b32.xlu0 %v2332, 48
    %v3236 = vpop.permute.xlu0 %3235
    %3237 = vrot.lane.b32.xlu0 %v2335, 48
    %v3238 = vpop.permute.xlu0 %3237
    %3239 = vrot.lane.b32.xlu0 %v2338, 48
    %v3240 = vpop.permute.xlu0 %3239
    %3241 = vrot.lane.b32.xlu0 %v2341, 48
    %v3242 = vpop.permute.xlu0 %3241
    %v3252 = vsel %vm367, %v3219, 0
    %v3255 = vsel %vm367, %v3220, 0
    %v3258 = vsel %vm367, %v3221, 0
    %v3261 = vsel %vm367, %v3222, 0
    %v3264 = vsel %vm367, %v3223, 0
    %v3267 = vsel %vm367, %v3224, 0
    %v3270 = vsel %vm367, %v3225, 0
    %v3273 = vsel %vm367, %v3226, 0
    %3275 = vmatpush.msra.mxu0 0.0
    %3276 = vmatpush.msra.mxu0 0.0
    %3277 = vmatpush.msra.mxu0 0.0
    %3278 = vmatpush.msra.mxu0 0.0
    %3279 = vmatpush.msra.mxu0 0.0
    %3280 = vmatpush.msra.mxu0 0.0
    %3281 = vmatpush.msra.mxu0 0.0
    %3282 = vmatpush.msra.mxu0 0.0
    %3283 = vmatpush.msra.mxu0 %v3242
    %3284 = vmatpush.msra.mxu0 %v3240
    %3285 = vmatpush.msra.mxu0 %v3238
    %3286 = vmatpush.msra.mxu0 %v3236
    %3287 = vmatpush.msra.mxu0 %v3234
    %3288 = vmatpush.msra.mxu0 %v3232
    %3289 = vmatpush.msra.mxu0 %v3230
    %3290 = vmatpush.msra.mxu0 %v3228
    %3291 = vmatmul.f32.gmra.mxu0 %v3252
    %v3292 = vpop.f32.mrf.mxu0
    %v3293 = vadd.f32 0.0, %v3292
    %3294 = vmatmul.f32.gmra.mxu0 %v3255
    %v3295 = vpop.f32.mrf.mxu0
    %v3296 = vadd.f32 0.0, %v3295
    %3297 = vmatmul.f32.gmra.mxu0 %v3258
    %v3298 = vpop.f32.mrf.mxu0
    %v3299 = vadd.f32 0.0, %v3298
    %3300 = vmatmul.f32.gmra.mxu0 %v3261
    %v3301 = vpop.f32.mrf.mxu0
    %v3302 = vadd.f32 0.0, %v3301
    %3303 = vmatmul.f32.gmra.mxu0 %v3264
    %v3304 = vpop.f32.mrf.mxu0
    %v3305 = vadd.f32 0.0, %v3304
    %3306 = vmatmul.f32.gmra.mxu0 %v3267
    %v3307 = vpop.f32.mrf.mxu0
    %v3308 = vadd.f32 0.0, %v3307
    %3309 = vmatmul.f32.gmra.mxu0 %v3270
    %v3310 = vpop.f32.mrf.mxu0
    %v3311 = vadd.f32 0.0, %v3310
    %3312 = vmatmul.f32.gmra.mxu0 %v3273
    %v3313 = vpop.f32.mrf.mxu0
    %v3314 = vadd.f32 0.0, %v3313
    %3315 = vdwg.mxu0
    %v3317 = vsel %vm293, %v3293, 0
    %v3320 = vsel %vm293, %v3296, 0
    %v3323 = vsel %vm293, %v3299, 0
    %v3326 = vsel %vm293, %v3302, 0
    %v3329 = vsel %vm293, %v3305, 0
    %v3332 = vsel %vm293, %v3308, 0
    %v3335 = vsel %vm293, %v3311, 0
    %v3338 = vsel %vm293, %v3314, 0
    %3340 = vmatpush.msra.mxu0 0.0
    %3341 = vmatpush.msra.mxu0 0.0
    %3342 = vmatpush.msra.mxu0 0.0
    %3343 = vmatpush.msra.mxu0 0.0
    %3344 = vmatpush.msra.mxu0 0.0
    %3345 = vmatpush.msra.mxu0 0.0
    %3346 = vmatpush.msra.mxu0 0.0
    %3347 = vmatpush.msra.mxu0 0.0
    %3348 = vmatpush.msra.mxu0 0.0
    %3349 = vmatpush.msra.mxu0 0.0
    %3350 = vmatpush.msra.mxu0 0.0
    %3351 = vmatpush.msra.mxu0 0.0
    %3352 = vmatpush.msra.mxu0 0.0
    %3353 = vmatpush.msra.mxu0 0.0
    %3354 = vmatpush.msra.mxu0 0.0
    %3355 = vmatpush.msra.mxu0 %v2346
    %3356 = vmatmul.f32.gmra.mxu0 %v3317
    %v3357 = vpop.f32.mrf.mxu0
    %v3358 = vadd.f32 0.0, %v3357
    %3359 = vmatmul.f32.gmra.mxu0 %v3320
    %v3360 = vpop.f32.mrf.mxu0
    %v3361 = vadd.f32 0.0, %v3360
    %3362 = vmatmul.f32.gmra.mxu0 %v3323
    %v3363 = vpop.f32.mrf.mxu0
    %v3364 = vadd.f32 0.0, %v3363
    %3365 = vmatmul.f32.gmra.mxu0 %v3326
    %v3366 = vpop.f32.mrf.mxu0
    %v3367 = vadd.f32 0.0, %v3366
    %3368 = vmatmul.f32.gmra.mxu0 %v3329
    %v3369 = vpop.f32.mrf.mxu0
    %v3370 = vadd.f32 0.0, %v3369
    %3371 = vmatmul.f32.gmra.mxu0 %v3332
    %v3372 = vpop.f32.mrf.mxu0
    %v3373 = vadd.f32 0.0, %v3372
    %3374 = vmatmul.f32.gmra.mxu0 %v3335
    %v3375 = vpop.f32.mrf.mxu0
    %v3376 = vadd.f32 0.0, %v3375
    %3377 = vmatmul.f32.gmra.mxu0 %v3338
    %v3378 = vpop.f32.mrf.mxu0
    %v3379 = vadd.f32 0.0, %v3378
    %3380 = vdwg.mxu0
    %v3381 = vadd.f32 %v3011, %v3358
    %v3382 = vadd.f32 %v3014, %v3361
    %v3383 = vadd.f32 %v3017, %v3364
    %v3384 = vadd.f32 %v3020, %v3367
    %v3385 = vadd.f32 %v3023, %v3370
    %v3386 = vadd.f32 %v3026, %v3373
    %v3387 = vadd.f32 %v3029, %v3376
    %v3388 = vadd.f32 %v3032, %v3379
    %3389 = vrot.lane.b32.xlu0 %v2320, 104
    %v3390 = vpop.permute.xlu0 %3389
    %3391 = vrot.lane.b32.xlu0 %v2323, 104
    %v3392 = vpop.permute.xlu0 %3391
    %3393 = vrot.lane.b32.xlu0 %v2326, 104
    %v3394 = vpop.permute.xlu0 %3393
    %3395 = vrot.lane.b32.xlu0 %v2329, 104
    %v3396 = vpop.permute.xlu0 %3395
    %3397 = vrot.lane.b32.xlu0 %v2332, 104
    %v3398 = vpop.permute.xlu0 %3397
    %3399 = vrot.lane.b32.xlu0 %v2335, 104
    %v3400 = vpop.permute.xlu0 %3399
    %3401 = vrot.lane.b32.xlu0 %v2338, 104
    %v3402 = vpop.permute.xlu0 %3401
    %3403 = vrot.lane.b32.xlu0 %v2341, 104
    %v3404 = vpop.permute.xlu0 %3403
    %3405 = vrot.lane.b32.xlu0 %v2320, 72
    %v3406 = vpop.permute.xlu0 %3405
    %3407 = vrot.lane.b32.xlu0 %v2323, 72
    %v3408 = vpop.permute.xlu0 %3407
    %3409 = vrot.lane.b32.xlu0 %v2326, 72
    %v3410 = vpop.permute.xlu0 %3409
    %3411 = vrot.lane.b32.xlu0 %v2329, 72
    %v3412 = vpop.permute.xlu0 %3411
    %3413 = vrot.lane.b32.xlu0 %v2332, 72
    %v3414 = vpop.permute.xlu0 %3413
    %3415 = vrot.lane.b32.xlu0 %v2335, 72
    %v3416 = vpop.permute.xlu0 %3415
    %3417 = vrot.lane.b32.xlu0 %v2338, 72
    %v3418 = vpop.permute.xlu0 %3417
    %3419 = vrot.lane.b32.xlu0 %v2341, 72
    %v3420 = vpop.permute.xlu0 %3419
    %v3421 = vsel %vm293, %v3390, 0
    %v3423 = vsel %vm293, %v3392, 0
    %v3425 = vsel %vm293, %v3394, 0
    %v3427 = vsel %vm293, %v3396, 0
    %v3429 = vsel %vm293, %v3398, 0
    %v3431 = vsel %vm293, %v3400, 0
    %v3433 = vsel %vm293, %v3402, 0
    %v3435 = vsel %vm293, %v3404, 0
    %v3437 = vsel %vm293, %v3406, 0
    %v3439 = vsel %vm293, %v3408, 0
    %v3441 = vsel %vm293, %v3410, 0
    %v3443 = vsel %vm293, %v3412, 0
    %v3445 = vsel %vm293, %v3414, 0
    %v3447 = vsel %vm293, %v3416, 0
    %v3449 = vsel %vm293, %v3418, 0
    %v3451 = vsel %vm293, %v3420, 0
    %3453 = vmatpush.xpose.msra.mxu0 0.0
    %3454 = vmatpush.xpose.msra.mxu0 0.0
    %3455 = vmatpush.xpose.msra.mxu0 0.0
    %3456 = vmatpush.xpose.msra.mxu0 0.0
    %3457 = vmatpush.xpose.msra.mxu0 0.0
    %3458 = vmatpush.xpose.msra.mxu0 0.0
    %3459 = vmatpush.xpose.msra.mxu0 0.0
    %3460 = vmatpush.xpose.msra.mxu0 0.0
    %3461 = vmatpush.xpose.msra.mxu0 %v3451
    %3462 = vmatpush.xpose.msra.mxu0 %v3449
    %3463 = vmatpush.xpose.msra.mxu0 %v3447
    %3464 = vmatpush.xpose.msra.mxu0 %v3445
    %3465 = vmatpush.xpose.msra.mxu0 %v3443
    %3466 = vmatpush.xpose.msra.mxu0 %v3441
    %3467 = vmatpush.xpose.msra.mxu0 %v3439
    %3468 = vmatpush.xpose.msra.mxu0 %v3437
    %3469 = vmatmul.f32.gmra.mxu0 %v3421
    %v3470 = vpop.f32.mrf.mxu0
    %v3471 = vadd.f32 %v175, %v3470
    %3472 = vmatmul.f32.gmra.mxu0 %v3423
    %v3473 = vpop.f32.mrf.mxu0
    %v3474 = vadd.f32 %v176, %v3473
    %3475 = vmatmul.f32.gmra.mxu0 %v3425
    %v3476 = vpop.f32.mrf.mxu0
    %v3477 = vadd.f32 %v177, %v3476
    %3478 = vmatmul.f32.gmra.mxu0 %v3427
    %v3479 = vpop.f32.mrf.mxu0
    %v3480 = vadd.f32 %v178, %v3479
    %3481 = vmatmul.f32.gmra.mxu0 %v3429
    %v3482 = vpop.f32.mrf.mxu0
    %v3483 = vadd.f32 %v179, %v3482
    %3484 = vmatmul.f32.gmra.mxu0 %v3431
    %v3485 = vpop.f32.mrf.mxu0
    %v3486 = vadd.f32 %v180, %v3485
    %3487 = vmatmul.f32.gmra.mxu0 %v3433
    %v3488 = vpop.f32.mrf.mxu0
    %v3489 = vadd.f32 %v181, %v3488
    %3490 = vmatmul.f32.gmra.mxu0 %v3435
    %v3491 = vpop.f32.mrf.mxu0
    %v3492 = vadd.f32 %v182, %v3491
    %3493 = vdwg.mxu0
    %v3494 = vsel %vm367, %v3471, -inf
    %3495 = vmax.xlane.f32.xlu0 %v3494
    %v3496 = vpop.xlane.xlu0 %3495
    %v3497 = vsel %vm367, %v3474, -inf
    %3498 = vmax.xlane.f32.xlu0 %v3497
    %v3499 = vpop.xlane.xlu0 %3498
    %v3500 = vsel %vm367, %v3477, -inf
    %3501 = vmax.xlane.f32.xlu0 %v3500
    %v3502 = vpop.xlane.xlu0 %3501
    %v3503 = vsel %vm367, %v3480, -inf
    %3504 = vmax.xlane.f32.xlu0 %v3503
    %v3505 = vpop.xlane.xlu0 %3504
    %v3506 = vsel %vm367, %v3483, -inf
    %3507 = vmax.xlane.f32.xlu0 %v3506
    %v3508 = vpop.xlane.xlu0 %3507
    %v3509 = vsel %vm367, %v3486, -inf
    %3510 = vmax.xlane.f32.xlu0 %v3509
    %v3511 = vpop.xlane.xlu0 %3510
    %v3512 = vsel %vm367, %v3489, -inf
    %3513 = vmax.xlane.f32.xlu0 %v3512
    %v3514 = vpop.xlane.xlu0 %3513
    %v3515 = vsel %vm367, %v3492, -inf
    %3516 = vmax.xlane.f32.xlu0 %v3515
    %v3517 = vpop.xlane.xlu0 %3516
    %v3518 = vsub.f32 %v3471, %v3496
    %v3519 = vsub.f32 %v3474, %v3499
    %v3520 = vsub.f32 %v3477, %v3502
    %v3521 = vsub.f32 %v3480, %v3505
    %v3522 = vsub.f32 %v3483, %v3508
    %v3523 = vsub.f32 %v3486, %v3511
    %v3524 = vsub.f32 %v3489, %v3514
    %v3525 = vsub.f32 %v3492, %v3517
    %v3526 = vmul.f32 %v3518, 1.442695
    %v3527 = vpow.pop %v3526
    %v3528 = vmul.f32 %v3519, 1.442695
    %v3529 = vpow.pop %v3528
    %v3530 = vmul.f32 %v3520, 1.442695
    %v3531 = vpow.pop %v3530
    %v3532 = vmul.f32 %v3521, 1.442695
    %v3533 = vpow.pop %v3532
    %v3534 = vmul.f32 %v3522, 1.442695
    %v3535 = vpow.pop %v3534
    %v3536 = vmul.f32 %v3523, 1.442695
    %v3537 = vpow.pop %v3536
    %v3538 = vmul.f32 %v3524, 1.442695
    %v3539 = vpow.pop %v3538
    %v3540 = vmul.f32 %v3525, 1.442695
    %v3541 = vpow.pop %v3540
    %v3542 = vsel %vm367, %v3527, 0.0
    %3543 = vadd.xlane.f32.xlu0 %v3542
    %v3544 = vpop.xlane.xlu0 %3543
    %v3545 = vsel %vm367, %v3529, 0.0
    %3546 = vadd.xlane.f32.xlu0 %v3545
    %v3547 = vpop.xlane.xlu0 %3546
    %v3548 = vsel %vm367, %v3531, 0.0
    %3549 = vadd.xlane.f32.xlu0 %v3548
    %v3550 = vpop.xlane.xlu0 %3549
    %v3551 = vsel %vm367, %v3533, 0.0
    %3552 = vadd.xlane.f32.xlu0 %v3551
    %v3553 = vpop.xlane.xlu0 %3552
    %v3554 = vsel %vm367, %v3535, 0.0
    %3555 = vadd.xlane.f32.xlu0 %v3554
    %v3556 = vpop.xlane.xlu0 %3555
    %v3557 = vsel %vm367, %v3537, 0.0
    %3558 = vadd.xlane.f32.xlu0 %v3557
    %v3559 = vpop.xlane.xlu0 %3558
    %v3560 = vsel %vm367, %v3539, 0.0
    %3561 = vadd.xlane.f32.xlu0 %v3560
    %v3562 = vpop.xlane.xlu0 %3561
    %v3563 = vsel %vm367, %v3541, 0.0
    %3564 = vadd.xlane.f32.xlu0 %v3563
    %v3565 = vpop.xlane.xlu0 %3564
    %v3566 = vrcp.pop %v3544
    %v3567 = vrcp.pop %v3547
    %v3568 = vrcp.pop %v3550
    %v3569 = vrcp.pop %v3553
    %v3570 = vrcp.pop %v3556
    %v3571 = vrcp.pop %v3559
    %v3572 = vrcp.pop %v3562
    %v3573 = vrcp.pop %v3565
    %v3574 = vmul.f32 %v3527, %v3566
    %v3575 = vmul.f32 %v3529, %v3567
    %v3576 = vmul.f32 %v3531, %v3568
    %v3577 = vmul.f32 %v3533, %v3569
    %v3578 = vmul.f32 %v3535, %v3570
    %v3579 = vmul.f32 %v3537, %v3571
    %v3580 = vmul.f32 %v3539, %v3572
    %v3581 = vmul.f32 %v3541, %v3573
    %3582 = vrot.lane.b32.xlu0 %v2320, 40
    %v3583 = vpop.permute.xlu0 %3582
    %3584 = vrot.lane.b32.xlu0 %v2323, 40
    %v3585 = vpop.permute.xlu0 %3584
    %3586 = vrot.lane.b32.xlu0 %v2326, 40
    %v3587 = vpop.permute.xlu0 %3586
    %3588 = vrot.lane.b32.xlu0 %v2329, 40
    %v3589 = vpop.permute.xlu0 %3588
    %3590 = vrot.lane.b32.xlu0 %v2332, 40
    %v3591 = vpop.permute.xlu0 %3590
    %3592 = vrot.lane.b32.xlu0 %v2335, 40
    %v3593 = vpop.permute.xlu0 %3592
    %3594 = vrot.lane.b32.xlu0 %v2338, 40
    %v3595 = vpop.permute.xlu0 %3594
    %3596 = vrot.lane.b32.xlu0 %v2341, 40
    %v3597 = vpop.permute.xlu0 %3596
    %v3607 = vsel %vm367, %v3574, 0
    %v3610 = vsel %vm367, %v3575, 0
    %v3613 = vsel %vm367, %v3576, 0
    %v3616 = vsel %vm367, %v3577, 0
    %v3619 = vsel %vm367, %v3578, 0
    %v3622 = vsel %vm367, %v3579, 0
    %v3625 = vsel %vm367, %v3580, 0
    %v3628 = vsel %vm367, %v3581, 0
    %3630 = vmatpush.msra.mxu0 0.0
    %3631 = vmatpush.msra.mxu0 0.0
    %3632 = vmatpush.msra.mxu0 0.0
    %3633 = vmatpush.msra.mxu0 0.0
    %3634 = vmatpush.msra.mxu0 0.0
    %3635 = vmatpush.msra.mxu0 0.0
    %3636 = vmatpush.msra.mxu0 0.0
    %3637 = vmatpush.msra.mxu0 0.0
    %3638 = vmatpush.msra.mxu0 %v3597
    %3639 = vmatpush.msra.mxu0 %v3595
    %3640 = vmatpush.msra.mxu0 %v3593
    %3641 = vmatpush.msra.mxu0 %v3591
    %3642 = vmatpush.msra.mxu0 %v3589
    %3643 = vmatpush.msra.mxu0 %v3587
    %3644 = vmatpush.msra.mxu0 %v3585
    %3645 = vmatpush.msra.mxu0 %v3583
    %3646 = vmatmul.f32.gmra.mxu0 %v3607
    %v3647 = vpop.f32.mrf.mxu0
    %v3648 = vadd.f32 0.0, %v3647
    %3649 = vmatmul.f32.gmra.mxu0 %v3610
    %v3650 = vpop.f32.mrf.mxu0
    %v3651 = vadd.f32 0.0, %v3650
    %3652 = vmatmul.f32.gmra.mxu0 %v3613
    %v3653 = vpop.f32.mrf.mxu0
    %v3654 = vadd.f32 0.0, %v3653
    %3655 = vmatmul.f32.gmra.mxu0 %v3616
    %v3656 = vpop.f32.mrf.mxu0
    %v3657 = vadd.f32 0.0, %v3656
    %3658 = vmatmul.f32.gmra.mxu0 %v3619
    %v3659 = vpop.f32.mrf.mxu0
    %v3660 = vadd.f32 0.0, %v3659
    %3661 = vmatmul.f32.gmra.mxu0 %v3622
    %v3662 = vpop.f32.mrf.mxu0
    %v3663 = vadd.f32 0.0, %v3662
    %3664 = vmatmul.f32.gmra.mxu0 %v3625
    %v3665 = vpop.f32.mrf.mxu0
    %v3666 = vadd.f32 0.0, %v3665
    %3667 = vmatmul.f32.gmra.mxu0 %v3628
    %v3668 = vpop.f32.mrf.mxu0
    %v3669 = vadd.f32 0.0, %v3668
    %3670 = vdwg.mxu0
    %v3672 = vsel %vm293, %v3648, 0
    %v3675 = vsel %vm293, %v3651, 0
    %v3678 = vsel %vm293, %v3654, 0
    %v3681 = vsel %vm293, %v3657, 0
    %v3684 = vsel %vm293, %v3660, 0
    %v3687 = vsel %vm293, %v3663, 0
    %v3690 = vsel %vm293, %v3666, 0
    %v3693 = vsel %vm293, %v3669, 0
    %3695 = vmatpush.msra.mxu0 0.0
    %3696 = vmatpush.msra.mxu0 0.0
    %3697 = vmatpush.msra.mxu0 0.0
    %3698 = vmatpush.msra.mxu0 0.0
    %3699 = vmatpush.msra.mxu0 0.0
    %3700 = vmatpush.msra.mxu0 0.0
    %3701 = vmatpush.msra.mxu0 0.0
    %3702 = vmatpush.msra.mxu0 0.0
    %3703 = vmatpush.msra.mxu0 0.0
    %3704 = vmatpush.msra.mxu0 0.0
    %3705 = vmatpush.msra.mxu0 0.0
    %3706 = vmatpush.msra.mxu0 0.0
    %3707 = vmatpush.msra.mxu0 0.0
    %3708 = vmatpush.msra.mxu0 0.0
    %3709 = vmatpush.msra.mxu0 0.0
    %3710 = vmatpush.msra.mxu0 %v2347
    %3711 = vmatmul.f32.gmra.mxu0 %v3672
    %v3712 = vpop.f32.mrf.mxu0
    %v3713 = vadd.f32 0.0, %v3712
    %3714 = vmatmul.f32.gmra.mxu0 %v3675
    %v3715 = vpop.f32.mrf.mxu0
    %v3716 = vadd.f32 0.0, %v3715
    %3717 = vmatmul.f32.gmra.mxu0 %v3678
    %v3718 = vpop.f32.mrf.mxu0
    %v3719 = vadd.f32 0.0, %v3718
    %3720 = vmatmul.f32.gmra.mxu0 %v3681
    %v3721 = vpop.f32.mrf.mxu0
    %v3722 = vadd.f32 0.0, %v3721
    %3723 = vmatmul.f32.gmra.mxu0 %v3684
    %v3724 = vpop.f32.mrf.mxu0
    %v3725 = vadd.f32 0.0, %v3724
    %3726 = vmatmul.f32.gmra.mxu0 %v3687
    %v3727 = vpop.f32.mrf.mxu0
    %v3728 = vadd.f32 0.0, %v3727
    %3729 = vmatmul.f32.gmra.mxu0 %v3690
    %v3730 = vpop.f32.mrf.mxu0
    %v3731 = vadd.f32 0.0, %v3730
    %3732 = vmatmul.f32.gmra.mxu0 %v3693
    %v3733 = vpop.f32.mrf.mxu0
    %v3734 = vadd.f32 0.0, %v3733
    %3735 = vdwg.mxu0
    %v3736 = vadd.f32 %v3381, %v3713
    %v3737 = vadd.f32 %v3382, %v3716
    %v3738 = vadd.f32 %v3383, %v3719
    %v3739 = vadd.f32 %v3384, %v3722
    %v3740 = vadd.f32 %v3385, %v3725
    %v3741 = vadd.f32 %v3386, %v3728
    %v3742 = vadd.f32 %v3387, %v3731
    %v3743 = vadd.f32 %v3388, %v3734
    %s3744 = scalar_lea.vmem %s6, 1
    %v3745 = vld [vmem:[%s3744] sm:$0x1]
    %v3747 = vperm.slane %v3745, 0
    %v3749 = vadd.f32 %v3736, %v3747
    %v3750 = vadd.f32 %v3737, %v3747
    %v3751 = vadd.f32 %v3738, %v3747
    %v3752 = vadd.f32 %v3739, %v3747
    %v3753 = vadd.f32 %v3740, %v3747
    %v3754 = vadd.f32 %v3741, %v3747
    %v3755 = vadd.f32 %v3742, %v3747
    %v3756 = vadd.f32 %v3743, %v3747
    %v3757 = vadd.f32 %v2260, %v3749
    %v3758 = vadd.f32 %v2261, %v3750
    %v3759 = vadd.f32 %v2262, %v3751
    %v3760 = vadd.f32 %v2263, %v3752
    %v3761 = vadd.f32 %v2264, %v3753
    %v3762 = vadd.f32 %v2265, %v3754
    %v3763 = vadd.f32 %v2266, %v3755
    %v3764 = vadd.f32 %v2267, %v3756
    %s3765 = scalar_lea.vmem [#allocation4], 1
    %v3766 = vld [vmem:[%s3765] sm:$0x1]
    %s3767 = scalar_lea.vmem [#allocation6], 1
    %v3768 = vld [vmem:[%s3767] sm:$0x1]
    %v3769 = vsel %vm199, %v3757, 0.0
    %3770 = vadd.xlane.f32.xlu0 %v3769
    %v3771 = vpop.xlane.xlu0 %3770
    %v3772 = vsel %vm199, %v3758, 0.0
    %3773 = vadd.xlane.f32.xlu0 %v3772
    %v3774 = vpop.xlane.xlu0 %3773
    %v3775 = vsel %vm199, %v3759, 0.0
    %3776 = vadd.xlane.f32.xlu0 %v3775
    %v3777 = vpop.xlane.xlu0 %3776
    %v3778 = vsel %vm199, %v3760, 0.0
    %3779 = vadd.xlane.f32.xlu0 %v3778
    %v3780 = vpop.xlane.xlu0 %3779
    %v3781 = vsel %vm199, %v3761, 0.0
    %3782 = vadd.xlane.f32.xlu0 %v3781
    %v3783 = vpop.xlane.xlu0 %3782
    %v3784 = vsel %vm199, %v3762, 0.0
    %3785 = vadd.xlane.f32.xlu0 %v3784
    %v3786 = vpop.xlane.xlu0 %3785
    %v3787 = vsel %vm199, %v3763, 0.0
    %3788 = vadd.xlane.f32.xlu0 %v3787
    %v3789 = vpop.xlane.xlu0 %3788
    %v3790 = vsel %vm199, %v3764, 0.0
    %3791 = vadd.xlane.f32.xlu0 %v3790
    %v3792 = vpop.xlane.xlu0 %3791
    %v3793 = vmul.f32 %v3771, %v1719
    %v3794 = vmul.f32 %v3774, %v1719
    %v3795 = vmul.f32 %v3777, %v1719
    %v3796 = vmul.f32 %v3780, %v1719
    %v3797 = vmul.f32 %v3783, %v1719
    %v3798 = vmul.f32 %v3786, %v1719
    %v3799 = vmul.f32 %v3789, %v1719
    %v3800 = vmul.f32 %v3792, %v1719
    %v3801 = vsub.f32 %v3757, %v3793
    %v3802 = vsub.f32 %v3758, %v3794
    %v3803 = vsub.f32 %v3759, %v3795
    %v3804 = vsub.f32 %v3760, %v3796
    %v3805 = vsub.f32 %v3761, %v3797
    %v3806 = vsub.f32 %v3762, %v3798
    %v3807 = vsub.f32 %v3763, %v3799
    %v3808 = vsub.f32 %v3764, %v3800
    %v3809 = vmul.f32 %v3801, %v3801
    %v3810 = vmul.f32 %v3802, %v3802
    %v3811 = vmul.f32 %v3803, %v3803
    %v3812 = vmul.f32 %v3804, %v3804
    %v3813 = vmul.f32 %v3805, %v3805
    %v3814 = vmul.f32 %v3806, %v3806
    %v3815 = vmul.f32 %v3807, %v3807
    %v3816 = vmul.f32 %v3808, %v3808
    %v3817 = vsel %vm199, %v3809, 0.0
    %3818 = vadd.xlane.f32.xlu0 %v3817
    %v3819 = vpop.xlane.xlu0 %3818
    %v3820 = vsel %vm199, %v3810, 0.0
    %3821 = vadd.xlane.f32.xlu0 %v3820
    %v3822 = vpop.xlane.xlu0 %3821
    %v3823 = vsel %vm199, %v3811, 0.0
    %3824 = vadd.xlane.f32.xlu0 %v3823
    %v3825 = vpop.xlane.xlu0 %3824
    %v3826 = vsel %vm199, %v3812, 0.0
    %3827 = vadd.xlane.f32.xlu0 %v3826
    %v3828 = vpop.xlane.xlu0 %3827
    %v3829 = vsel %vm199, %v3813, 0.0
    %3830 = vadd.xlane.f32.xlu0 %v3829
    %v3831 = vpop.xlane.xlu0 %3830
    %v3832 = vsel %vm199, %v3814, 0.0
    %3833 = vadd.xlane.f32.xlu0 %v3832
    %v3834 = vpop.xlane.xlu0 %3833
    %v3835 = vsel %vm199, %v3815, 0.0
    %3836 = vadd.xlane.f32.xlu0 %v3835
    %v3837 = vpop.xlane.xlu0 %3836
    %v3838 = vsel %vm199, %v3816, 0.0
    %3839 = vadd.xlane.f32.xlu0 %v3838
    %v3840 = vpop.xlane.xlu0 %3839
    %v3841 = vmul.f32 %v3819, %v1719
    %v3842 = vmul.f32 %v3822, %v1719
    %v3843 = vmul.f32 %v3825, %v1719
    %v3844 = vmul.f32 %v3828, %v1719
    %v3845 = vmul.f32 %v3831, %v1719
    %v3846 = vmul.f32 %v3834, %v1719
    %v3847 = vmul.f32 %v3837, %v1719
    %v3848 = vmul.f32 %v3840, %v1719
    %v3849 = vadd.f32 %v3841, 1e-05
    %v3850 = vadd.f32 %v3842, 1e-05
    %v3851 = vadd.f32 %v3843, 1e-05
    %v3852 = vadd.f32 %v3844, 1e-05
    %v3853 = vadd.f32 %v3845, 1e-05
    %v3854 = vadd.f32 %v3846, 1e-05
    %v3855 = vadd.f32 %v3847, 1e-05
    %v3856 = vadd.f32 %v3848, 1e-05
    %v3857 = vrsqrt.pop %v3849
    %v3858 = vmul.f32 %v3857, %v3849
    %v3859 = vmul.f32 %v3858, %v3857
    %v3860 = vmul.f32 0.5, %v3859
    %v3861 = vsub.f32 1.5, %v3860
    %v3862 = vmul.f32 %v3857, %v3861
    %vm3863 = vweird.f32 %v3849
    %vm3864 = vweird.f32 %v3857
    %vm3865 = vmor %vm3863, %vm3864
    %v3866 = vsel %vm3865, %v3857, %v3862
    %v3867 = vrsqrt.pop %v3850
    %v3868 = vmul.f32 %v3867, %v3850
    %v3869 = vmul.f32 %v3868, %v3867
    %v3870 = vmul.f32 0.5, %v3869
    %v3871 = vsub.f32 1.5, %v3870
    %v3872 = vmul.f32 %v3867, %v3871
    %vm3873 = vweird.f32 %v3850
    %vm3874 = vweird.f32 %v3867
    %vm3875 = vmor %vm3873, %vm3874
    %v3876 = vsel %vm3875, %v3867, %v3872
    %v3877 = vrsqrt.pop %v3851
    %v3878 = vmul.f32 %v3877, %v3851
    %v3879 = vmul.f32 %v3878, %v3877
    %v3880 = vmul.f32 0.5, %v3879
    %v3881 = vsub.f32 1.5, %v3880
    %v3882 = vmul.f32 %v3877, %v3881
    %vm3883 = vweird.f32 %v3851
    %vm3884 = vweird.f32 %v3877
    %vm3885 = vmor %vm3883, %vm3884
    %v3886 = vsel %vm3885, %v3877, %v3882
    %v3887 = vrsqrt.pop %v3852
    %v3888 = vmul.f32 %v3887, %v3852
    %v3889 = vmul.f32 %v3888, %v3887
    %v3890 = vmul.f32 0.5, %v3889
    %v3891 = vsub.f32 1.5, %v3890
    %v3892 = vmul.f32 %v3887, %v3891
    %vm3893 = vweird.f32 %v3852
    %vm3894 = vweird.f32 %v3887
    %vm3895 = vmor %vm3893, %vm3894
    %v3896 = vsel %vm3895, %v3887, %v3892
    %v3897 = vrsqrt.pop %v3853
    %v3898 = vmul.f32 %v3897, %v3853
    %v3899 = vmul.f32 %v3898, %v3897
    %v3900 = vmul.f32 0.5, %v3899
    %v3901 = vsub.f32 1.5, %v3900
    %v3902 = vmul.f32 %v3897, %v3901
    %vm3903 = vweird.f32 %v3853
    %vm3904 = vweird.f32 %v3897
    %vm3905 = vmor %vm3903, %vm3904
    %v3906 = vsel %vm3905, %v3897, %v3902
    %v3907 = vrsqrt.pop %v3854
    %v3908 = vmul.f32 %v3907, %v3854
    %v3909 = vmul.f32 %v3908, %v3907
    %v3910 = vmul.f32 0.5, %v3909
    %v3911 = vsub.f32 1.5, %v3910
    %v3912 = vmul.f32 %v3907, %v3911
    %vm3913 = vweird.f32 %v3854
    %vm3914 = vweird.f32 %v3907
    %vm3915 = vmor %vm3913, %vm3914
    %v3916 = vsel %vm3915, %v3907, %v3912
    %v3917 = vrsqrt.pop %v3855
    %v3918 = vmul.f32 %v3917, %v3855
    %v3919 = vmul.f32 %v3918, %v3917
    %v3920 = vmul.f32 0.5, %v3919
    %v3921 = vsub.f32 1.5, %v3920
    %v3922 = vmul.f32 %v3917, %v3921
    %vm3923 = vweird.f32 %v3855
    %vm3924 = vweird.f32 %v3917
    %vm3925 = vmor %vm3923, %vm3924
    %v3926 = vsel %vm3925, %v3917, %v3922
    %v3927 = vrsqrt.pop %v3856
    %v3928 = vmul.f32 %v3927, %v3856
    %v3929 = vmul.f32 %v3928, %v3927
    %v3930 = vmul.f32 0.5, %v3929
    %v3931 = vsub.f32 1.5, %v3930
    %v3932 = vmul.f32 %v3927, %v3931
    %vm3933 = vweird.f32 %v3856
    %vm3934 = vweird.f32 %v3927
    %vm3935 = vmor %vm3933, %vm3934
    %v3936 = vsel %vm3935, %v3927, %v3932
    %v3937 = vmul.f32 %v3801, %v3866
    %v3938 = vmul.f32 %v3802, %v3876
    %v3939 = vmul.f32 %v3803, %v3886
    %v3940 = vmul.f32 %v3804, %v3896
    %v3941 = vmul.f32 %v3805, %v3906
    %v3942 = vmul.f32 %v3806, %v3916
    %v3943 = vmul.f32 %v3807, %v3926
    %v3944 = vmul.f32 %v3808, %v3936
    %v3946 = vperm.slane %v3766, 0
    %v3948 = vmul.f32 %v3937, %v3946
    %v3949 = vmul.f32 %v3938, %v3946
    %v3950 = vmul.f32 %v3939, %v3946
    %v3951 = vmul.f32 %v3940, %v3946
    %v3952 = vmul.f32 %v3941, %v3946
    %v3953 = vmul.f32 %v3942, %v3946
    %v3954 = vmul.f32 %v3943, %v3946
    %v3955 = vmul.f32 %v3944, %v3946
    %v3957 = vperm.slane %v3768, 0
    %v3959 = vadd.f32 %v3948, %v3957
    %v3960 = vadd.f32 %v3949, %v3957
    %v3961 = vadd.f32 %v3950, %v3957
    %v3962 = vadd.f32 %v3951, %v3957
    %v3963 = vadd.f32 %v3952, %v3957
    %v3964 = vadd.f32 %v3953, %v3957
    %v3965 = vadd.f32 %v3954, %v3957
    %v3966 = vadd.f32 %v3955, %v3957
    %s3967 = scalar_lea.vmem %s9, 32
    %v3968 = vld [vmem:[%s3967] sm:$0xff]
    %v3969 = vld [vmem:[%s3967 + $0x8] sm:$0xff]
    %v3970 = vld [vmem:[%s3967 + $0x10] sm:$0xff]
    %v3971 = vld [vmem:[%s3967 + $0x18] sm:$0xff]
    %s3972 = scalar_lea.vmem %s10, 1
    %v3973 = vld [vmem:[%s3972] sm:$0x1]
    %v3975 = vperm.slane %v3973, 0
    %v3978 = vsel %vm199, %v3959, 0
    %v3981 = vsel %vm199, %v3960, 0
    %v3984 = vsel %vm199, %v3961, 0
    %v3987 = vsel %vm199, %v3962, 0
    %v3990 = vsel %vm199, %v3963, 0
    %v3993 = vsel %vm199, %v3964, 0
    %v3996 = vsel %vm199, %v3965, 0
    %v3999 = vsel %vm199, %v3966, 0
    %4001 = vmatpush.msra.mxu0 0.0
    %4002 = vmatpush.msra.mxu0 0.0
    %4003 = vmatpush.msra.mxu0 0.0
    %4004 = vmatpush.msra.mxu0 0.0
    %4005 = vmatpush.msra.mxu0 0.0
    %4006 = vmatpush.msra.mxu0 0.0
    %4007 = vmatpush.msra.mxu0 0.0
    %4008 = vmatpush.msra.mxu0 0.0
    %4009 = vmatpush.msra.mxu0 0.0
    %4010 = vmatpush.msra.mxu0 0.0
    %4011 = vmatpush.msra.mxu0 0.0
    %4012 = vmatpush.msra.mxu0 0.0
    %4013 = vmatpush.msra.mxu0 %v3971
    %4014 = vmatpush.msra.mxu0 %v3970
    %4015 = vmatpush.msra.mxu0 %v3969
    %4016 = vmatpush.msra.mxu0 %v3968
    %4017 = vmatmul.f32.gmra.mxu0 %v3978
    %v4018 = vpop.f32.mrf.mxu0
    %v4019 = vadd.f32 %v3975, %v4018
    %4020 = vmatmul.f32.gmra.mxu0 %v3981
    %v4021 = vpop.f32.mrf.mxu0
    %v4022 = vadd.f32 %v3975, %v4021
    %4023 = vmatmul.f32.gmra.mxu0 %v3984
    %v4024 = vpop.f32.mrf.mxu0
    %v4025 = vadd.f32 %v3975, %v4024
    %4026 = vmatmul.f32.gmra.mxu0 %v3987
    %v4027 = vpop.f32.mrf.mxu0
    %v4028 = vadd.f32 %v3975, %v4027
    %4029 = vmatmul.f32.gmra.mxu0 %v3990
    %v4030 = vpop.f32.mrf.mxu0
    %v4031 = vadd.f32 %v3975, %v4030
    %4032 = vmatmul.f32.gmra.mxu0 %v3993
    %v4033 = vpop.f32.mrf.mxu0
    %v4034 = vadd.f32 %v3975, %v4033
    %4035 = vmatmul.f32.gmra.mxu0 %v3996
    %v4036 = vpop.f32.mrf.mxu0
    %v4037 = vadd.f32 %v3975, %v4036
    %4038 = vmatmul.f32.gmra.mxu0 %v3999
    %v4039 = vpop.f32.mrf.mxu0
    %v4040 = vadd.f32 %v3975, %v4039
    %4041 = vdwg.mxu0
    %v4042 = vmax.f32 %v4019, 0.0
    %v4043 = vmax.f32 %v4022, 0.0
    %v4044 = vmax.f32 %v4025, 0.0
    %v4045 = vmax.f32 %v4028, 0.0
    %v4046 = vmax.f32 %v4031, 0.0
    %v4047 = vmax.f32 %v4034, 0.0
    %v4048 = vmax.f32 %v4037, 0.0
    %v4049 = vmax.f32 %v4040, 0.0
    %s4050 = scalar_lea.vmem %s11, 64
    %v4051 = vld [vmem:[%s4050] sm:$0xff]
    %v4052 = vld [vmem:[%s4050 + $0x8] sm:$0xff]
    %v4053 = vld [vmem:[%s4050 + $0x10] sm:$0xff]
    %v4054 = vld [vmem:[%s4050 + $0x18] sm:$0xff]
    %v4055 = vld [vmem:[%s4050 + $0x20] sm:$0xff]
    %v4056 = vld [vmem:[%s4050 + $0x28] sm:$0xff]
    %v4057 = vld [vmem:[%s4050 + $0x30] sm:$0xff]
    %v4058 = vld [vmem:[%s4050 + $0x38] sm:$0xff]
    %s4059 = scalar_lea.vmem [#allocation7], 1
    %v4060 = vld [vmem:[%s4059] sm:$0x1]
    %v4062 = vperm.slane %v4060, 0
    %v4065 = vsel %vm367, %v4042, 0
    %v4068 = vsel %vm367, %v4043, 0
    %v4071 = vsel %vm367, %v4044, 0
    %v4074 = vsel %vm367, %v4045, 0
    %v4077 = vsel %vm367, %v4046, 0
    %v4080 = vsel %vm367, %v4047, 0
    %v4083 = vsel %vm367, %v4048, 0
    %v4086 = vsel %vm367, %v4049, 0
    %4088 = vmatpush.msra.mxu0 0.0
    %4089 = vmatpush.msra.mxu0 0.0
    %4090 = vmatpush.msra.mxu0 0.0
    %4091 = vmatpush.msra.mxu0 0.0
    %4092 = vmatpush.msra.mxu0 0.0
    %4093 = vmatpush.msra.mxu0 0.0
    %4094 = vmatpush.msra.mxu0 0.0
    %4095 = vmatpush.msra.mxu0 0.0
    %4096 = vmatpush.msra.mxu0 %v4058
    %4097 = vmatpush.msra.mxu0 %v4057
    %4098 = vmatpush.msra.mxu0 %v4056
    %4099 = vmatpush.msra.mxu0 %v4055
    %4100 = vmatpush.msra.mxu0 %v4054
    %4101 = vmatpush.msra.mxu0 %v4053
    %4102 = vmatpush.msra.mxu0 %v4052
    %4103 = vmatpush.msra.mxu0 %v4051
    %4104 = vmatmul.f32.gmra.mxu0 %v4065
    %v4105 = vpop.f32.mrf.mxu0
    %v4106 = vadd.f32 %v4062, %v4105
    %4107 = vmatmul.f32.gmra.mxu0 %v4068
    %v4108 = vpop.f32.mrf.mxu0
    %v4109 = vadd.f32 %v4062, %v4108
    %4110 = vmatmul.f32.gmra.mxu0 %v4071
    %v4111 = vpop.f32.mrf.mxu0
    %v4112 = vadd.f32 %v4062, %v4111
    %4113 = vmatmul.f32.gmra.mxu0 %v4074
    %v4114 = vpop.f32.mrf.mxu0
    %v4115 = vadd.f32 %v4062, %v4114
    %4116 = vmatmul.f32.gmra.mxu0 %v4077
    %v4117 = vpop.f32.mrf.mxu0
    %v4118 = vadd.f32 %v4062, %v4117
    %4119 = vmatmul.f32.gmra.mxu0 %v4080
    %v4120 = vpop.f32.mrf.mxu0
    %v4121 = vadd.f32 %v4062, %v4120
    %4122 = vmatmul.f32.gmra.mxu0 %v4083
    %v4123 = vpop.f32.mrf.mxu0
    %v4124 = vadd.f32 %v4062, %v4123
    %4125 = vmatmul.f32.gmra.mxu0 %v4086
    %v4126 = vpop.f32.mrf.mxu0
    %v4127 = vadd.f32 %v4062, %v4126
    %4128 = vdwg.mxu0
    %v4129 = vadd.f32 %v3959, %v4106
    %v4130 = vadd.f32 %v3960, %v4109
    %v4131 = vadd.f32 %v3961, %v4112
    %v4132 = vadd.f32 %v3962, %v4115
    %v4133 = vadd.f32 %v3963, %v4118
    %v4134 = vadd.f32 %v3964, %v4121
    %v4135 = vadd.f32 %v3965, %v4124
    %v4136 = vadd.f32 %v3966, %v4127
    %s4137 = scalar_lea.vmem [#allocation9], 1
    %v4138 = vld [vmem:[%s4137] sm:$0x1]
    %s4139 = scalar_lea.vmem [#allocation10], 1
    %v4140 = vld [vmem:[%s4139] sm:$0x1]
    %v4141 = vsel %vm199, %v4129, 0.0
    %4142 = vadd.xlane.f32.xlu0 %v4141
    %v4143 = vpop.xlane.xlu0 %4142
    %v4144 = vsel %vm199, %v4130, 0.0
    %4145 = vadd.xlane.f32.xlu0 %v4144
    %v4146 = vpop.xlane.xlu0 %4145
    %v4147 = vsel %vm199, %v4131, 0.0
    %4148 = vadd.xlane.f32.xlu0 %v4147
    %v4149 = vpop.xlane.xlu0 %4148
    %v4150 = vsel %vm199, %v4132, 0.0
    %4151 = vadd.xlane.f32.xlu0 %v4150
    %v4152 = vpop.xlane.xlu0 %4151
    %v4153 = vsel %vm199, %v4133, 0.0
    %4154 = vadd.xlane.f32.xlu0 %v4153
    %v4155 = vpop.xlane.xlu0 %4154
    %v4156 = vsel %vm199, %v4134, 0.0
    %4157 = vadd.xlane.f32.xlu0 %v4156
    %v4158 = vpop.xlane.xlu0 %4157
    %v4159 = vsel %vm199, %v4135, 0.0
    %4160 = vadd.xlane.f32.xlu0 %v4159
    %v4161 = vpop.xlane.xlu0 %4160
    %v4162 = vsel %vm199, %v4136, 0.0
    %4163 = vadd.xlane.f32.xlu0 %v4162
    %v4164 = vpop.xlane.xlu0 %4163
    %v4165 = vmul.f32 %v4143, %v1719
    %v4166 = vmul.f32 %v4146, %v1719
    %v4167 = vmul.f32 %v4149, %v1719
    %v4168 = vmul.f32 %v4152, %v1719
    %v4169 = vmul.f32 %v4155, %v1719
    %v4170 = vmul.f32 %v4158, %v1719
    %v4171 = vmul.f32 %v4161, %v1719
    %v4172 = vmul.f32 %v4164, %v1719
    %v4173 = vsub.f32 %v4129, %v4165
    %v4174 = vsub.f32 %v4130, %v4166
    %v4175 = vsub.f32 %v4131, %v4167
    %v4176 = vsub.f32 %v4132, %v4168
    %v4177 = vsub.f32 %v4133, %v4169
    %v4178 = vsub.f32 %v4134, %v4170
    %v4179 = vsub.f32 %v4135, %v4171
    %v4180 = vsub.f32 %v4136, %v4172
    %v4181 = vmul.f32 %v4173, %v4173
    %v4182 = vmul.f32 %v4174, %v4174
    %v4183 = vmul.f32 %v4175, %v4175
    %v4184 = vmul.f32 %v4176, %v4176
    %v4185 = vmul.f32 %v4177, %v4177
    %v4186 = vmul.f32 %v4178, %v4178
    %v4187 = vmul.f32 %v4179, %v4179
    %v4188 = vmul.f32 %v4180, %v4180
    %v4189 = vsel %vm199, %v4181, 0.0
    %4190 = vadd.xlane.f32.xlu0 %v4189
    %v4191 = vpop.xlane.xlu0 %4190
    %v4192 = vsel %vm199, %v4182, 0.0
    %4193 = vadd.xlane.f32.xlu0 %v4192
    %v4194 = vpop.xlane.xlu0 %4193
    %v4195 = vsel %vm199, %v4183, 0.0
    %4196 = vadd.xlane.f32.xlu0 %v4195
    %v4197 = vpop.xlane.xlu0 %4196
    %v4198 = vsel %vm199, %v4184, 0.0
    %4199 = vadd.xlane.f32.xlu0 %v4198
    %v4200 = vpop.xlane.xlu0 %4199
    %v4201 = vsel %vm199, %v4185, 0.0
    %4202 = vadd.xlane.f32.xlu0 %v4201
    %v4203 = vpop.xlane.xlu0 %4202
    %v4204 = vsel %vm199, %v4186, 0.0
    %4205 = vadd.xlane.f32.xlu0 %v4204
    %v4206 = vpop.xlane.xlu0 %4205
    %v4207 = vsel %vm199, %v4187, 0.0
    %4208 = vadd.xlane.f32.xlu0 %v4207
    %v4209 = vpop.xlane.xlu0 %4208
    %v4210 = vsel %vm199, %v4188, 0.0
    %4211 = vadd.xlane.f32.xlu0 %v4210
    %v4212 = vpop.xlane.xlu0 %4211
    %v4213 = vmul.f32 %v4191, %v1719
    %v4214 = vmul.f32 %v4194, %v1719
    %v4215 = vmul.f32 %v4197, %v1719
    %v4216 = vmul.f32 %v4200, %v1719
    %v4217 = vmul.f32 %v4203, %v1719
    %v4218 = vmul.f32 %v4206, %v1719
    %v4219 = vmul.f32 %v4209, %v1719
    %v4220 = vmul.f32 %v4212, %v1719
    %v4221 = vadd.f32 %v4213, 1e-05
    %v4222 = vadd.f32 %v4214, 1e-05
    %v4223 = vadd.f32 %v4215, 1e-05
    %v4224 = vadd.f32 %v4216, 1e-05
    %v4225 = vadd.f32 %v4217, 1e-05
    %v4226 = vadd.f32 %v4218, 1e-05
    %v4227 = vadd.f32 %v4219, 1e-05
    %v4228 = vadd.f32 %v4220, 1e-05
    %v4229 = vrsqrt.pop %v4221
    %v4230 = vmul.f32 %v4229, %v4221
    %v4231 = vmul.f32 %v4230, %v4229
    %v4232 = vmul.f32 0.5, %v4231
    %v4233 = vsub.f32 1.5, %v4232
    %v4234 = vmul.f32 %v4229, %v4233
    %vm4235 = vweird.f32 %v4221
    %vm4236 = vweird.f32 %v4229
    %vm4237 = vmor %vm4235, %vm4236
    %v4238 = vsel %vm4237, %v4229, %v4234
    %v4239 = vrsqrt.pop %v4222
    %v4240 = vmul.f32 %v4239, %v4222
    %v4241 = vmul.f32 %v4240, %v4239
    %v4242 = vmul.f32 0.5, %v4241
    %v4243 = vsub.f32 1.5, %v4242
    %v4244 = vmul.f32 %v4239, %v4243
    %vm4245 = vweird.f32 %v4222
    %vm4246 = vweird.f32 %v4239
    %vm4247 = vmor %vm4245, %vm4246
    %v4248 = vsel %vm4247, %v4239, %v4244
    %v4249 = vrsqrt.pop %v4223
    %v4250 = vmul.f32 %v4249, %v4223
    %v4251 = vmul.f32 %v4250, %v4249
    %v4252 = vmul.f32 0.5, %v4251
    %v4253 = vsub.f32 1.5, %v4252
    %v4254 = vmul.f32 %v4249, %v4253
    %vm4255 = vweird.f32 %v4223
    %vm4256 = vweird.f32 %v4249
    %vm4257 = vmor %vm4255, %vm4256
    %v4258 = vsel %vm4257, %v4249, %v4254
    %v4259 = vrsqrt.pop %v4224
    %v4260 = vmul.f32 %v4259, %v4224
    %v4261 = vmul.f32 %v4260, %v4259
    %v4262 = vmul.f32 0.5, %v4261
    %v4263 = vsub.f32 1.5, %v4262
    %v4264 = vmul.f32 %v4259, %v4263
    %vm4265 = vweird.f32 %v4224
    %vm4266 = vweird.f32 %v4259
    %vm4267 = vmor %vm4265, %vm4266
    %v4268 = vsel %vm4267, %v4259, %v4264
    %v4269 = vrsqrt.pop %v4225
    %v4270 = vmul.f32 %v4269, %v4225
    %v4271 = vmul.f32 %v4270, %v4269
    %v4272 = vmul.f32 0.5, %v4271
    %v4273 = vsub.f32 1.5, %v4272
    %v4274 = vmul.f32 %v4269, %v4273
    %vm4275 = vweird.f32 %v4225
    %vm4276 = vweird.f32 %v4269
    %vm4277 = vmor %vm4275, %vm4276
    %v4278 = vsel %vm4277, %v4269, %v4274
    %v4279 = vrsqrt.pop %v4226
    %v4280 = vmul.f32 %v4279, %v4226
    %v4281 = vmul.f32 %v4280, %v4279
    %v4282 = vmul.f32 0.5, %v4281
    %v4283 = vsub.f32 1.5, %v4282
    %v4284 = vmul.f32 %v4279, %v4283
    %vm4285 = vweird.f32 %v4226
    %vm4286 = vweird.f32 %v4279
    %vm4287 = vmor %vm4285, %vm4286
    %v4288 = vsel %vm4287, %v4279, %v4284
    %v4289 = vrsqrt.pop %v4227
    %v4290 = vmul.f32 %v4289, %v4227
    %v4291 = vmul.f32 %v4290, %v4289
    %v4292 = vmul.f32 0.5, %v4291
    %v4293 = vsub.f32 1.5, %v4292
    %v4294 = vmul.f32 %v4289, %v4293
    %vm4295 = vweird.f32 %v4227
    %vm4296 = vweird.f32 %v4289
    %vm4297 = vmor %vm4295, %vm4296
    %v4298 = vsel %vm4297, %v4289, %v4294
    %v4299 = vrsqrt.pop %v4228
    %v4300 = vmul.f32 %v4299, %v4228
    %v4301 = vmul.f32 %v4300, %v4299
    %v4302 = vmul.f32 0.5, %v4301
    %v4303 = vsub.f32 1.5, %v4302
    %v4304 = vmul.f32 %v4299, %v4303
    %vm4305 = vweird.f32 %v4228
    %vm4306 = vweird.f32 %v4299
    %vm4307 = vmor %vm4305, %vm4306
    %v4308 = vsel %vm4307, %v4299, %v4304
    %v4309 = vmul.f32 %v4173, %v4238
    %v4310 = vmul.f32 %v4174, %v4248
    %v4311 = vmul.f32 %v4175, %v4258
    %v4312 = vmul.f32 %v4176, %v4268
    %v4313 = vmul.f32 %v4177, %v4278
    %v4314 = vmul.f32 %v4178, %v4288
    %v4315 = vmul.f32 %v4179, %v4298
    %v4316 = vmul.f32 %v4180, %v4308
    %v4318 = vperm.slane %v4138, 0
    %v4320 = vmul.f32 %v4309, %v4318
    %v4321 = vmul.f32 %v4310, %v4318
    %v4322 = vmul.f32 %v4311, %v4318
    %v4323 = vmul.f32 %v4312, %v4318
    %v4324 = vmul.f32 %v4313, %v4318
    %v4325 = vmul.f32 %v4314, %v4318
    %v4326 = vmul.f32 %v4315, %v4318
    %v4327 = vmul.f32 %v4316, %v4318
    %v4329 = vperm.slane %v4140, 0
    %v4331 = vadd.f32 %v4320, %v4329
    %v4332 = vadd.f32 %v4321, %v4329
    %v4333 = vadd.f32 %v4322, %v4329
    %v4334 = vadd.f32 %v4323, %v4329
    %v4335 = vadd.f32 %v4324, %v4329
    %v4336 = vadd.f32 %v4325, %v4329
    %v4337 = vadd.f32 %v4326, %v4329
    %v4338 = vadd.f32 %v4327, %v4329
    %v4339 = vld [vmem:[%s15] sm:$0xff]
    %v4340 = vld [vmem:[%s15 + $0x8] sm:$0xff]
    %v4341 = vld [vmem:[%s15 + $0x10] sm:$0xff]
    %v4342 = vld [vmem:[%s15 + $0x18] sm:$0xff]
    %v4343 = vld [vmem:[%s16] sm:$0x1]
    %v4345 = vperm.slane %v4343, 0
    %v4348 = vsel %vm199, %v4331, 0
    %v4351 = vsel %vm199, %v4332, 0
    %v4354 = vsel %vm199, %v4333, 0
    %v4357 = vsel %vm199, %v4334, 0
    %v4360 = vsel %vm199, %v4335, 0
    %v4363 = vsel %vm199, %v4336, 0
    %v4366 = vsel %vm199, %v4337, 0
    %v4369 = vsel %vm199, %v4338, 0
    %4371 = vmatpush.msra.mxu0 0.0
    %4372 = vmatpush.msra.mxu0 0.0
    %4373 = vmatpush.msra.mxu0 0.0
    %4374 = vmatpush.msra.mxu0 0.0
    %4375 = vmatpush.msra.mxu0 0.0
    %4376 = vmatpush.msra.mxu0 0.0
    %4377 = vmatpush.msra.mxu0 0.0
    %4378 = vmatpush.msra.mxu0 0.0
    %4379 = vmatpush.msra.mxu0 0.0
    %4380 = vmatpush.msra.mxu0 0.0
    %4381 = vmatpush.msra.mxu0 0.0
    %4382 = vmatpush.msra.mxu0 0.0
    %4383 = vmatpush.msra.mxu0 %v4342
    %4384 = vmatpush.msra.mxu0 %v4341
    %4385 = vmatpush.msra.mxu0 %v4340
    %4386 = vmatpush.msra.mxu0 %v4339
    %4387 = vmatmul.f32.gmra.mxu0 %v4348
    %v4388 = vpop.f32.mrf.mxu0
    %v4389 = vadd.f32 %v4345, %v4388
    %4390 = vmatmul.f32.gmra.mxu0 %v4351
    %v4391 = vpop.f32.mrf.mxu0
    %v4392 = vadd.f32 %v4345, %v4391
    %4393 = vmatmul.f32.gmra.mxu0 %v4354
    %v4394 = vpop.f32.mrf.mxu0
    %v4395 = vadd.f32 %v4345, %v4394
    %4396 = vmatmul.f32.gmra.mxu0 %v4357
    %v4397 = vpop.f32.mrf.mxu0
    %v4398 = vadd.f32 %v4345, %v4397
    %4399 = vmatmul.f32.gmra.mxu0 %v4360
    %v4400 = vpop.f32.mrf.mxu0
    %v4401 = vadd.f32 %v4345, %v4400
    %4402 = vmatmul.f32.gmra.mxu0 %v4363
    %v4403 = vpop.f32.mrf.mxu0
    %v4404 = vadd.f32 %v4345, %v4403
    %4405 = vmatmul.f32.gmra.mxu0 %v4366
    %v4406 = vpop.f32.mrf.mxu0
    %v4407 = vadd.f32 %v4345, %v4406
    %4408 = vmatmul.f32.gmra.mxu0 %v4369
    %v4409 = vpop.f32.mrf.mxu0
    %v4410 = vadd.f32 %v4345, %v4409
    %4411 = vdwg.mxu0
    %v4412 = vld [vmem:[%s17] sm:$0xff]
    %v4413 = vld [vmem:[%s17 + $0x8] sm:$0xff]
    %v4414 = vld [vmem:[%s17 + $0x10] sm:$0xff]
    %v4415 = vld [vmem:[%s17 + $0x18] sm:$0xff]
    %v4416 = vld [vmem:[%s18] sm:$0x1]
    %v4418 = vperm.slane %v4416, 0
    %v4421 = vsel %vm199, %v4389, 0
    %v4424 = vsel %vm199, %v4392, 0
    %v4427 = vsel %vm199, %v4395, 0
    %v4430 = vsel %vm199, %v4398, 0
    %v4433 = vsel %vm199, %v4401, 0
    %v4436 = vsel %vm199, %v4404, 0
    %v4439 = vsel %vm199, %v4407, 0
    %v4442 = vsel %vm199, %v4410, 0
    %4444 = vmatpush.msra.mxu0 0.0
    %4445 = vmatpush.msra.mxu0 0.0
    %4446 = vmatpush.msra.mxu0 0.0
    %4447 = vmatpush.msra.mxu0 0.0
    %4448 = vmatpush.msra.mxu0 0.0
    %4449 = vmatpush.msra.mxu0 0.0
    %4450 = vmatpush.msra.mxu0 0.0
    %4451 = vmatpush.msra.mxu0 0.0
    %4452 = vmatpush.msra.mxu0 0.0
    %4453 = vmatpush.msra.mxu0 0.0
    %4454 = vmatpush.msra.mxu0 0.0
    %4455 = vmatpush.msra.mxu0 0.0
    %4456 = vmatpush.msra.mxu0 %v4415
    %4457 = vmatpush.msra.mxu0 %v4414
    %4458 = vmatpush.msra.mxu0 %v4413
    %4459 = vmatpush.msra.mxu0 %v4412
    %4460 = vmatmul.f32.gmra.mxu0 %v4421
    %v4461 = vpop.f32.mrf.mxu0
    %v4462 = vadd.f32 %v4418, %v4461
    %4463 = vmatmul.f32.gmra.mxu0 %v4424
    %v4464 = vpop.f32.mrf.mxu0
    %v4465 = vadd.f32 %v4418, %v4464
    %4466 = vmatmul.f32.gmra.mxu0 %v4427
    %v4467 = vpop.f32.mrf.mxu0
    %v4468 = vadd.f32 %v4418, %v4467
    %4469 = vmatmul.f32.gmra.mxu0 %v4430
    %v4470 = vpop.f32.mrf.mxu0
    %v4471 = vadd.f32 %v4418, %v4470
    %4472 = vmatmul.f32.gmra.mxu0 %v4433
    %v4473 = vpop.f32.mrf.mxu0
    %v4474 = vadd.f32 %v4418, %v4473
    %4475 = vmatmul.f32.gmra.mxu0 %v4436
    %v4476 = vpop.f32.mrf.mxu0
    %v4477 = vadd.f32 %v4418, %v4476
    %4478 = vmatmul.f32.gmra.mxu0 %v4439
    %v4479 = vpop.f32.mrf.mxu0
    %v4480 = vadd.f32 %v4418, %v4479
    %4481 = vmatmul.f32.gmra.mxu0 %v4442
    %v4482 = vpop.f32.mrf.mxu0
    %v4483 = vadd.f32 %v4418, %v4482
    %4484 = vdwg.mxu0
    %vm4485 = vcmask 31744
    %v4486 = vsel %vm4485, %v4462, -inf
    %4487 = vmax.xlane.f32.xlu0 %v4486
    %v4488 = vpop.xlane.xlu0 %4487
    %v4489 = vsel %vm4485, %v4465, -inf
    %4490 = vmax.xlane.f32.xlu0 %v4489
    %v4491 = vpop.xlane.xlu0 %4490
    %v4492 = vsel %vm4485, %v4468, -inf
    %4493 = vmax.xlane.f32.xlu0 %v4492
    %v4494 = vpop.xlane.xlu0 %4493
    %v4495 = vsel %vm4485, %v4471, -inf
    %4496 = vmax.xlane.f32.xlu0 %v4495
    %v4497 = vpop.xlane.xlu0 %4496
    %v4498 = vsel %vm4485, %v4474, -inf
    %4499 = vmax.xlane.f32.xlu0 %v4498
    %v4500 = vpop.xlane.xlu0 %4499
    %v4501 = vsel %vm4485, %v4477, -inf
    %4502 = vmax.xlane.f32.xlu0 %v4501
    %v4503 = vpop.xlane.xlu0 %4502
    %v4504 = vsel %vm4485, %v4480, -inf
    %4505 = vmax.xlane.f32.xlu0 %v4504
    %v4506 = vpop.xlane.xlu0 %4505
    %v4507 = vsel %vm4485, %v4483, -inf
    %4508 = vmax.xlane.f32.xlu0 %v4507
    %v4509 = vpop.xlane.xlu0 %4508
    %v4510 = vsub.f32 %v4462, %v4488
    %v4511 = vsub.f32 %v4465, %v4491
    %v4512 = vsub.f32 %v4468, %v4494
    %v4513 = vsub.f32 %v4471, %v4497
    %v4514 = vsub.f32 %v4474, %v4500
    %v4515 = vsub.f32 %v4477, %v4503
    %v4516 = vsub.f32 %v4480, %v4506
    %v4517 = vsub.f32 %v4483, %v4509
    %v4518 = vmul.f32 %v4510, 1.442695
    %v4519 = vpow.pop %v4518
    %v4520 = vmul.f32 %v4511, 1.442695
    %v4521 = vpow.pop %v4520
    %v4522 = vmul.f32 %v4512, 1.442695
    %v4523 = vpow.pop %v4522
    %v4524 = vmul.f32 %v4513, 1.442695
    %v4525 = vpow.pop %v4524
    %v4526 = vmul.f32 %v4514, 1.442695
    %v4527 = vpow.pop %v4526
    %v4528 = vmul.f32 %v4515, 1.442695
    %v4529 = vpow.pop %v4528
    %v4530 = vmul.f32 %v4516, 1.442695
    %v4531 = vpow.pop %v4530
    %v4532 = vmul.f32 %v4517, 1.442695
    %v4533 = vpow.pop %v4532
    %v4534 = vsel %vm4485, %v4519, 0.0
    %4535 = vadd.xlane.f32.xlu0 %v4534
    %v4536 = vpop.xlane.xlu0 %4535
    %v4537 = vsel %vm4485, %v4521, 0.0
    %4538 = vadd.xlane.f32.xlu0 %v4537
    %v4539 = vpop.xlane.xlu0 %4538
    %v4540 = vsel %vm4485, %v4523, 0.0
    %4541 = vadd.xlane.f32.xlu0 %v4540
    %v4542 = vpop.xlane.xlu0 %4541
    %v4543 = vsel %vm4485, %v4525, 0.0
    %4544 = vadd.xlane.f32.xlu0 %v4543
    %v4545 = vpop.xlane.xlu0 %4544
    %v4546 = vsel %vm4485, %v4527, 0.0
    %4547 = vadd.xlane.f32.xlu0 %v4546
    %v4548 = vpop.xlane.xlu0 %4547
    %v4549 = vsel %vm4485, %v4529, 0.0
    %4550 = vadd.xlane.f32.xlu0 %v4549
    %v4551 = vpop.xlane.xlu0 %4550
    %v4552 = vsel %vm4485, %v4531, 0.0
    %4553 = vadd.xlane.f32.xlu0 %v4552
    %v4554 = vpop.xlane.xlu0 %4553
    %v4555 = vsel %vm4485, %v4533, 0.0
    %4556 = vadd.xlane.f32.xlu0 %v4555
    %v4557 = vpop.xlane.xlu0 %4556
    %v4558 = vrcp.pop %v4536
    %v4559 = vrcp.pop %v4539
    %v4560 = vrcp.pop %v4542
    %v4561 = vrcp.pop %v4545
    %v4562 = vrcp.pop %v4548
    %v4563 = vrcp.pop %v4551
    %v4564 = vrcp.pop %v4554
    %v4565 = vrcp.pop %v4557
    %v4566 = vmul.f32 %v4519, %v4558
    %v4567 = vmul.f32 %v4521, %v4559
    %v4568 = vmul.f32 %v4523, %v4560
    %v4569 = vmul.f32 %v4525, %v4561
    %v4570 = vmul.f32 %v4527, %v4562
    %v4571 = vmul.f32 %v4529, %v4563
    %v4572 = vmul.f32 %v4531, %v4564
    %v4573 = vmul.f32 %v4533, %v4565
    %v4574 = vld [vmem:[%s19] sm:$0xf]
    %v4576 = vsel %vm4485, %v4566, 0
    %v4579 = vsel %vm4485, %v4567, 0
    %v4582 = vsel %vm4485, %v4568, 0
    %v4585 = vsel %vm4485, %v4569, 0
    %v4588 = vsel %vm4485, %v4570, 0
    %v4591 = vsel %vm4485, %v4571, 0
    %v4594 = vsel %vm4485, %v4572, 0
    %v4597 = vsel %vm4485, %v4573, 0
    %vm4599 = vcmask 1043456
    %v4601 = vsel %vm4599, %v4574, 0
    %4603 = vmatpush.msra.mxu0 0.0
    %4604 = vmatpush.msra.mxu0 0.0
    %4605 = vmatpush.msra.mxu0 0.0
    %4606 = vmatpush.msra.mxu0 0.0
    %4607 = vmatpush.msra.mxu0 0.0
    %4608 = vmatpush.msra.mxu0 0.0
    %4609 = vmatpush.msra.mxu0 0.0
    %4610 = vmatpush.msra.mxu0 0.0
    %4611 = vmatpush.msra.mxu0 0.0
    %4612 = vmatpush.msra.mxu0 0.0
    %4613 = vmatpush.msra.mxu0 0.0
    %4614 = vmatpush.msra.mxu0 0.0
    %4615 = vmatpush.msra.mxu0 0.0
    %4616 = vmatpush.msra.mxu0 0.0
    %4617 = vmatpush.msra.mxu0 0.0
    %4618 = vmatpush.msra.mxu0 %v4601
    %4619 = vmatmul.f32.gmra.mxu0 %v4576
    %v4620 = vpop.f32.mrf.mxu0
    %v4621 = vadd.f32 0.0, %v4620
    %4622 = vmatmul.f32.gmra.mxu0 %v4579
    %v4623 = vpop.f32.mrf.mxu0
    %v4624 = vadd.f32 0.0, %v4623
    %4625 = vmatmul.f32.gmra.mxu0 %v4582
    %v4626 = vpop.f32.mrf.mxu0
    %v4627 = vadd.f32 0.0, %v4626
    %4628 = vmatmul.f32.gmra.mxu0 %v4585
    %v4629 = vpop.f32.mrf.mxu0
    %v4630 = vadd.f32 0.0, %v4629
    %4631 = vmatmul.f32.gmra.mxu0 %v4588
    %v4632 = vpop.f32.mrf.mxu0
    %v4633 = vadd.f32 0.0, %v4632
    %4634 = vmatmul.f32.gmra.mxu0 %v4591
    %v4635 = vpop.f32.mrf.mxu0
    %v4636 = vadd.f32 0.0, %v4635
    %4637 = vmatmul.f32.gmra.mxu0 %v4594
    %v4638 = vpop.f32.mrf.mxu0
    %v4639 = vadd.f32 0.0, %v4638
    %4640 = vmatmul.f32.gmra.mxu0 %v4597
    %v4641 = vpop.f32.mrf.mxu0
    %v4642 = vadd.f32 0.0, %v4641
    %4643 = vdwg.mxu0
    %v4644 = vmul.f32 %v4389, %v4621
    %v4645 = vmul.f32 %v4392, %v4624
    %v4646 = vmul.f32 %v4395, %v4627
    %v4647 = vmul.f32 %v4398, %v4630
    %v4648 = vmul.f32 %v4401, %v4633
    %v4649 = vmul.f32 %v4404, %v4636
    %v4650 = vmul.f32 %v4407, %v4639
    %v4651 = vmul.f32 %v4410, %v4642
    %4652 = vst.msk [vmem:[%s20] sm:$0xff] %vm199, %v4644
    %4653 = vst.msk [vmem:[%s20 + $0x8] sm:$0xff] %vm199, %v4645
    %4654 = vst.msk [vmem:[%s20 + $0x10] sm:$0xff] %vm199, %v4646
    %4655 = vst.msk [vmem:[%s20 + $0x18] sm:$0xff] %vm199, %v4647
    %4656 = vst.msk [vmem:[%s20 + $0x20] sm:$0xff] %vm199, %v4648
    %4657 = vst.msk [vmem:[%s20 + $0x28] sm:$0xff] %vm199, %v4649
    %4658 = vst.msk [vmem:[%s20 + $0x30] sm:$0xff] %vm199, %v4650
    %4659 = vst.msk [vmem:[%s20 + $0x38] sm:$0xff] %vm199, %v4651
    // Predicated region
    $region106: #{tpu_custom_call.1} parent=1 // pred_check
      _
    $region107: #{tpu_custom_call.1} parent=1 // pred_check_branch
      %4661 = sbr.rel (0) target = $region109
    $region108: #{tpu_custom_call.1} parent=1 // pred_region
      _
    $region109: #{tpu_custom_call.1} parent=1 // pred_fallthru
      _
    // Predicated region
    $region110: #{tpu_custom_call.1} parent=1 // pred_check
      _
    $region111: #{tpu_custom_call.1} parent=1 // pred_check_branch
      %4663 = sbr.rel (0) target = $region113
    $region112: #{tpu_custom_call.1} parent=1 // pred_region
      _
    $region113: #{tpu_custom_call.1} parent=1 // pred_fallthru
      _
    %4664 = vsyncpa [#allocation3], 1
    %4665 = vsyncpa [#allocation5], 1
    %4666 = vsyncpa [#allocation8], 1
    %4667 = vsyncpa [#allocation11], 1

</llo_original>
